<compile_context>
chip_gen: v7x
topology: tpu7x:2x2x1
jax: 0.10.0
libtpu: 0.0.40
codegen_flags: <defaults>
</compile_context>

<pallas_src>
import functools

import jax
import jax.numpy as jnp
from jax.experimental import pallas as pl
from jax.experimental.pallas import tpu as pltpu

# ---------------- model hyper-parameters (small, deterministic) -------------
B = 2        # batch
S = 8        # sequence length (stand-in for max_length=77)
D = 32       # hidden size
NUM_HEADS = 2
HEAD_DIM = D // NUM_HEADS
FF = 4 * D   # MLP intermediate size
P = 16       # text projection dim
LAYERS = 2
VOCAB = 64
EPS = 1e-5

# Softmax denominator uses the EUP approximate reciprocal (≈2^-12 rel. error).
# Set False to use an exact divide if bit-matching a reference matters.
APPROX_SOFTMAX_RECIP = True


# ---------------- in-kernel helpers ------------------------------------------
def _layer_norm(x, w, b):
    mu = jnp.mean(x, axis=-1, keepdims=True)
    var = jnp.mean((x - mu) ** 2, axis=-1, keepdims=True)
    return (x - mu) * jax.lax.rsqrt(var + EPS) * w + b


def _quick_gelu(x):
    # CLIP uses QuickGELU: x * sigmoid(1.702 * x)
    return x * jax.nn.sigmoid(1.702 * x)


# ---------------- fused Pallas kernel: full text transformer -----------------
def clip_text_fused_kernel(
    # scalar prefetch (SMEM)
    eos_ref,                                  # [B] int32
    # inputs (VMEM)
    x_ref,                                    # [B*S, D] f32 (token+pos embeddings)
    ln1_w_ref, ln1_b_ref,                     # [L, 1, D] f32
    q_w_ref, q_b_ref,                         # [L*H, D, hd] bf16 (scale folded), [L*H, 1, hd] f32
    k_w_ref, k_b_ref,                         # [L*H, D, hd] bf16, [L*H, 1, hd] f32
    v_w_ref, v_b_ref,                         # [L*H, D, hd] bf16, [L*H, 1, hd] f32
    o_w_ref, o_b_ref,                         # [L*H, hd, D] bf16, [L, 1, D] f32
    ln2_w_ref, ln2_b_ref,                     # [L, 1, D] f32
    fc1_w_ref, fc1_b_ref,                     # [L, D, FF] bf16, [L, 1, FF] f32
    fc2_w_ref, fc2_b_ref,                     # [L, FF, D] bf16, [L, 1, D] f32
    lnf_w_ref, lnf_b_ref,                     # [1, D] f32
    proj_ref,                                 # [D, P] bf16
    # output
    out_ref,                                  # [B, P] f32
    # scratch
    x_sc,                                     # VMEM [B*S, D] f32
    *, batch, seq, layers, num_heads, head_dim,
):
    f32 = jnp.float32
    bf16 = jnp.bfloat16

    x = x_ref[...]                            # [B*S, D] f32
    dim = x.shape[-1]

    # 2-D causal mask, built once, reused across heads / batch / layers
    qi = jax.lax.broadcasted_iota(jnp.int32, (seq, seq), 0)
    ki = jax.lax.broadcasted_iota(jnp.int32, (seq, seq), 1)
    causal = ki <= qi

    def softmax_rows(s):
        s = s - jnp.max(s, axis=-1, keepdims=True)
        p = jnp.exp(s)
        denom = jnp.sum(p, axis=-1, keepdims=True)
        if APPROX_SOFTMAX_RECIP:
            return p * pl.reciprocal(denom, approx=True)
        return p / denom

    def mlp(x_in, l):
        h = _layer_norm(x_in, ln2_w_ref[l], ln2_b_ref[l])
        h = (jnp.dot(h.astype(bf16), fc1_w_ref[l], preferred_element_type=f32)
             + fc1_b_ref[l])
        h = _quick_gelu(h)
        h = (jnp.dot(h.astype(bf16), fc2_w_ref[l], preferred_element_type=f32)
             + fc2_b_ref[l])
        return x_in + h

    # ---- layers 0 .. L-2: full sequence, batch folded into matmul rows ----
    for l in range(layers - 1):
        h = _layer_norm(x, ln1_w_ref[l], ln1_b_ref[l]).astype(bf16)      # [B*S, D]
        attn_b = [jnp.zeros((seq, dim), f32) for _ in range(batch)]
        for hh in range(num_heads):
            lh = l * num_heads + hh
            # per-head projections start at lane 0 -> no lane slicing
            qh = (jnp.dot(h, q_w_ref[lh], preferred_element_type=f32)
                  + q_b_ref[lh]).astype(bf16)                            # [B*S, hd]
            kh = (jnp.dot(h, k_w_ref[lh], preferred_element_type=f32)
                  + k_b_ref[lh]).astype(bf16)
            vh = (jnp.dot(h, v_w_ref[lh], preferred_element_type=f32)
                  + v_b_ref[lh]).astype(bf16)
            ow = o_w_ref[lh]                                             # [hd, D] bf16
            for b in range(batch):
                lo = b * seq                                             # sublane-aligned
                qb = qh[lo:lo + seq, :]
                kb = kh[lo:lo + seq, :]
                vb = vh[lo:lo + seq, :]
                s = jax.lax.dot_general(qb, kb, (((1,), (1,)), ((), ())),
                                        preferred_element_type=f32)     # [S, S]
                s = jnp.where(causal, s, f32(-1e30))
                p = softmax_rows(s)
                ctx = jnp.dot(p.astype(bf16), vb, preferred_element_type=f32)
                # accumulate output projection per head -> no head concat
                attn_b[b] = attn_b[b] + jnp.dot(ctx.astype(bf16), ow,
                                                preferred_element_type=f32)
        attn = jnp.concatenate(attn_b, axis=0) + o_b_ref[l]              # sublane concat
        x = x + attn
        x = mlp(x, l)

    # ---- last layer: K/V over full sequence, Q + MLP only at the EOS rows ----
    l = layers - 1
    x_sc[...] = x                               # residual stream -> VMEM scratch
    h_full = _layer_norm(x, ln1_w_ref[l], ln1_b_ref[l]).astype(bf16)

    k_heads, v_heads = [], []
    for hh in range(num_heads):
        lh = l * num_heads + hh
        k_heads.append((jnp.dot(h_full, k_w_ref[lh], preferred_element_type=f32)
                        + k_b_ref[lh]).astype(bf16))                     # [B*S, hd]
        v_heads.append((jnp.dot(h_full, v_w_ref[lh], preferred_element_type=f32)
                        + v_b_ref[lh]).astype(bf16))

    key_pos = jax.lax.broadcasted_iota(jnp.int32, (1, seq), 1)
    out_rows = []
    for b in range(batch):
        idx = eos_ref[b]                                                 # SMEM scalar
        row_x = x_sc[pl.ds(b * seq + idx, 1), :]                         # [1, D] dynamic row
        h_row = _layer_norm(row_x, ln1_w_ref[l], ln1_b_ref[l]).astype(bf16)
        kmask = key_pos <= idx                                           # causal row @ EOS
        attn_row = jnp.zeros((1, dim), f32)
        for hh in range(num_heads):
            lh = l * num_heads + hh
            q = (jnp.dot(h_row, q_w_ref[lh], preferred_element_type=f32)
                 + q_b_ref[lh]).astype(bf16)                             # [1, hd]
            kb = k_heads[hh][b * seq:(b + 1) * seq, :]
            vb = v_heads[hh][b * seq:(b + 1) * seq, :]
            s = jax.lax.dot_general(q, kb, (((1,), (1,)), ((), ())),
                                    preferred_element_type=f32)          # [1, S]
            s = jnp.where(kmask, s, f32(-1e30))
            p = softmax_rows(s)
            ctx = jnp.dot(p.astype(bf16), vb, preferred_element_type=f32)
            attn_row = attn_row + jnp.dot(ctx.astype(bf16), o_w_ref[lh],
                                          preferred_element_type=f32)
        row = row_x + attn_row + o_b_ref[l]                              # [1, D]
        row = mlp(row, l)
        # final LN + text projection (no bias)
        row = _layer_norm(row, lnf_w_ref[...], lnf_b_ref[...])
        out_rows.append(jnp.dot(row.astype(bf16), proj_ref[...],
                                preferred_element_type=f32))             # [1, P]

    out_ref[...] = jnp.concatenate(out_rows, axis=0)                     # [B, P]


# ---------------- pallas_call wrapper -----------------------------------------
def clip_text_forward_pallas(x_emb, eos_idx, params):
    """x_emb: [B, S, D] f32 (token+pos embeddings); eos_idx: [B] int32."""
    b, s, d = x_emb.shape
    p = params['text_projection'].shape[1]
    x_flat = x_emb.reshape(b * s, d)            # fold batch into matmul M dim

    weights = (params['ln1_w'], params['ln1_b'],
               params['q_w'], params['q_b'],
               params['k_w'], params['k_b'],
               params['v_w'], params['v_b'],
               params['o_w'], params['o_b'],
               params['ln2_w'], params['ln2_b'],
               params['fc1_w'], params['fc1_b'],
               params['fc2_w'], params['fc2_b'],
               params['final_ln_w'], params['final_ln_b'],
               params['text_projection'])

    kernel = functools.partial(clip_text_fused_kernel,
                               batch=b, seq=s, layers=LAYERS,
                               num_heads=NUM_HEADS, head_dim=HEAD_DIM)

    def full_spec(arr):
        nd = arr.ndim
        return pl.BlockSpec(arr.shape, lambda i, eos, _nd=nd: (0,) * _nd)

    out = pl.pallas_call(
        kernel,
        out_shape=jax.ShapeDtypeStruct((b, p), jnp.float32),
        grid_spec=pltpu.PrefetchScalarGridSpec(
            num_scalar_prefetch=1,
            grid=(1,),                           # single program; all B seqs share it
            in_specs=[pl.BlockSpec((b * s, d), lambda i, eos: (0, 0))]
                     + [full_spec(w) for w in weights],
            out_specs=pl.BlockSpec((b, p), lambda i, eos: (0, 0)),
            scratch_shapes=[pltpu.VMEM((b * s, d), jnp.float32)],
        ),
        compiler_params=pltpu.CompilerParams(
            dimension_semantics=("arbitrary",)),
    )(eos_idx, x_flat, *weights)
    return out                                   # [B, P]


# ---------------- parameter init (deterministic, synthetic) ------------------
def init_params(key):
    keys = iter(jax.random.split(key, 3 + 6 * LAYERS))

    def nrm(shape, scale=0.02):
        return (scale * jax.random.normal(next(keys), shape)).astype(jnp.float32)

    params = {
        'token_embedding': nrm((VOCAB, D)),
        'position_embedding': nrm((S, D)),
        'final_ln_w': jnp.ones((1, D), jnp.float32),
        'final_ln_b': jnp.zeros((1, D), jnp.float32),
        'text_projection': nrm((D, P)).astype(jnp.bfloat16),
    }

    attn_scale = HEAD_DIM ** -0.5
    acc = {k: [] for k in ('ln1_w', 'ln1_b', 'q_w', 'q_b', 'k_w', 'k_b',
                           'v_w', 'v_b', 'o_w', 'o_b', 'ln2_w', 'ln2_b',
                           'fc1_w', 'fc1_b', 'fc2_w', 'fc2_b')}
    for _ in range(LAYERS):
        # fold attention scale into Q weight AND Q bias (bias is zero here,
        # but keep the invariant so real checkpoints load correctly)
        q_w = nrm((D, D)) * attn_scale
        k_w = nrm((D, D))
        v_w = nrm((D, D))
        q_b = jnp.zeros((D,), jnp.float32) * attn_scale
        k_b = jnp.zeros((D,), jnp.float32)
        v_b = jnp.zeros((D,), jnp.float32)
        o_w = nrm((D, D))
        # per-head layout: head h's projection output columns start at lane 0
        acc['q_w'].append(q_w.reshape(D, NUM_HEADS, HEAD_DIM).transpose(1, 0, 2))
        acc['k_w'].append(k_w.reshape(D, NUM_HEADS, HEAD_DIM).transpose(1, 0, 2))
        acc['v_w'].append(v_w.reshape(D, NUM_HEADS, HEAD_DIM).transpose(1, 0, 2))
        acc['q_b'].append(q_b.reshape(NUM_HEADS, 1, HEAD_DIM))
        acc['k_b'].append(k_b.reshape(NUM_HEADS, 1, HEAD_DIM))
        acc['v_b'].append(v_b.reshape(NUM_HEADS, 1, HEAD_DIM))
        acc['o_w'].append(o_w.reshape(NUM_HEADS, HEAD_DIM, D))   # row block h == head h
        acc['o_b'].append(jnp.zeros((1, D), jnp.float32))
        acc['ln1_w'].append(jnp.ones((1, D), jnp.float32))
        acc['ln1_b'].append(jnp.zeros((1, D), jnp.float32))
        acc['ln2_w'].append(jnp.ones((1, D), jnp.float32))
        acc['ln2_b'].append(jnp.zeros((1, D), jnp.float32))
        acc['fc1_w'].append(nrm((D, FF)))
        acc['fc1_b'].append(jnp.zeros((1, FF), jnp.float32))
        acc['fc2_w'].append(nrm((FF, D)))
        acc['fc2_b'].append(jnp.zeros((1, D), jnp.float32))

    for k, v in acc.items():
        params[k] = jnp.stack(v, axis=0)

    # flatten [L, H, ...] -> [L*H, ...] (single leading index inside the kernel)
    for k in ('q_w', 'k_w', 'v_w'):
        params[k] = params[k].reshape(LAYERS * NUM_HEADS, D, HEAD_DIM).astype(jnp.bfloat16)
    for k in ('q_b', 'k_b', 'v_b'):
        params[k] = params[k].reshape(LAYERS * NUM_HEADS, 1, HEAD_DIM)
    params['o_w'] = params['o_w'].reshape(LAYERS * NUM_HEADS, HEAD_DIM, D).astype(jnp.bfloat16)
    for k in ('fc1_w', 'fc2_w'):
        params[k] = params[k].astype(jnp.bfloat16)
    return params


# ---------------- full forward (glue in plain JAX, hot path in Pallas) -------
def clip_text_features(input_ids, params):
    tok = jnp.take(params['token_embedding'], input_ids, axis=0)    # [B, S, D]
    pos = params['position_embedding'][None, :, :]                  # [1, S, D]
    x = (tok + pos).astype(jnp.float32)
    # HF CLIP pools the hidden state at argmax(input_ids) (EOS has max id)
    eos_idx = jnp.argmax(input_ids, axis=-1).astype(jnp.int32)      # [B]
    return clip_text_forward_pallas(x, eos_idx, params)             # [B, P]


# ---------------- pure-JAX reference (for correctness check) -----------------
def clip_text_features_ref(input_ids, params):
    tok = jnp.take(params['token_embedding'], input_ids, axis=0)
    x = (tok + params['position_embedding'][None]).astype(jnp.float32)
    eos = jnp.argmax(input_ids, axis=-1)
    bb, ss, _ = x.shape

    def ln(v, w, b):
        mu = jnp.mean(v, axis=-1, keepdims=True)
        var = jnp.mean((v - mu) ** 2, axis=-1, keepdims=True)
        return (v - mu) * jax.lax.rsqrt(var + EPS) * w + b

    causal = jnp.tril(jnp.ones((ss, ss), bool))
    for l in range(LAYERS):
        h = ln(x, params['ln1_w'][l], params['ln1_b'][l])
        attn = jnp.zeros_like(x)
        for hh in range(NUM_HEADS):
            lh = l * NUM_HEADS + hh
            q = h @ params['q_w'][lh].astype(jnp.float32) + params['q_b'][lh]
            k = h @ params['k_w'][lh].astype(jnp.float32) + params['k_b'][lh]
            v = h @ params['v_w'][lh].astype(jnp.float32) + params['v_b'][lh]
            s = jnp.einsum('bqd,bkd->bqk', q, k)
            s = jnp.where(causal, s, -1e30)
            p = jax.nn.softmax(s, axis=-1)
            ctx = jnp.einsum('bqk,bkd->bqd', p, v)
            attn = attn + ctx @ params['o_w'][lh].astype(jnp.float32)
        x = x + attn + params['o_b'][l]
        h = ln(x, params['ln2_w'][l], params['ln2_b'][l])
        h = h @ params['fc1_w'][l].astype(jnp.float32) + params['fc1_b'][l]
        h = h * jax.nn.sigmoid(1.702 * h)
        h = h @ params['fc2_w'][l].astype(jnp.float32) + params['fc2_b'][l]
        x = x + h
    x = ln(x, params['final_ln_w'], params['final_ln_b'])
    pooled = x[jnp.arange(bb), eos]
    return pooled @ params['text_projection'].astype(jnp.float32)


# ---------------- main --------------------------------------------------------
if __name__ == "__main__":
    key = jax.random.PRNGKey(0)
    pkey, ikey = jax.random.split(key)

    params = init_params(pkey)

    # synthetic "tokenized" input: random ids, EOS (= highest id) at last slot
    input_ids = jax.random.randint(ikey, (B, S), minval=1, maxval=VOCAB - 1,
                                   dtype=jnp.int32)
    input_ids = input_ids.at[:, -1].set(VOCAB - 1)

    feats = clip_text_features(input_ids, params)
    feats = jax.block_until_ready(feats)

    ref = clip_text_features_ref(input_ids, params)
    err = float(jnp.max(jnp.abs(feats - ref)))

    assert feats.shape == (B, P), feats.shape
    assert jnp.all(jnp.isfinite(feats))
    assert err < 5e-2, f"mismatch vs reference: max abs err {err}"
    print("KERNEL_OK")
</pallas_src>

<mosaic_0001>
module attributes {stable_mosaic.version = 11 : i64} {
  func.func @clip_text_fused_kernel(%arg0: i32, %arg1: memref<2xi32, #tpu.memory_space<smem>>, %arg2: memref<16x32xf32, #tpu.memory_space<vmem>>, %arg3: memref<2x1x32xf32, #tpu.memory_space<vmem>>, %arg4: memref<2x1x32xf32, #tpu.memory_space<vmem>>, %arg5: memref<4x32x16xbf16, #tpu.memory_space<vmem>>, %arg6: memref<4x1x16xf32, #tpu.memory_space<vmem>>, %arg7: memref<4x32x16xbf16, #tpu.memory_space<vmem>>, %arg8: memref<4x1x16xf32, #tpu.memory_space<vmem>>, %arg9: memref<4x32x16xbf16, #tpu.memory_space<vmem>>, %arg10: memref<4x1x16xf32, #tpu.memory_space<vmem>>, %arg11: memref<4x16x32xbf16, #tpu.memory_space<vmem>>, %arg12: memref<2x1x32xf32, #tpu.memory_space<vmem>>, %arg13: memref<2x1x32xf32, #tpu.memory_space<vmem>>, %arg14: memref<2x1x32xf32, #tpu.memory_space<vmem>>, %arg15: memref<2x32x128xbf16, #tpu.memory_space<vmem>>, %arg16: memref<2x1x128xf32, #tpu.memory_space<vmem>>, %arg17: memref<2x128x32xbf16, #tpu.memory_space<vmem>>, %arg18: memref<2x1x32xf32, #tpu.memory_space<vmem>>, %arg19: memref<1x32xf32, #tpu.memory_space<vmem>>, %arg20: memref<1x32xf32, #tpu.memory_space<vmem>>, %arg21: memref<32x16xbf16, #tpu.memory_space<vmem>>, %arg22: memref<2x16xf32, #tpu.memory_space<vmem>>, %arg23: memref<16x32xf32, #tpu.memory_space<vmem>>) attributes {dimension_semantics = [#tpu.dimension_semantics<arbitrary>], iteration_bounds = array<i64: 1>, scalar_prefetch = 1 : i64, scratch_operands = 1 : i64, tpu.core_type = #tpu.core_type<tc>, window_params = [{pipeline_mode = #tpu.pipeline_mode<synchronous>, transform_indices = @transform_0, window_bounds = array<i64: 16, 32>}, {pipeline_mode = #tpu.pipeline_mode<synchronous>, transform_indices = @transform_1, window_bounds = array<i64: 2, 1, 32>}, {pipeline_mode = #tpu.pipeline_mode<synchronous>, transform_indices = @transform_2, window_bounds = array<i64: 2, 1, 32>}, {pipeline_mode = #tpu.pipeline_mode<synchronous>, transform_indices = @transform_3, window_bounds = array<i64: 4, 32, 16>}, {pipeline_mode = #tpu.pipeline_mode<synchronous>, transform_indices = @transform_4, window_bounds = array<i64: 4, 1, 16>}, {pipeline_mode = #tpu.pipeline_mode<synchronous>, transform_indices = @transform_5, window_bounds = array<i64: 4, 32, 16>}, {pipeline_mode = #tpu.pipeline_mode<synchronous>, transform_indices = @transform_6, window_bounds = array<i64: 4, 1, 16>}, {pipeline_mode = #tpu.pipeline_mode<synchronous>, transform_indices = @transform_7, window_bounds = array<i64: 4, 32, 16>}, {pipeline_mode = #tpu.pipeline_mode<synchronous>, transform_indices = @transform_8, window_bounds = array<i64: 4, 1, 16>}, {pipeline_mode = #tpu.pipeline_mode<synchronous>, transform_indices = @transform_9, window_bounds = array<i64: 4, 16, 32>}, {pipeline_mode = #tpu.pipeline_mode<synchronous>, transform_indices = @transform_10, window_bounds = array<i64: 2, 1, 32>}, {pipeline_mode = #tpu.pipeline_mode<synchronous>, transform_indices = @transform_11, window_bounds = array<i64: 2, 1, 32>}, {pipeline_mode = #tpu.pipeline_mode<synchronous>, transform_indices = @transform_12, window_bounds = array<i64: 2, 1, 32>}, {pipeline_mode = #tpu.pipeline_mode<synchronous>, transform_indices = @transform_13, window_bounds = array<i64: 2, 32, 128>}, {pipeline_mode = #tpu.pipeline_mode<synchronous>, transform_indices = @transform_14, window_bounds = array<i64: 2, 1, 128>}, {pipeline_mode = #tpu.pipeline_mode<synchronous>, transform_indices = @transform_15, window_bounds = array<i64: 2, 128, 32>}, {pipeline_mode = #tpu.pipeline_mode<synchronous>, transform_indices = @transform_16, window_bounds = array<i64: 2, 1, 32>}, {pipeline_mode = #tpu.pipeline_mode<synchronous>, transform_indices = @transform_17, window_bounds = array<i64: 1, 32>}, {pipeline_mode = #tpu.pipeline_mode<synchronous>, transform_indices = @transform_18, window_bounds = array<i64: 1, 32>}, {pipeline_mode = #tpu.pipeline_mode<synchronous>, transform_indices = @transform_19, window_bounds = array<i64: 32, 16>}, {pipeline_mode = #tpu.pipeline_mode<synchronous>, transform_indices = @transform_20, window_bounds = array<i64: 2, 16>}]} {
    %c0 = arith.constant 0 : index
    %c0_0 = arith.constant 0 : index
    %0 = vector.load %arg2[%c0, %c0_0] : memref<16x32xf32, #tpu.memory_space<vmem>>, vector<16x32xf32>
    %1 = tpu.iota {dimensions = array<i32: 0>} : vector<8x8xi32>
    %2 = tpu.iota {dimensions = array<i32: 1>} : vector<8x8xi32>
    %3 = arith.cmpi sle, %2, %1 : vector<8x8xi32>
    %c0_1 = arith.constant 0 : index
    %c0_2 = arith.constant 0 : index
    %c0_3 = arith.constant 0 : index
    %4 = vector.load %arg3[%c0_1, %c0_2, %c0_3] : memref<2x1x32xf32, #tpu.memory_space<vmem>>, vector<1x1x32xf32>
    %5 = vector.shape_cast %4 : vector<1x1x32xf32> to vector<1x32xf32>
    %c0_4 = arith.constant 0 : index
    %c0_5 = arith.constant 0 : index
    %c0_6 = arith.constant 0 : index
    %6 = vector.load %arg4[%c0_4, %c0_5, %c0_6] : memref<2x1x32xf32, #tpu.memory_space<vmem>>, vector<1x1x32xf32>
    %7 = vector.shape_cast %6 : vector<1x1x32xf32> to vector<1x32xf32>
    %cst = arith.constant dense<0.000000e+00> : vector<16xf32>
    %8 = vector.multi_reduction <add>, %0, %cst [1] : vector<16x32xf32> to vector<16xf32>
    %9 = vector.shape_cast %8 : vector<16xf32> to vector<16x1xf32>
    %cst_7 = arith.constant 3.200000e+01 : f32
    %10 = vector.broadcast %cst_7 : f32 to vector<16x1xf32>
    %11 = arith.divf %9, %10 : vector<16x1xf32>
    %12 = vector.broadcast %11 : vector<16x1xf32> to vector<16x32xf32>
    %13 = arith.subf %0, %12 : vector<16x32xf32>
    %14 = arith.mulf %13, %13 : vector<16x32xf32>
    %cst_8 = arith.constant dense<0.000000e+00> : vector<16xf32>
    %15 = vector.multi_reduction <add>, %14, %cst_8 [1] : vector<16x32xf32> to vector<16xf32>
    %16 = vector.shape_cast %15 : vector<16xf32> to vector<16x1xf32>
    %cst_9 = arith.constant 3.200000e+01 : f32
    %17 = vector.broadcast %cst_9 : f32 to vector<16x1xf32>
    %18 = arith.divf %16, %17 : vector<16x1xf32>
    %19 = vector.broadcast %11 : vector<16x1xf32> to vector<16x32xf32>
    %20 = arith.subf %0, %19 : vector<16x32xf32>
    %cst_10 = arith.constant 9.99999974E-6 : f32
    %21 = vector.broadcast %cst_10 : f32 to vector<16x1xf32>
    %22 = arith.addf %18, %21 : vector<16x1xf32>
    %23 = math.rsqrt %22 : vector<16x1xf32>
    %24 = vector.broadcast %23 : vector<16x1xf32> to vector<16x32xf32>
    %25 = arith.mulf %20, %24 : vector<16x32xf32>
    %26 = vector.broadcast %5 : vector<1x32xf32> to vector<16x32xf32>
    %27 = arith.mulf %25, %26 : vector<16x32xf32>
    %28 = vector.broadcast %7 : vector<1x32xf32> to vector<16x32xf32>
    %29 = arith.addf %27, %28 : vector<16x32xf32>
    %30 = arith.truncf %29 : vector<16x32xf32> to vector<16x32xbf16>
    %cst_11 = arith.constant 0.000000e+00 : f32
    %31 = vector.broadcast %cst_11 : f32 to vector<8x32xf32>
    %cst_12 = arith.constant 0.000000e+00 : f32
    %32 = vector.broadcast %cst_12 : f32 to vector<8x32xf32>
    %c0_13 = arith.constant 0 : index
    %c0_14 = arith.constant 0 : index
    %c0_15 = arith.constant 0 : index
    %33 = vector.load %arg5[%c0_13, %c0_14, %c0_15] : memref<4x32x16xbf16, #tpu.memory_space<vmem>>, vector<1x32x16xbf16>
    %34 = vector.shape_cast %33 : vector<1x32x16xbf16> to vector<32x16xbf16>
    %cst_16 = arith.constant dense<0.000000e+00> : vector<16x16xf32>
    %35 = tpu.matmul %30, %34, %cst_16 {dimension_numbers = #tpu.dot_dimension_numbers<[1], [0], [0], [1], [0, 0, 1, 1], [], []>} : vector<16x32xbf16>, vector<32x16xbf16>, vector<16x16xf32> -> vector<16x16xf32>
    %c0_17 = arith.constant 0 : index
    %c0_18 = arith.constant 0 : index
    %c0_19 = arith.constant 0 : index
    %36 = vector.load %arg6[%c0_17, %c0_18, %c0_19] : memref<4x1x16xf32, #tpu.memory_space<vmem>>, vector<1x1x16xf32>
    %37 = vector.shape_cast %36 : vector<1x1x16xf32> to vector<1x16xf32>
    %38 = vector.broadcast %37 : vector<1x16xf32> to vector<16x16xf32>
    %39 = arith.addf %35, %38 : vector<16x16xf32>
    %40 = arith.truncf %39 : vector<16x16xf32> to vector<16x16xbf16>
    %c0_20 = arith.constant 0 : index
    %c0_21 = arith.constant 0 : index
    %c0_22 = arith.constant 0 : index
    %41 = vector.load %arg7[%c0_20, %c0_21, %c0_22] : memref<4x32x16xbf16, #tpu.memory_space<vmem>>, vector<1x32x16xbf16>
    %42 = vector.shape_cast %41 : vector<1x32x16xbf16> to vector<32x16xbf16>
    %cst_23 = arith.constant dense<0.000000e+00> : vector<16x16xf32>
    %43 = tpu.matmul %30, %42, %cst_23 {dimension_numbers = #tpu.dot_dimension_numbers<[1], [0], [0], [1], [0, 0, 1, 1], [], []>} : vector<16x32xbf16>, vector<32x16xbf16>, vector<16x16xf32> -> vector<16x16xf32>
    %c0_24 = arith.constant 0 : index
    %c0_25 = arith.constant 0 : index
    %c0_26 = arith.constant 0 : index
    %44 = vector.load %arg8[%c0_24, %c0_25, %c0_26] : memref<4x1x16xf32, #tpu.memory_space<vmem>>, vector<1x1x16xf32>
    %45 = vector.shape_cast %44 : vector<1x1x16xf32> to vector<1x16xf32>
    %46 = vector.broadcast %45 : vector<1x16xf32> to vector<16x16xf32>
    %47 = arith.addf %43, %46 : vector<16x16xf32>
    %48 = arith.truncf %47 : vector<16x16xf32> to vector<16x16xbf16>
    %c0_27 = arith.constant 0 : index
    %c0_28 = arith.constant 0 : index
    %c0_29 = arith.constant 0 : index
    %49 = vector.load %arg9[%c0_27, %c0_28, %c0_29] : memref<4x32x16xbf16, #tpu.memory_space<vmem>>, vector<1x32x16xbf16>
    %50 = vector.shape_cast %49 : vector<1x32x16xbf16> to vector<32x16xbf16>
    %cst_30 = arith.constant dense<0.000000e+00> : vector<16x16xf32>
    %51 = tpu.matmul %30, %50, %cst_30 {dimension_numbers = #tpu.dot_dimension_numbers<[1], [0], [0], [1], [0, 0, 1, 1], [], []>} : vector<16x32xbf16>, vector<32x16xbf16>, vector<16x16xf32> -> vector<16x16xf32>
    %c0_31 = arith.constant 0 : index
    %c0_32 = arith.constant 0 : index
    %c0_33 = arith.constant 0 : index
    %52 = vector.load %arg10[%c0_31, %c0_32, %c0_33] : memref<4x1x16xf32, #tpu.memory_space<vmem>>, vector<1x1x16xf32>
    %53 = vector.shape_cast %52 : vector<1x1x16xf32> to vector<1x16xf32>
    %54 = vector.broadcast %53 : vector<1x16xf32> to vector<16x16xf32>
    %55 = arith.addf %51, %54 : vector<16x16xf32>
    %56 = arith.truncf %55 : vector<16x16xf32> to vector<16x16xbf16>
    %c0_34 = arith.constant 0 : index
    %c0_35 = arith.constant 0 : index
    %c0_36 = arith.constant 0 : index
    %57 = vector.load %arg11[%c0_34, %c0_35, %c0_36] : memref<4x16x32xbf16, #tpu.memory_space<vmem>>, vector<1x16x32xbf16>
    %58 = vector.shape_cast %57 : vector<1x16x32xbf16> to vector<16x32xbf16>
    %59 = vector.extract_strided_slice %40 {offsets = [0, 0], sizes = [8, 16], strides = [1, 1]} : vector<16x16xbf16> to vector<8x16xbf16>
    %60 = vector.extract_strided_slice %48 {offsets = [0, 0], sizes = [8, 16], strides = [1, 1]} : vector<16x16xbf16> to vector<8x16xbf16>
    %61 = vector.extract_strided_slice %56 {offsets = [0, 0], sizes = [8, 16], strides = [1, 1]} : vector<16x16xbf16> to vector<8x16xbf16>
    %cst_37 = arith.constant dense<0.000000e+00> : vector<8x8xf32>
    %62 = tpu.matmul %59, %60, %cst_37 {dimension_numbers = #tpu.dot_dimension_numbers<[1], [1], [0], [0], [0, 0, 1, 0], [], []>} : vector<8x16xbf16>, vector<8x16xbf16>, vector<8x8xf32> -> vector<8x8xf32>
    %cst_38 = arith.constant -1.000000e+30 : f32
    %63 = vector.broadcast %cst_38 : f32 to vector<8x8xf32>
    %64 = arith.select %3, %62, %63 : vector<8x8xi1>, vector<8x8xf32>
    %cst_39 = arith.constant dense<0xFF800000> : vector<8xf32>
    %65 = vector.multi_reduction <maximumf>, %64, %cst_39 [1] : vector<8x8xf32> to vector<8xf32>
    %66 = vector.shape_cast %65 : vector<8xf32> to vector<8x1xf32>
    %67 = vector.broadcast %66 : vector<8x1xf32> to vector<8x8xf32>
    %68 = arith.subf %64, %67 : vector<8x8xf32>
    %69 = math.exp %68 : vector<8x8xf32>
    %cst_40 = arith.constant dense<0.000000e+00> : vector<8xf32>
    %70 = vector.multi_reduction <add>, %69, %cst_40 [1] : vector<8x8xf32> to vector<8xf32>
    %71 = vector.shape_cast %70 : vector<8xf32> to vector<8x1xf32>
    %72 = tpu.reciprocal %71 {approx = true} : vector<8x1xf32> -> vector<8x1xf32>
    %73 = vector.broadcast %72 : vector<8x1xf32> to vector<8x8xf32>
    %74 = arith.mulf %69, %73 : vector<8x8xf32>
    %75 = arith.truncf %74 : vector<8x8xf32> to vector<8x8xbf16>
    %cst_41 = arith.constant dense<0.000000e+00> : vector<8x16xf32>
    %76 = tpu.matmul %75, %61, %cst_41 {dimension_numbers = #tpu.dot_dimension_numbers<[1], [0], [0], [1], [0, 0, 1, 1], [], []>} : vector<8x8xbf16>, vector<8x16xbf16>, vector<8x16xf32> -> vector<8x16xf32>
    %77 = arith.truncf %76 : vector<8x16xf32> to vector<8x16xbf16>
    %cst_42 = arith.constant dense<0.000000e+00> : vector<8x32xf32>
    %78 = tpu.matmul %77, %58, %cst_42 {dimension_numbers = #tpu.dot_dimension_numbers<[1], [0], [0], [1], [0, 0, 1, 1], [], []>} : vector<8x16xbf16>, vector<16x32xbf16>, vector<8x32xf32> -> vector<8x32xf32>
    %79 = arith.addf %31, %78 : vector<8x32xf32>
    %80 = vector.extract_strided_slice %40 {offsets = [8, 0], sizes = [8, 16], strides = [1, 1]} : vector<16x16xbf16> to vector<8x16xbf16>
    %81 = vector.extract_strided_slice %48 {offsets = [8, 0], sizes = [8, 16], strides = [1, 1]} : vector<16x16xbf16> to vector<8x16xbf16>
    %82 = vector.extract_strided_slice %56 {offsets = [8, 0], sizes = [8, 16], strides = [1, 1]} : vector<16x16xbf16> to vector<8x16xbf16>
    %cst_43 = arith.constant dense<0.000000e+00> : vector<8x8xf32>
    %83 = tpu.matmul %80, %81, %cst_43 {dimension_numbers = #tpu.dot_dimension_numbers<[1], [1], [0], [0], [0, 0, 1, 0], [], []>} : vector<8x16xbf16>, vector<8x16xbf16>, vector<8x8xf32> -> vector<8x8xf32>
    %cst_44 = arith.constant -1.000000e+30 : f32
    %84 = vector.broadcast %cst_44 : f32 to vector<8x8xf32>
    %85 = arith.select %3, %83, %84 : vector<8x8xi1>, vector<8x8xf32>
    %cst_45 = arith.constant dense<0xFF800000> : vector<8xf32>
    %86 = vector.multi_reduction <maximumf>, %85, %cst_45 [1] : vector<8x8xf32> to vector<8xf32>
    %87 = vector.shape_cast %86 : vector<8xf32> to vector<8x1xf32>
    %88 = vector.broadcast %87 : vector<8x1xf32> to vector<8x8xf32>
    %89 = arith.subf %85, %88 : vector<8x8xf32>
    %90 = math.exp %89 : vector<8x8xf32>
    %cst_46 = arith.constant dense<0.000000e+00> : vector<8xf32>
    %91 = vector.multi_reduction <add>, %90, %cst_46 [1] : vector<8x8xf32> to vector<8xf32>
    %92 = vector.shape_cast %91 : vector<8xf32> to vector<8x1xf32>
    %93 = tpu.reciprocal %92 {approx = true} : vector<8x1xf32> -> vector<8x1xf32>
    %94 = vector.broadcast %93 : vector<8x1xf32> to vector<8x8xf32>
    %95 = arith.mulf %90, %94 : vector<8x8xf32>
    %96 = arith.truncf %95 : vector<8x8xf32> to vector<8x8xbf16>
    %cst_47 = arith.constant dense<0.000000e+00> : vector<8x16xf32>
    %97 = tpu.matmul %96, %82, %cst_47 {dimension_numbers = #tpu.dot_dimension_numbers<[1], [0], [0], [1], [0, 0, 1, 1], [], []>} : vector<8x8xbf16>, vector<8x16xbf16>, vector<8x16xf32> -> vector<8x16xf32>
    %98 = arith.truncf %97 : vector<8x16xf32> to vector<8x16xbf16>
    %cst_48 = arith.constant dense<0.000000e+00> : vector<8x32xf32>
    %99 = tpu.matmul %98, %58, %cst_48 {dimension_numbers = #tpu.dot_dimension_numbers<[1], [0], [0], [1], [0, 0, 1, 1], [], []>} : vector<8x16xbf16>, vector<16x32xbf16>, vector<8x32xf32> -> vector<8x32xf32>
    %100 = arith.addf %32, %99 : vector<8x32xf32>
    %c1 = arith.constant 1 : index
    %c0_49 = arith.constant 0 : index
    %c0_50 = arith.constant 0 : index
    %101 = vector.load %arg5[%c1, %c0_49, %c0_50] : memref<4x32x16xbf16, #tpu.memory_space<vmem>>, vector<1x32x16xbf16>
    %102 = vector.shape_cast %101 : vector<1x32x16xbf16> to vector<32x16xbf16>
    %cst_51 = arith.constant dense<0.000000e+00> : vector<16x16xf32>
    %103 = tpu.matmul %30, %102, %cst_51 {dimension_numbers = #tpu.dot_dimension_numbers<[1], [0], [0], [1], [0, 0, 1, 1], [], []>} : vector<16x32xbf16>, vector<32x16xbf16>, vector<16x16xf32> -> vector<16x16xf32>
    %c1_52 = arith.constant 1 : index
    %c0_53 = arith.constant 0 : index
    %c0_54 = arith.constant 0 : index
    %104 = vector.load %arg6[%c1_52, %c0_53, %c0_54] : memref<4x1x16xf32, #tpu.memory_space<vmem>>, vector<1x1x16xf32>
    %105 = vector.shape_cast %104 : vector<1x1x16xf32> to vector<1x16xf32>
    %106 = vector.broadcast %105 : vector<1x16xf32> to vector<16x16xf32>
    %107 = arith.addf %103, %106 : vector<16x16xf32>
    %108 = arith.truncf %107 : vector<16x16xf32> to vector<16x16xbf16>
    %c1_55 = arith.constant 1 : index
    %c0_56 = arith.constant 0 : index
    %c0_57 = arith.constant 0 : index
    %109 = vector.load %arg7[%c1_55, %c0_56, %c0_57] : memref<4x32x16xbf16, #tpu.memory_space<vmem>>, vector<1x32x16xbf16>
    %110 = vector.shape_cast %109 : vector<1x32x16xbf16> to vector<32x16xbf16>
    %cst_58 = arith.constant dense<0.000000e+00> : vector<16x16xf32>
    %111 = tpu.matmul %30, %110, %cst_58 {dimension_numbers = #tpu.dot_dimension_numbers<[1], [0], [0], [1], [0, 0, 1, 1], [], []>} : vector<16x32xbf16>, vector<32x16xbf16>, vector<16x16xf32> -> vector<16x16xf32>
    %c1_59 = arith.constant 1 : index
    %c0_60 = arith.constant 0 : index
    %c0_61 = arith.constant 0 : index
    %112 = vector.load %arg8[%c1_59, %c0_60, %c0_61] : memref<4x1x16xf32, #tpu.memory_space<vmem>>, vector<1x1x16xf32>
    %113 = vector.shape_cast %112 : vector<1x1x16xf32> to vector<1x16xf32>
    %114 = vector.broadcast %113 : vector<1x16xf32> to vector<16x16xf32>
    %115 = arith.addf %111, %114 : vector<16x16xf32>
    %116 = arith.truncf %115 : vector<16x16xf32> to vector<16x16xbf16>
    %c1_62 = arith.constant 1 : index
    %c0_63 = arith.constant 0 : index
    %c0_64 = arith.constant 0 : index
    %117 = vector.load %arg9[%c1_62, %c0_63, %c0_64] : memref<4x32x16xbf16, #tpu.memory_space<vmem>>, vector<1x32x16xbf16>
    %118 = vector.shape_cast %117 : vector<1x32x16xbf16> to vector<32x16xbf16>
    %cst_65 = arith.constant dense<0.000000e+00> : vector<16x16xf32>
    %119 = tpu.matmul %30, %118, %cst_65 {dimension_numbers = #tpu.dot_dimension_numbers<[1], [0], [0], [1], [0, 0, 1, 1], [], []>} : vector<16x32xbf16>, vector<32x16xbf16>, vector<16x16xf32> -> vector<16x16xf32>
    %c1_66 = arith.constant 1 : index
    %c0_67 = arith.constant 0 : index
    %c0_68 = arith.constant 0 : index
    %120 = vector.load %arg10[%c1_66, %c0_67, %c0_68] : memref<4x1x16xf32, #tpu.memory_space<vmem>>, vector<1x1x16xf32>
    %121 = vector.shape_cast %120 : vector<1x1x16xf32> to vector<1x16xf32>
    %122 = vector.broadcast %121 : vector<1x16xf32> to vector<16x16xf32>
    %123 = arith.addf %119, %122 : vector<16x16xf32>
    %124 = arith.truncf %123 : vector<16x16xf32> to vector<16x16xbf16>
    %c1_69 = arith.constant 1 : index
    %c0_70 = arith.constant 0 : index
    %c0_71 = arith.constant 0 : index
    %125 = vector.load %arg11[%c1_69, %c0_70, %c0_71] : memref<4x16x32xbf16, #tpu.memory_space<vmem>>, vector<1x16x32xbf16>
    %126 = vector.shape_cast %125 : vector<1x16x32xbf16> to vector<16x32xbf16>
    %127 = vector.extract_strided_slice %108 {offsets = [0, 0], sizes = [8, 16], strides = [1, 1]} : vector<16x16xbf16> to vector<8x16xbf16>
    %128 = vector.extract_strided_slice %116 {offsets = [0, 0], sizes = [8, 16], strides = [1, 1]} : vector<16x16xbf16> to vector<8x16xbf16>
    %129 = vector.extract_strided_slice %124 {offsets = [0, 0], sizes = [8, 16], strides = [1, 1]} : vector<16x16xbf16> to vector<8x16xbf16>
    %cst_72 = arith.constant dense<0.000000e+00> : vector<8x8xf32>
    %130 = tpu.matmul %127, %128, %cst_72 {dimension_numbers = #tpu.dot_dimension_numbers<[1], [1], [0], [0], [0, 0, 1, 0], [], []>} : vector<8x16xbf16>, vector<8x16xbf16>, vector<8x8xf32> -> vector<8x8xf32>
    %cst_73 = arith.constant -1.000000e+30 : f32
    %131 = vector.broadcast %cst_73 : f32 to vector<8x8xf32>
    %132 = arith.select %3, %130, %131 : vector<8x8xi1>, vector<8x8xf32>
    %cst_74 = arith.constant dense<0xFF800000> : vector<8xf32>
    %133 = vector.multi_reduction <maximumf>, %132, %cst_74 [1] : vector<8x8xf32> to vector<8xf32>
    %134 = vector.shape_cast %133 : vector<8xf32> to vector<8x1xf32>
    %135 = vector.broadcast %134 : vector<8x1xf32> to vector<8x8xf32>
    %136 = arith.subf %132, %135 : vector<8x8xf32>
    %137 = math.exp %136 : vector<8x8xf32>
    %cst_75 = arith.constant dense<0.000000e+00> : vector<8xf32>
    %138 = vector.multi_reduction <add>, %137, %cst_75 [1] : vector<8x8xf32> to vector<8xf32>
    %139 = vector.shape_cast %138 : vector<8xf32> to vector<8x1xf32>
    %140 = tpu.reciprocal %139 {approx = true} : vector<8x1xf32> -> vector<8x1xf32>
    %141 = vector.broadcast %140 : vector<8x1xf32> to vector<8x8xf32>
    %142 = arith.mulf %137, %141 : vector<8x8xf32>
    %143 = arith.truncf %142 : vector<8x8xf32> to vector<8x8xbf16>
    %cst_76 = arith.constant dense<0.000000e+00> : vector<8x16xf32>
    %144 = tpu.matmul %143, %129, %cst_76 {dimension_numbers = #tpu.dot_dimension_numbers<[1], [0], [0], [1], [0, 0, 1, 1], [], []>} : vector<8x8xbf16>, vector<8x16xbf16>, vector<8x16xf32> -> vector<8x16xf32>
    %145 = arith.truncf %144 : vector<8x16xf32> to vector<8x16xbf16>
    %cst_77 = arith.constant dense<0.000000e+00> : vector<8x32xf32>
    %146 = tpu.matmul %145, %126, %cst_77 {dimension_numbers = #tpu.dot_dimension_numbers<[1], [0], [0], [1], [0, 0, 1, 1], [], []>} : vector<8x16xbf16>, vector<16x32xbf16>, vector<8x32xf32> -> vector<8x32xf32>
    %147 = arith.addf %79, %146 : vector<8x32xf32>
    %148 = vector.extract_strided_slice %108 {offsets = [8, 0], sizes = [8, 16], strides = [1, 1]} : vector<16x16xbf16> to vector<8x16xbf16>
    %149 = vector.extract_strided_slice %116 {offsets = [8, 0], sizes = [8, 16], strides = [1, 1]} : vector<16x16xbf16> to vector<8x16xbf16>
    %150 = vector.extract_strided_slice %124 {offsets = [8, 0], sizes = [8, 16], strides = [1, 1]} : vector<16x16xbf16> to vector<8x16xbf16>
    %cst_78 = arith.constant dense<0.000000e+00> : vector<8x8xf32>
    %151 = tpu.matmul %148, %149, %cst_78 {dimension_numbers = #tpu.dot_dimension_numbers<[1], [1], [0], [0], [0, 0, 1, 0], [], []>} : vector<8x16xbf16>, vector<8x16xbf16>, vector<8x8xf32> -> vector<8x8xf32>
    %cst_79 = arith.constant -1.000000e+30 : f32
    %152 = vector.broadcast %cst_79 : f32 to vector<8x8xf32>
    %153 = arith.select %3, %151, %152 : vector<8x8xi1>, vector<8x8xf32>
    %cst_80 = arith.constant dense<0xFF800000> : vector<8xf32>
    %154 = vector.multi_reduction <maximumf>, %153, %cst_80 [1] : vector<8x8xf32> to vector<8xf32>
    %155 = vector.shape_cast %154 : vector<8xf32> to vector<8x1xf32>
    %156 = vector.broadcast %155 : vector<8x1xf32> to vector<8x8xf32>
    %157 = arith.subf %153, %156 : vector<8x8xf32>
    %158 = math.exp %157 : vector<8x8xf32>
    %cst_81 = arith.constant dense<0.000000e+00> : vector<8xf32>
    %159 = vector.multi_reduction <add>, %158, %cst_81 [1] : vector<8x8xf32> to vector<8xf32>
    %160 = vector.shape_cast %159 : vector<8xf32> to vector<8x1xf32>
    %161 = tpu.reciprocal %160 {approx = true} : vector<8x1xf32> -> vector<8x1xf32>
    %162 = vector.broadcast %161 : vector<8x1xf32> to vector<8x8xf32>
    %163 = arith.mulf %158, %162 : vector<8x8xf32>
    %164 = arith.truncf %163 : vector<8x8xf32> to vector<8x8xbf16>
    %cst_82 = arith.constant dense<0.000000e+00> : vector<8x16xf32>
    %165 = tpu.matmul %164, %150, %cst_82 {dimension_numbers = #tpu.dot_dimension_numbers<[1], [0], [0], [1], [0, 0, 1, 1], [], []>} : vector<8x8xbf16>, vector<8x16xbf16>, vector<8x16xf32> -> vector<8x16xf32>
    %166 = arith.truncf %165 : vector<8x16xf32> to vector<8x16xbf16>
    %cst_83 = arith.constant dense<0.000000e+00> : vector<8x32xf32>
    %167 = tpu.matmul %166, %126, %cst_83 {dimension_numbers = #tpu.dot_dimension_numbers<[1], [0], [0], [1], [0, 0, 1, 1], [], []>} : vector<8x16xbf16>, vector<16x32xbf16>, vector<8x32xf32> -> vector<8x32xf32>
    %168 = arith.addf %100, %167 : vector<8x32xf32>
    %169 = tpu.concatenate %147, %168 in 0 : vector<8x32xf32>, vector<8x32xf32> -> vector<16x32xf32>
    %c0_84 = arith.constant 0 : index
    %c0_85 = arith.constant 0 : index
    %c0_86 = arith.constant 0 : index
    %170 = vector.load %arg12[%c0_84, %c0_85, %c0_86] : memref<2x1x32xf32, #tpu.memory_space<vmem>>, vector<1x1x32xf32>
    %171 = vector.shape_cast %170 : vector<1x1x32xf32> to vector<1x32xf32>
    %172 = vector.broadcast %171 : vector<1x32xf32> to vector<16x32xf32>
    %173 = arith.addf %169, %172 : vector<16x32xf32>
    %174 = arith.addf %0, %173 : vector<16x32xf32>
    %c0_87 = arith.constant 0 : index
    %c0_88 = arith.constant 0 : index
    %c0_89 = arith.constant 0 : index
    %175 = vector.load %arg13[%c0_87, %c0_88, %c0_89] : memref<2x1x32xf32, #tpu.memory_space<vmem>>, vector<1x1x32xf32>
    %176 = vector.shape_cast %175 : vector<1x1x32xf32> to vector<1x32xf32>
    %c0_90 = arith.constant 0 : index
    %c0_91 = arith.constant 0 : index
    %c0_92 = arith.constant 0 : index
    %177 = vector.load %arg14[%c0_90, %c0_91, %c0_92] : memref<2x1x32xf32, #tpu.memory_space<vmem>>, vector<1x1x32xf32>
    %178 = vector.shape_cast %177 : vector<1x1x32xf32> to vector<1x32xf32>
    %cst_93 = arith.constant dense<0.000000e+00> : vector<16xf32>
    %179 = vector.multi_reduction <add>, %174, %cst_93 [1] : vector<16x32xf32> to vector<16xf32>
    %180 = vector.shape_cast %179 : vector<16xf32> to vector<16x1xf32>
    %cst_94 = arith.constant 3.200000e+01 : f32
    %181 = vector.broadcast %cst_94 : f32 to vector<16x1xf32>
    %182 = arith.divf %180, %181 : vector<16x1xf32>
    %183 = vector.broadcast %182 : vector<16x1xf32> to vector<16x32xf32>
    %184 = arith.subf %174, %183 : vector<16x32xf32>
    %185 = arith.mulf %184, %184 : vector<16x32xf32>
    %cst_95 = arith.constant dense<0.000000e+00> : vector<16xf32>
    %186 = vector.multi_reduction <add>, %185, %cst_95 [1] : vector<16x32xf32> to vector<16xf32>
    %187 = vector.shape_cast %186 : vector<16xf32> to vector<16x1xf32>
    %cst_96 = arith.constant 3.200000e+01 : f32
    %188 = vector.broadcast %cst_96 : f32 to vector<16x1xf32>
    %189 = arith.divf %187, %188 : vector<16x1xf32>
    %190 = vector.broadcast %182 : vector<16x1xf32> to vector<16x32xf32>
    %191 = arith.subf %174, %190 : vector<16x32xf32>
    %cst_97 = arith.constant 9.99999974E-6 : f32
    %192 = vector.broadcast %cst_97 : f32 to vector<16x1xf32>
    %193 = arith.addf %189, %192 : vector<16x1xf32>
    %194 = math.rsqrt %193 : vector<16x1xf32>
    %195 = vector.broadcast %194 : vector<16x1xf32> to vector<16x32xf32>
    %196 = arith.mulf %191, %195 : vector<16x32xf32>
    %197 = vector.broadcast %176 : vector<1x32xf32> to vector<16x32xf32>
    %198 = arith.mulf %196, %197 : vector<16x32xf32>
    %199 = vector.broadcast %178 : vector<1x32xf32> to vector<16x32xf32>
    %200 = arith.addf %198, %199 : vector<16x32xf32>
    %201 = arith.truncf %200 : vector<16x32xf32> to vector<16x32xbf16>
    %c0_98 = arith.constant 0 : index
    %c0_99 = arith.constant 0 : index
    %c0_100 = arith.constant 0 : index
    %202 = vector.load %arg15[%c0_98, %c0_99, %c0_100] : memref<2x32x128xbf16, #tpu.memory_space<vmem>>, vector<1x32x128xbf16>
    %203 = vector.shape_cast %202 : vector<1x32x128xbf16> to vector<32x128xbf16>
    %cst_101 = arith.constant dense<0.000000e+00> : vector<16x128xf32>
    %204 = tpu.matmul %201, %203, %cst_101 {dimension_numbers = #tpu.dot_dimension_numbers<[1], [0], [0], [1], [0, 0, 1, 1], [], []>} : vector<16x32xbf16>, vector<32x128xbf16>, vector<16x128xf32> -> vector<16x128xf32>
    %c0_102 = arith.constant 0 : index
    %c0_103 = arith.constant 0 : index
    %c0_104 = arith.constant 0 : index
    %205 = vector.load %arg16[%c0_102, %c0_103, %c0_104] : memref<2x1x128xf32, #tpu.memory_space<vmem>>, vector<1x1x128xf32>
    %206 = vector.shape_cast %205 : vector<1x1x128xf32> to vector<1x128xf32>
    %207 = vector.broadcast %206 : vector<1x128xf32> to vector<16x128xf32>
    %208 = arith.addf %204, %207 : vector<16x128xf32>
    %cst_105 = arith.constant 1.702000e+00 : f32
    %209 = vector.broadcast %cst_105 : f32 to vector<16x128xf32>
    %210 = arith.mulf %209, %208 : vector<16x128xf32>
    %211 = arith.negf %210 : vector<16x128xf32>
    %212 = math.exp %211 : vector<16x128xf32>
    %cst_106 = arith.constant 1.000000e+00 : f32
    %213 = vector.broadcast %cst_106 : f32 to vector<16x128xf32>
    %214 = arith.addf %213, %212 : vector<16x128xf32>
    %215 = arith.divf %213, %214 : vector<16x128xf32>
    %216 = arith.mulf %208, %215 : vector<16x128xf32>
    %217 = arith.truncf %216 : vector<16x128xf32> to vector<16x128xbf16>
    %c0_107 = arith.constant 0 : index
    %c0_108 = arith.constant 0 : index
    %c0_109 = arith.constant 0 : index
    %218 = vector.load %arg17[%c0_107, %c0_108, %c0_109] : memref<2x128x32xbf16, #tpu.memory_space<vmem>>, vector<1x128x32xbf16>
    %219 = vector.shape_cast %218 : vector<1x128x32xbf16> to vector<128x32xbf16>
    %cst_110 = arith.constant dense<0.000000e+00> : vector<16x32xf32>
    %220 = tpu.matmul %217, %219, %cst_110 {dimension_numbers = #tpu.dot_dimension_numbers<[1], [0], [0], [1], [0, 0, 1, 1], [], []>} : vector<16x128xbf16>, vector<128x32xbf16>, vector<16x32xf32> -> vector<16x32xf32>
    %c0_111 = arith.constant 0 : index
    %c0_112 = arith.constant 0 : index
    %c0_113 = arith.constant 0 : index
    %221 = vector.load %arg18[%c0_111, %c0_112, %c0_113] : memref<2x1x32xf32, #tpu.memory_space<vmem>>, vector<1x1x32xf32>
    %222 = vector.shape_cast %221 : vector<1x1x32xf32> to vector<1x32xf32>
    %223 = vector.broadcast %222 : vector<1x32xf32> to vector<16x32xf32>
    %224 = arith.addf %220, %223 : vector<16x32xf32>
    %225 = arith.addf %174, %224 : vector<16x32xf32>
    %c0_114 = arith.constant 0 : index
    %c0_115 = arith.constant 0 : index
    %226 = vector.load %arg23[%c0_114, %c0_115] : memref<16x32xf32, #tpu.memory_space<vmem>>, vector<16x32xf32>
    tpu.vector_store %arg23[%c0_114, %c0_115], %225 {strides = array<i32>} : memref<16x32xf32, #tpu.memory_space<vmem>>, vector<16x32xf32>,
    %c1_116 = arith.constant 1 : index
    %c0_117 = arith.constant 0 : index
    %c0_118 = arith.constant 0 : index
    %227 = vector.load %arg3[%c1_116, %c0_117, %c0_118] : memref<2x1x32xf32, #tpu.memory_space<vmem>>, vector<1x1x32xf32>
    %228 = vector.shape_cast %227 : vector<1x1x32xf32> to vector<1x32xf32>
    %c1_119 = arith.constant 1 : index
    %c0_120 = arith.constant 0 : index
    %c0_121 = arith.constant 0 : index
    %229 = vector.load %arg4[%c1_119, %c0_120, %c0_121] : memref<2x1x32xf32, #tpu.memory_space<vmem>>, vector<1x1x32xf32>
    %230 = vector.shape_cast %229 : vector<1x1x32xf32> to vector<1x32xf32>
    %cst_122 = arith.constant dense<0.000000e+00> : vector<16xf32>
    %231 = vector.multi_reduction <add>, %225, %cst_122 [1] : vector<16x32xf32> to vector<16xf32>
    %232 = vector.shape_cast %231 : vector<16xf32> to vector<16x1xf32>
    %cst_123 = arith.constant 3.200000e+01 : f32
    %233 = vector.broadcast %cst_123 : f32 to vector<16x1xf32>
    %234 = arith.divf %232, %233 : vector<16x1xf32>
    %235 = vector.broadcast %234 : vector<16x1xf32> to vector<16x32xf32>
    %236 = arith.subf %225, %235 : vector<16x32xf32>
    %237 = arith.mulf %236, %236 : vector<16x32xf32>
    %cst_124 = arith.constant dense<0.000000e+00> : vector<16xf32>
    %238 = vector.multi_reduction <add>, %237, %cst_124 [1] : vector<16x32xf32> to vector<16xf32>
    %239 = vector.shape_cast %238 : vector<16xf32> to vector<16x1xf32>
    %cst_125 = arith.constant 3.200000e+01 : f32
    %240 = vector.broadcast %cst_125 : f32 to vector<16x1xf32>
    %241 = arith.divf %239, %240 : vector<16x1xf32>
    %242 = vector.broadcast %234 : vector<16x1xf32> to vector<16x32xf32>
    %243 = arith.subf %225, %242 : vector<16x32xf32>
    %cst_126 = arith.constant 9.99999974E-6 : f32
    %244 = vector.broadcast %cst_126 : f32 to vector<16x1xf32>
    %245 = arith.addf %241, %244 : vector<16x1xf32>
    %246 = math.rsqrt %245 : vector<16x1xf32>
    %247 = vector.broadcast %246 : vector<16x1xf32> to vector<16x32xf32>
    %248 = arith.mulf %243, %247 : vector<16x32xf32>
    %249 = vector.broadcast %228 : vector<1x32xf32> to vector<16x32xf32>
    %250 = arith.mulf %248, %249 : vector<16x32xf32>
    %251 = vector.broadcast %230 : vector<1x32xf32> to vector<16x32xf32>
    %252 = arith.addf %250, %251 : vector<16x32xf32>
    %253 = arith.truncf %252 : vector<16x32xf32> to vector<16x32xbf16>
    %c2 = arith.constant 2 : index
    %c0_127 = arith.constant 0 : index
    %c0_128 = arith.constant 0 : index
    %254 = vector.load %arg7[%c2, %c0_127, %c0_128] : memref<4x32x16xbf16, #tpu.memory_space<vmem>>, vector<1x32x16xbf16>
    %255 = vector.shape_cast %254 : vector<1x32x16xbf16> to vector<32x16xbf16>
    %cst_129 = arith.constant dense<0.000000e+00> : vector<16x16xf32>
    %256 = tpu.matmul %253, %255, %cst_129 {dimension_numbers = #tpu.dot_dimension_numbers<[1], [0], [0], [1], [0, 0, 1, 1], [], []>} : vector<16x32xbf16>, vector<32x16xbf16>, vector<16x16xf32> -> vector<16x16xf32>
    %c2_130 = arith.constant 2 : index
    %c0_131 = arith.constant 0 : index
    %c0_132 = arith.constant 0 : index
    %257 = vector.load %arg8[%c2_130, %c0_131, %c0_132] : memref<4x1x16xf32, #tpu.memory_space<vmem>>, vector<1x1x16xf32>
    %258 = vector.shape_cast %257 : vector<1x1x16xf32> to vector<1x16xf32>
    %259 = vector.broadcast %258 : vector<1x16xf32> to vector<16x16xf32>
    %260 = arith.addf %256, %259 : vector<16x16xf32>
    %261 = arith.truncf %260 : vector<16x16xf32> to vector<16x16xbf16>
    %c2_133 = arith.constant 2 : index
    %c0_134 = arith.constant 0 : index
    %c0_135 = arith.constant 0 : index
    %262 = vector.load %arg9[%c2_133, %c0_134, %c0_135] : memref<4x32x16xbf16, #tpu.memory_space<vmem>>, vector<1x32x16xbf16>
    %263 = vector.shape_cast %262 : vector<1x32x16xbf16> to vector<32x16xbf16>
    %cst_136 = arith.constant dense<0.000000e+00> : vector<16x16xf32>
    %264 = tpu.matmul %253, %263, %cst_136 {dimension_numbers = #tpu.dot_dimension_numbers<[1], [0], [0], [1], [0, 0, 1, 1], [], []>} : vector<16x32xbf16>, vector<32x16xbf16>, vector<16x16xf32> -> vector<16x16xf32>
    %c2_137 = arith.constant 2 : index
    %c0_138 = arith.constant 0 : index
    %c0_139 = arith.constant 0 : index
    %265 = vector.load %arg10[%c2_137, %c0_138, %c0_139] : memref<4x1x16xf32, #tpu.memory_space<vmem>>, vector<1x1x16xf32>
    %266 = vector.shape_cast %265 : vector<1x1x16xf32> to vector<1x16xf32>
    %267 = vector.broadcast %266 : vector<1x16xf32> to vector<16x16xf32>
    %268 = arith.addf %264, %267 : vector<16x16xf32>
    %269 = arith.truncf %268 : vector<16x16xf32> to vector<16x16xbf16>
    %c3 = arith.constant 3 : index
    %c0_140 = arith.constant 0 : index
    %c0_141 = arith.constant 0 : index
    %270 = vector.load %arg7[%c3, %c0_140, %c0_141] : memref<4x32x16xbf16, #tpu.memory_space<vmem>>, vector<1x32x16xbf16>
    %271 = vector.shape_cast %270 : vector<1x32x16xbf16> to vector<32x16xbf16>
    %cst_142 = arith.constant dense<0.000000e+00> : vector<16x16xf32>
    %272 = tpu.matmul %253, %271, %cst_142 {dimension_numbers = #tpu.dot_dimension_numbers<[1], [0], [0], [1], [0, 0, 1, 1], [], []>} : vector<16x32xbf16>, vector<32x16xbf16>, vector<16x16xf32> -> vector<16x16xf32>
    %c3_143 = arith.constant 3 : index
    %c0_144 = arith.constant 0 : index
    %c0_145 = arith.constant 0 : index
    %273 = vector.load %arg8[%c3_143, %c0_144, %c0_145] : memref<4x1x16xf32, #tpu.memory_space<vmem>>, vector<1x1x16xf32>
    %274 = vector.shape_cast %273 : vector<1x1x16xf32> to vector<1x16xf32>
    %275 = vector.broadcast %274 : vector<1x16xf32> to vector<16x16xf32>
    %276 = arith.addf %272, %275 : vector<16x16xf32>
    %277 = arith.truncf %276 : vector<16x16xf32> to vector<16x16xbf16>
    %c3_146 = arith.constant 3 : index
    %c0_147 = arith.constant 0 : index
    %c0_148 = arith.constant 0 : index
    %278 = vector.load %arg9[%c3_146, %c0_147, %c0_148] : memref<4x32x16xbf16, #tpu.memory_space<vmem>>, vector<1x32x16xbf16>
    %279 = vector.shape_cast %278 : vector<1x32x16xbf16> to vector<32x16xbf16>
    %cst_149 = arith.constant dense<0.000000e+00> : vector<16x16xf32>
    %280 = tpu.matmul %253, %279, %cst_149 {dimension_numbers = #tpu.dot_dimension_numbers<[1], [0], [0], [1], [0, 0, 1, 1], [], []>} : vector<16x32xbf16>, vector<32x16xbf16>, vector<16x16xf32> -> vector<16x16xf32>
    %c3_150 = arith.constant 3 : index
    %c0_151 = arith.constant 0 : index
    %c0_152 = arith.constant 0 : index
    %281 = vector.load %arg10[%c3_150, %c0_151, %c0_152] : memref<4x1x16xf32, #tpu.memory_space<vmem>>, vector<1x1x16xf32>
    %282 = vector.shape_cast %281 : vector<1x1x16xf32> to vector<1x16xf32>
    %283 = vector.broadcast %282 : vector<1x16xf32> to vector<16x16xf32>
    %284 = arith.addf %280, %283 : vector<16x16xf32>
    %285 = arith.truncf %284 : vector<16x16xf32> to vector<16x16xbf16>
    %286 = tpu.iota {dimensions = array<i32: 1>} : vector<1x8xi32>
    %c0_153 = arith.constant 0 : index
    %287 = memref.load %arg1[%c0_153] : memref<2xi32, #tpu.memory_space<smem>>
    %c0_i32 = arith.constant 0 : i32
    %288 = arith.addi %c0_i32, %287 : i32
    %289 = arith.index_cast %288 : i32 to index
    %c0_154 = arith.constant 0 : index
    %290 = vector.load %arg23[%289, %c0_154] : memref<16x32xf32, #tpu.memory_space<vmem>>, vector<1x32xf32>
    %c1_155 = arith.constant 1 : index
    %c0_156 = arith.constant 0 : index
    %c0_157 = arith.constant 0 : index
    %291 = vector.load %arg3[%c1_155, %c0_156, %c0_157] : memref<2x1x32xf32, #tpu.memory_space<vmem>>, vector<1x1x32xf32>
    %292 = vector.shape_cast %291 : vector<1x1x32xf32> to vector<1x32xf32>
    %c1_158 = arith.constant 1 : index
    %c0_159 = arith.constant 0 : index
    %c0_160 = arith.constant 0 : index
    %293 = vector.load %arg4[%c1_158, %c0_159, %c0_160] : memref<2x1x32xf32, #tpu.memory_space<vmem>>, vector<1x1x32xf32>
    %294 = vector.shape_cast %293 : vector<1x1x32xf32> to vector<1x32xf32>
    %cst_161 = arith.constant dense<0.000000e+00> : vector<1xf32>
    %295 = vector.multi_reduction <add>, %290, %cst_161 [1] : vector<1x32xf32> to vector<1xf32>
    %296 = vector.shape_cast %295 : vector<1xf32> to vector<1x1xf32>
    %cst_162 = arith.constant 3.200000e+01 : f32
    %297 = vector.broadcast %cst_162 : f32 to vector<1x1xf32>
    %298 = arith.divf %296, %297 : vector<1x1xf32>
    %299 = vector.broadcast %298 : vector<1x1xf32> to vector<1x32xf32>
    %300 = arith.subf %290, %299 : vector<1x32xf32>
    %301 = arith.mulf %300, %300 : vector<1x32xf32>
    %cst_163 = arith.constant dense<0.000000e+00> : vector<1xf32>
    %302 = vector.multi_reduction <add>, %301, %cst_163 [1] : vector<1x32xf32> to vector<1xf32>
    %303 = vector.shape_cast %302 : vector<1xf32> to vector<1x1xf32>
    %cst_164 = arith.constant 3.200000e+01 : f32
    %304 = vector.broadcast %cst_164 : f32 to vector<1x1xf32>
    %305 = arith.divf %303, %304 : vector<1x1xf32>
    %306 = vector.broadcast %298 : vector<1x1xf32> to vector<1x32xf32>
    %307 = arith.subf %290, %306 : vector<1x32xf32>
    %cst_165 = arith.constant 9.99999974E-6 : f32
    %308 = vector.broadcast %cst_165 : f32 to vector<1x1xf32>
    %309 = arith.addf %305, %308 : vector<1x1xf32>
    %310 = math.rsqrt %309 : vector<1x1xf32>
    %311 = vector.broadcast %310 : vector<1x1xf32> to vector<1x32xf32>
    %312 = arith.mulf %307, %311 : vector<1x32xf32>
    %313 = arith.mulf %312, %292 : vector<1x32xf32>
    %314 = arith.addf %313, %294 : vector<1x32xf32>
    %315 = arith.truncf %314 : vector<1x32xf32> to vector<1x32xbf16>
    %316 = vector.broadcast %287 : i32 to vector<1x8xi32>
    %317 = arith.cmpi sle, %286, %316 : vector<1x8xi32>
    %cst_166 = arith.constant 0.000000e+00 : f32
    %318 = vector.broadcast %cst_166 : f32 to vector<1x32xf32>
    %c2_167 = arith.constant 2 : index
    %c0_168 = arith.constant 0 : index
    %c0_169 = arith.constant 0 : index
    %319 = vector.load %arg5[%c2_167, %c0_168, %c0_169] : memref<4x32x16xbf16, #tpu.memory_space<vmem>>, vector<1x32x16xbf16>
    %320 = vector.shape_cast %319 : vector<1x32x16xbf16> to vector<32x16xbf16>
    %cst_170 = arith.constant dense<0.000000e+00> : vector<1x16xf32>
    %321 = tpu.matmul %315, %320, %cst_170 {dimension_numbers = #tpu.dot_dimension_numbers<[1], [0], [0], [1], [0, 0, 1, 1], [], []>} : vector<1x32xbf16>, vector<32x16xbf16>, vector<1x16xf32> -> vector<1x16xf32>
    %c2_171 = arith.constant 2 : index
    %c0_172 = arith.constant 0 : index
    %c0_173 = arith.constant 0 : index
    %322 = vector.load %arg6[%c2_171, %c0_172, %c0_173] : memref<4x1x16xf32, #tpu.memory_space<vmem>>, vector<1x1x16xf32>
    %323 = vector.shape_cast %322 : vector<1x1x16xf32> to vector<1x16xf32>
    %324 = arith.addf %321, %323 : vector<1x16xf32>
    %325 = arith.truncf %324 : vector<1x16xf32> to vector<1x16xbf16>
    %326 = vector.extract_strided_slice %261 {offsets = [0, 0], sizes = [8, 16], strides = [1, 1]} : vector<16x16xbf16> to vector<8x16xbf16>
    %327 = vector.extract_strided_slice %269 {offsets = [0, 0], sizes = [8, 16], strides = [1, 1]} : vector<16x16xbf16> to vector<8x16xbf16>
    %cst_174 = arith.constant dense<0.000000e+00> : vector<1x8xf32>
    %328 = tpu.matmul %325, %326, %cst_174 {dimension_numbers = #tpu.dot_dimension_numbers<[1], [1], [0], [0], [0, 0, 1, 0], [], []>} : vector<1x16xbf16>, vector<8x16xbf16>, vector<1x8xf32> -> vector<1x8xf32>
    %cst_175 = arith.constant -1.000000e+30 : f32
    %329 = vector.broadcast %cst_175 : f32 to vector<1x8xf32>
    %330 = arith.select %317, %328, %329 : vector<1x8xi1>, vector<1x8xf32>
    %cst_176 = arith.constant dense<0xFF800000> : vector<1xf32>
    %331 = vector.multi_reduction <maximumf>, %330, %cst_176 [1] : vector<1x8xf32> to vector<1xf32>
    %332 = vector.shape_cast %331 : vector<1xf32> to vector<1x1xf32>
    %333 = vector.broadcast %332 : vector<1x1xf32> to vector<1x8xf32>
    %334 = arith.subf %330, %333 : vector<1x8xf32>
    %335 = math.exp %334 : vector<1x8xf32>
    %cst_177 = arith.constant dense<0.000000e+00> : vector<1xf32>
    %336 = vector.multi_reduction <add>, %335, %cst_177 [1] : vector<1x8xf32> to vector<1xf32>
    %337 = vector.shape_cast %336 : vector<1xf32> to vector<1x1xf32>
    %338 = tpu.reciprocal %337 {approx = true} : vector<1x1xf32> -> vector<1x1xf32>
    %339 = vector.broadcast %338 : vector<1x1xf32> to vector<1x8xf32>
    %340 = arith.mulf %335, %339 : vector<1x8xf32>
    %341 = arith.truncf %340 : vector<1x8xf32> to vector<1x8xbf16>
    %cst_178 = arith.constant dense<0.000000e+00> : vector<1x16xf32>
    %342 = tpu.matmul %341, %327, %cst_178 {dimension_numbers = #tpu.dot_dimension_numbers<[1], [0], [0], [1], [0, 0, 1, 1], [], []>} : vector<1x8xbf16>, vector<8x16xbf16>, vector<1x16xf32> -> vector<1x16xf32>
    %343 = arith.truncf %342 : vector<1x16xf32> to vector<1x16xbf16>
    %c2_179 = arith.constant 2 : index
    %c0_180 = arith.constant 0 : index
    %c0_181 = arith.constant 0 : index
    %344 = vector.load %arg11[%c2_179, %c0_180, %c0_181] : memref<4x16x32xbf16, #tpu.memory_space<vmem>>, vector<1x16x32xbf16>
    %345 = vector.shape_cast %344 : vector<1x16x32xbf16> to vector<16x32xbf16>
    %cst_182 = arith.constant dense<0.000000e+00> : vector<1x32xf32>
    %346 = tpu.matmul %343, %345, %cst_182 {dimension_numbers = #tpu.dot_dimension_numbers<[1], [0], [0], [1], [0, 0, 1, 1], [], []>} : vector<1x16xbf16>, vector<16x32xbf16>, vector<1x32xf32> -> vector<1x32xf32>
    %347 = arith.addf %318, %346 : vector<1x32xf32>
    %c3_183 = arith.constant 3 : index
    %c0_184 = arith.constant 0 : index
    %c0_185 = arith.constant 0 : index
    %348 = vector.load %arg5[%c3_183, %c0_184, %c0_185] : memref<4x32x16xbf16, #tpu.memory_space<vmem>>, vector<1x32x16xbf16>
    %349 = vector.shape_cast %348 : vector<1x32x16xbf16> to vector<32x16xbf16>
    %cst_186 = arith.constant dense<0.000000e+00> : vector<1x16xf32>
    %350 = tpu.matmul %315, %349, %cst_186 {dimension_numbers = #tpu.dot_dimension_numbers<[1], [0], [0], [1], [0, 0, 1, 1], [], []>} : vector<1x32xbf16>, vector<32x16xbf16>, vector<1x16xf32> -> vector<1x16xf32>
    %c3_187 = arith.constant 3 : index
    %c0_188 = arith.constant 0 : index
    %c0_189 = arith.constant 0 : index
    %351 = vector.load %arg6[%c3_187, %c0_188, %c0_189] : memref<4x1x16xf32, #tpu.memory_space<vmem>>, vector<1x1x16xf32>
    %352 = vector.shape_cast %351 : vector<1x1x16xf32> to vector<1x16xf32>
    %353 = arith.addf %350, %352 : vector<1x16xf32>
    %354 = arith.truncf %353 : vector<1x16xf32> to vector<1x16xbf16>
    %355 = vector.extract_strided_slice %277 {offsets = [0, 0], sizes = [8, 16], strides = [1, 1]} : vector<16x16xbf16> to vector<8x16xbf16>
    %356 = vector.extract_strided_slice %285 {offsets = [0, 0], sizes = [8, 16], strides = [1, 1]} : vector<16x16xbf16> to vector<8x16xbf16>
    %cst_190 = arith.constant dense<0.000000e+00> : vector<1x8xf32>
    %357 = tpu.matmul %354, %355, %cst_190 {dimension_numbers = #tpu.dot_dimension_numbers<[1], [1], [0], [0], [0, 0, 1, 0], [], []>} : vector<1x16xbf16>, vector<8x16xbf16>, vector<1x8xf32> -> vector<1x8xf32>
    %cst_191 = arith.constant -1.000000e+30 : f32
    %358 = vector.broadcast %cst_191 : f32 to vector<1x8xf32>
    %359 = arith.select %317, %357, %358 : vector<1x8xi1>, vector<1x8xf32>
    %cst_192 = arith.constant dense<0xFF800000> : vector<1xf32>
    %360 = vector.multi_reduction <maximumf>, %359, %cst_192 [1] : vector<1x8xf32> to vector<1xf32>
    %361 = vector.shape_cast %360 : vector<1xf32> to vector<1x1xf32>
    %362 = vector.broadcast %361 : vector<1x1xf32> to vector<1x8xf32>
    %363 = arith.subf %359, %362 : vector<1x8xf32>
    %364 = math.exp %363 : vector<1x8xf32>
    %cst_193 = arith.constant dense<0.000000e+00> : vector<1xf32>
    %365 = vector.multi_reduction <add>, %364, %cst_193 [1] : vector<1x8xf32> to vector<1xf32>
    %366 = vector.shape_cast %365 : vector<1xf32> to vector<1x1xf32>
    %367 = tpu.reciprocal %366 {approx = true} : vector<1x1xf32> -> vector<1x1xf32>
    %368 = vector.broadcast %367 : vector<1x1xf32> to vector<1x8xf32>
    %369 = arith.mulf %364, %368 : vector<1x8xf32>
    %370 = arith.truncf %369 : vector<1x8xf32> to vector<1x8xbf16>
    %cst_194 = arith.constant dense<0.000000e+00> : vector<1x16xf32>
    %371 = tpu.matmul %370, %356, %cst_194 {dimension_numbers = #tpu.dot_dimension_numbers<[1], [0], [0], [1], [0, 0, 1, 1], [], []>} : vector<1x8xbf16>, vector<8x16xbf16>, vector<1x16xf32> -> vector<1x16xf32>
    %372 = arith.truncf %371 : vector<1x16xf32> to vector<1x16xbf16>
    %c3_195 = arith.constant 3 : index
    %c0_196 = arith.constant 0 : index
    %c0_197 = arith.constant 0 : index
    %373 = vector.load %arg11[%c3_195, %c0_196, %c0_197] : memref<4x16x32xbf16, #tpu.memory_space<vmem>>, vector<1x16x32xbf16>
    %374 = vector.shape_cast %373 : vector<1x16x32xbf16> to vector<16x32xbf16>
    %cst_198 = arith.constant dense<0.000000e+00> : vector<1x32xf32>
    %375 = tpu.matmul %372, %374, %cst_198 {dimension_numbers = #tpu.dot_dimension_numbers<[1], [0], [0], [1], [0, 0, 1, 1], [], []>} : vector<1x16xbf16>, vector<16x32xbf16>, vector<1x32xf32> -> vector<1x32xf32>
    %376 = arith.addf %347, %375 : vector<1x32xf32>
    %377 = arith.addf %290, %376 : vector<1x32xf32>
    %c1_199 = arith.constant 1 : index
    %c0_200 = arith.constant 0 : index
    %c0_201 = arith.constant 0 : index
    %378 = vector.load %arg12[%c1_199, %c0_200, %c0_201] : memref<2x1x32xf32, #tpu.memory_space<vmem>>, vector<1x1x32xf32>
    %379 = vector.shape_cast %378 : vector<1x1x32xf32> to vector<1x32xf32>
    %380 = arith.addf %377, %379 : vector<1x32xf32>
    %c1_202 = arith.constant 1 : index
    %c0_203 = arith.constant 0 : index
    %c0_204 = arith.constant 0 : index
    %381 = vector.load %arg13[%c1_202, %c0_203, %c0_204] : memref<2x1x32xf32, #tpu.memory_space<vmem>>, vector<1x1x32xf32>
    %382 = vector.shape_cast %381 : vector<1x1x32xf32> to vector<1x32xf32>
    %c1_205 = arith.constant 1 : index
    %c0_206 = arith.constant 0 : index
    %c0_207 = arith.constant 0 : index
    %383 = vector.load %arg14[%c1_205, %c0_206, %c0_207] : memref<2x1x32xf32, #tpu.memory_space<vmem>>, vector<1x1x32xf32>
    %384 = vector.shape_cast %383 : vector<1x1x32xf32> to vector<1x32xf32>
    %cst_208 = arith.constant dense<0.000000e+00> : vector<1xf32>
    %385 = vector.multi_reduction <add>, %380, %cst_208 [1] : vector<1x32xf32> to vector<1xf32>
    %386 = vector.shape_cast %385 : vector<1xf32> to vector<1x1xf32>
    %cst_209 = arith.constant 3.200000e+01 : f32
    %387 = vector.broadcast %cst_209 : f32 to vector<1x1xf32>
    %388 = arith.divf %386, %387 : vector<1x1xf32>
    %389 = vector.broadcast %388 : vector<1x1xf32> to vector<1x32xf32>
    %390 = arith.subf %380, %389 : vector<1x32xf32>
    %391 = arith.mulf %390, %390 : vector<1x32xf32>
    %cst_210 = arith.constant dense<0.000000e+00> : vector<1xf32>
    %392 = vector.multi_reduction <add>, %391, %cst_210 [1] : vector<1x32xf32> to vector<1xf32>
    %393 = vector.shape_cast %392 : vector<1xf32> to vector<1x1xf32>
    %cst_211 = arith.constant 3.200000e+01 : f32
    %394 = vector.broadcast %cst_211 : f32 to vector<1x1xf32>
    %395 = arith.divf %393, %394 : vector<1x1xf32>
    %396 = vector.broadcast %388 : vector<1x1xf32> to vector<1x32xf32>
    %397 = arith.subf %380, %396 : vector<1x32xf32>
    %cst_212 = arith.constant 9.99999974E-6 : f32
    %398 = vector.broadcast %cst_212 : f32 to vector<1x1xf32>
    %399 = arith.addf %395, %398 : vector<1x1xf32>
    %400 = math.rsqrt %399 : vector<1x1xf32>
    %401 = vector.broadcast %400 : vector<1x1xf32> to vector<1x32xf32>
    %402 = arith.mulf %397, %401 : vector<1x32xf32>
    %403 = arith.mulf %402, %382 : vector<1x32xf32>
    %404 = arith.addf %403, %384 : vector<1x32xf32>
    %405 = arith.truncf %404 : vector<1x32xf32> to vector<1x32xbf16>
    %c1_213 = arith.constant 1 : index
    %c0_214 = arith.constant 0 : index
    %c0_215 = arith.constant 0 : index
    %406 = vector.load %arg15[%c1_213, %c0_214, %c0_215] : memref<2x32x128xbf16, #tpu.memory_space<vmem>>, vector<1x32x128xbf16>
    %407 = vector.shape_cast %406 : vector<1x32x128xbf16> to vector<32x128xbf16>
    %cst_216 = arith.constant dense<0.000000e+00> : vector<1x128xf32>
    %408 = tpu.matmul %405, %407, %cst_216 {dimension_numbers = #tpu.dot_dimension_numbers<[1], [0], [0], [1], [0, 0, 1, 1], [], []>} : vector<1x32xbf16>, vector<32x128xbf16>, vector<1x128xf32> -> vector<1x128xf32>
    %c1_217 = arith.constant 1 : index
    %c0_218 = arith.constant 0 : index
    %c0_219 = arith.constant 0 : index
    %409 = vector.load %arg16[%c1_217, %c0_218, %c0_219] : memref<2x1x128xf32, #tpu.memory_space<vmem>>, vector<1x1x128xf32>
    %410 = vector.shape_cast %409 : vector<1x1x128xf32> to vector<1x128xf32>
    %411 = arith.addf %408, %410 : vector<1x128xf32>
    %cst_220 = arith.constant 1.702000e+00 : f32
    %412 = vector.broadcast %cst_220 : f32 to vector<1x128xf32>
    %413 = arith.mulf %412, %411 : vector<1x128xf32>
    %414 = arith.negf %413 : vector<1x128xf32>
    %415 = math.exp %414 : vector<1x128xf32>
    %cst_221 = arith.constant 1.000000e+00 : f32
    %416 = vector.broadcast %cst_221 : f32 to vector<1x128xf32>
    %417 = arith.addf %416, %415 : vector<1x128xf32>
    %418 = arith.divf %416, %417 : vector<1x128xf32>
    %419 = arith.mulf %411, %418 : vector<1x128xf32>
    %420 = arith.truncf %419 : vector<1x128xf32> to vector<1x128xbf16>
    %c1_222 = arith.constant 1 : index
    %c0_223 = arith.constant 0 : index
    %c0_224 = arith.constant 0 : index
    %421 = vector.load %arg17[%c1_222, %c0_223, %c0_224] : memref<2x128x32xbf16, #tpu.memory_space<vmem>>, vector<1x128x32xbf16>
    %422 = vector.shape_cast %421 : vector<1x128x32xbf16> to vector<128x32xbf16>
    %cst_225 = arith.constant dense<0.000000e+00> : vector<1x32xf32>
    %423 = tpu.matmul %420, %422, %cst_225 {dimension_numbers = #tpu.dot_dimension_numbers<[1], [0], [0], [1], [0, 0, 1, 1], [], []>} : vector<1x128xbf16>, vector<128x32xbf16>, vector<1x32xf32> -> vector<1x32xf32>
    %c1_226 = arith.constant 1 : index
    %c0_227 = arith.constant 0 : index
    %c0_228 = arith.constant 0 : index
    %424 = vector.load %arg18[%c1_226, %c0_227, %c0_228] : memref<2x1x32xf32, #tpu.memory_space<vmem>>, vector<1x1x32xf32>
    %425 = vector.shape_cast %424 : vector<1x1x32xf32> to vector<1x32xf32>
    %426 = arith.addf %423, %425 : vector<1x32xf32>
    %427 = arith.addf %380, %426 : vector<1x32xf32>
    %c0_229 = arith.constant 0 : index
    %c0_230 = arith.constant 0 : index
    %428 = vector.load %arg19[%c0_229, %c0_230] : memref<1x32xf32, #tpu.memory_space<vmem>>, vector<1x32xf32>
    %c0_231 = arith.constant 0 : index
    %c0_232 = arith.constant 0 : index
    %429 = vector.load %arg20[%c0_231, %c0_232] : memref<1x32xf32, #tpu.memory_space<vmem>>, vector<1x32xf32>
    %cst_233 = arith.constant dense<0.000000e+00> : vector<1xf32>
    %430 = vector.multi_reduction <add>, %427, %cst_233 [1] : vector<1x32xf32> to vector<1xf32>
    %431 = vector.shape_cast %430 : vector<1xf32> to vector<1x1xf32>
    %cst_234 = arith.constant 3.200000e+01 : f32
    %432 = vector.broadcast %cst_234 : f32 to vector<1x1xf32>
    %433 = arith.divf %431, %432 : vector<1x1xf32>
    %434 = vector.broadcast %433 : vector<1x1xf32> to vector<1x32xf32>
    %435 = arith.subf %427, %434 : vector<1x32xf32>
    %436 = arith.mulf %435, %435 : vector<1x32xf32>
    %cst_235 = arith.constant dense<0.000000e+00> : vector<1xf32>
    %437 = vector.multi_reduction <add>, %436, %cst_235 [1] : vector<1x32xf32> to vector<1xf32>
    %438 = vector.shape_cast %437 : vector<1xf32> to vector<1x1xf32>
    %cst_236 = arith.constant 3.200000e+01 : f32
    %439 = vector.broadcast %cst_236 : f32 to vector<1x1xf32>
    %440 = arith.divf %438, %439 : vector<1x1xf32>
    %441 = vector.broadcast %433 : vector<1x1xf32> to vector<1x32xf32>
    %442 = arith.subf %427, %441 : vector<1x32xf32>
    %cst_237 = arith.constant 9.99999974E-6 : f32
    %443 = vector.broadcast %cst_237 : f32 to vector<1x1xf32>
    %444 = arith.addf %440, %443 : vector<1x1xf32>
    %445 = math.rsqrt %444 : vector<1x1xf32>
    %446 = vector.broadcast %445 : vector<1x1xf32> to vector<1x32xf32>
    %447 = arith.mulf %442, %446 : vector<1x32xf32>
    %448 = arith.mulf %447, %428 : vector<1x32xf32>
    %449 = arith.addf %448, %429 : vector<1x32xf32>
    %450 = arith.truncf %449 : vector<1x32xf32> to vector<1x32xbf16>
    %c0_238 = arith.constant 0 : index
    %c0_239 = arith.constant 0 : index
    %451 = vector.load %arg21[%c0_238, %c0_239] : memref<32x16xbf16, #tpu.memory_space<vmem>>, vector<32x16xbf16>
    %cst_240 = arith.constant dense<0.000000e+00> : vector<1x16xf32>
    %452 = tpu.matmul %450, %451, %cst_240 {dimension_numbers = #tpu.dot_dimension_numbers<[1], [0], [0], [1], [0, 0, 1, 1], [], []>} : vector<1x32xbf16>, vector<32x16xbf16>, vector<1x16xf32> -> vector<1x16xf32>
    %c1_241 = arith.constant 1 : index
    %453 = memref.load %arg1[%c1_241] : memref<2xi32, #tpu.memory_space<smem>>
    %c8_i32 = arith.constant 8 : i32
    %454 = arith.addi %c8_i32, %453 : i32
    %455 = arith.index_cast %454 : i32 to index
    %c0_242 = arith.constant 0 : index
    %456 = vector.load %arg23[%455, %c0_242] : memref<16x32xf32, #tpu.memory_space<vmem>>, vector<1x32xf32>
    %c1_243 = arith.constant 1 : index
    %c0_244 = arith.constant 0 : index
    %c0_245 = arith.constant 0 : index
    %457 = vector.load %arg3[%c1_243, %c0_244, %c0_245] : memref<2x1x32xf32, #tpu.memory_space<vmem>>, vector<1x1x32xf32>
    %458 = vector.shape_cast %457 : vector<1x1x32xf32> to vector<1x32xf32>
    %c1_246 = arith.constant 1 : index
    %c0_247 = arith.constant 0 : index
    %c0_248 = arith.constant 0 : index
    %459 = vector.load %arg4[%c1_246, %c0_247, %c0_248] : memref<2x1x32xf32, #tpu.memory_space<vmem>>, vector<1x1x32xf32>
    %460 = vector.shape_cast %459 : vector<1x1x32xf32> to vector<1x32xf32>
    %cst_249 = arith.constant dense<0.000000e+00> : vector<1xf32>
    %461 = vector.multi_reduction <add>, %456, %cst_249 [1] : vector<1x32xf32> to vector<1xf32>
    %462 = vector.shape_cast %461 : vector<1xf32> to vector<1x1xf32>
    %cst_250 = arith.constant 3.200000e+01 : f32
    %463 = vector.broadcast %cst_250 : f32 to vector<1x1xf32>
    %464 = arith.divf %462, %463 : vector<1x1xf32>
    %465 = vector.broadcast %464 : vector<1x1xf32> to vector<1x32xf32>
    %466 = arith.subf %456, %465 : vector<1x32xf32>
    %467 = arith.mulf %466, %466 : vector<1x32xf32>
    %cst_251 = arith.constant dense<0.000000e+00> : vector<1xf32>
    %468 = vector.multi_reduction <add>, %467, %cst_251 [1] : vector<1x32xf32> to vector<1xf32>
    %469 = vector.shape_cast %468 : vector<1xf32> to vector<1x1xf32>
    %cst_252 = arith.constant 3.200000e+01 : f32
    %470 = vector.broadcast %cst_252 : f32 to vector<1x1xf32>
    %471 = arith.divf %469, %470 : vector<1x1xf32>
    %472 = vector.broadcast %464 : vector<1x1xf32> to vector<1x32xf32>
    %473 = arith.subf %456, %472 : vector<1x32xf32>
    %cst_253 = arith.constant 9.99999974E-6 : f32
    %474 = vector.broadcast %cst_253 : f32 to vector<1x1xf32>
    %475 = arith.addf %471, %474 : vector<1x1xf32>
    %476 = math.rsqrt %475 : vector<1x1xf32>
    %477 = vector.broadcast %476 : vector<1x1xf32> to vector<1x32xf32>
    %478 = arith.mulf %473, %477 : vector<1x32xf32>
    %479 = arith.mulf %478, %458 : vector<1x32xf32>
    %480 = arith.addf %479, %460 : vector<1x32xf32>
    %481 = arith.truncf %480 : vector<1x32xf32> to vector<1x32xbf16>
    %482 = vector.broadcast %453 : i32 to vector<1x8xi32>
    %483 = arith.cmpi sle, %286, %482 : vector<1x8xi32>
    %cst_254 = arith.constant 0.000000e+00 : f32
    %484 = vector.broadcast %cst_254 : f32 to vector<1x32xf32>
    %c2_255 = arith.constant 2 : index
    %c0_256 = arith.constant 0 : index
    %c0_257 = arith.constant 0 : index
    %485 = vector.load %arg5[%c2_255, %c0_256, %c0_257] : memref<4x32x16xbf16, #tpu.memory_space<vmem>>, vector<1x32x16xbf16>
    %486 = vector.shape_cast %485 : vector<1x32x16xbf16> to vector<32x16xbf16>
    %cst_258 = arith.constant dense<0.000000e+00> : vector<1x16xf32>
    %487 = tpu.matmul %481, %486, %cst_258 {dimension_numbers = #tpu.dot_dimension_numbers<[1], [0], [0], [1], [0, 0, 1, 1], [], []>} : vector<1x32xbf16>, vector<32x16xbf16>, vector<1x16xf32> -> vector<1x16xf32>
    %c2_259 = arith.constant 2 : index
    %c0_260 = arith.constant 0 : index
    %c0_261 = arith.constant 0 : index
    %488 = vector.load %arg6[%c2_259, %c0_260, %c0_261] : memref<4x1x16xf32, #tpu.memory_space<vmem>>, vector<1x1x16xf32>
    %489 = vector.shape_cast %488 : vector<1x1x16xf32> to vector<1x16xf32>
    %490 = arith.addf %487, %489 : vector<1x16xf32>
    %491 = arith.truncf %490 : vector<1x16xf32> to vector<1x16xbf16>
    %492 = vector.extract_strided_slice %261 {offsets = [8, 0], sizes = [8, 16], strides = [1, 1]} : vector<16x16xbf16> to vector<8x16xbf16>
    %493 = vector.extract_strided_slice %269 {offsets = [8, 0], sizes = [8, 16], strides = [1, 1]} : vector<16x16xbf16> to vector<8x16xbf16>
    %cst_262 = arith.constant dense<0.000000e+00> : vector<1x8xf32>
    %494 = tpu.matmul %491, %492, %cst_262 {dimension_numbers = #tpu.dot_dimension_numbers<[1], [1], [0], [0], [0, 0, 1, 0], [], []>} : vector<1x16xbf16>, vector<8x16xbf16>, vector<1x8xf32> -> vector<1x8xf32>
    %cst_263 = arith.constant -1.000000e+30 : f32
    %495 = vector.broadcast %cst_263 : f32 to vector<1x8xf32>
    %496 = arith.select %483, %494, %495 : vector<1x8xi1>, vector<1x8xf32>
    %cst_264 = arith.constant dense<0xFF800000> : vector<1xf32>
    %497 = vector.multi_reduction <maximumf>, %496, %cst_264 [1] : vector<1x8xf32> to vector<1xf32>
    %498 = vector.shape_cast %497 : vector<1xf32> to vector<1x1xf32>
    %499 = vector.broadcast %498 : vector<1x1xf32> to vector<1x8xf32>
    %500 = arith.subf %496, %499 : vector<1x8xf32>
    %501 = math.exp %500 : vector<1x8xf32>
    %cst_265 = arith.constant dense<0.000000e+00> : vector<1xf32>
    %502 = vector.multi_reduction <add>, %501, %cst_265 [1] : vector<1x8xf32> to vector<1xf32>
    %503 = vector.shape_cast %502 : vector<1xf32> to vector<1x1xf32>
    %504 = tpu.reciprocal %503 {approx = true} : vector<1x1xf32> -> vector<1x1xf32>
    %505 = vector.broadcast %504 : vector<1x1xf32> to vector<1x8xf32>
    %506 = arith.mulf %501, %505 : vector<1x8xf32>
    %507 = arith.truncf %506 : vector<1x8xf32> to vector<1x8xbf16>
    %cst_266 = arith.constant dense<0.000000e+00> : vector<1x16xf32>
    %508 = tpu.matmul %507, %493, %cst_266 {dimension_numbers = #tpu.dot_dimension_numbers<[1], [0], [0], [1], [0, 0, 1, 1], [], []>} : vector<1x8xbf16>, vector<8x16xbf16>, vector<1x16xf32> -> vector<1x16xf32>
    %509 = arith.truncf %508 : vector<1x16xf32> to vector<1x16xbf16>
    %c2_267 = arith.constant 2 : index
    %c0_268 = arith.constant 0 : index
    %c0_269 = arith.constant 0 : index
    %510 = vector.load %arg11[%c2_267, %c0_268, %c0_269] : memref<4x16x32xbf16, #tpu.memory_space<vmem>>, vector<1x16x32xbf16>
    %511 = vector.shape_cast %510 : vector<1x16x32xbf16> to vector<16x32xbf16>
    %cst_270 = arith.constant dense<0.000000e+00> : vector<1x32xf32>
    %512 = tpu.matmul %509, %511, %cst_270 {dimension_numbers = #tpu.dot_dimension_numbers<[1], [0], [0], [1], [0, 0, 1, 1], [], []>} : vector<1x16xbf16>, vector<16x32xbf16>, vector<1x32xf32> -> vector<1x32xf32>
    %513 = arith.addf %484, %512 : vector<1x32xf32>
    %c3_271 = arith.constant 3 : index
    %c0_272 = arith.constant 0 : index
    %c0_273 = arith.constant 0 : index
    %514 = vector.load %arg5[%c3_271, %c0_272, %c0_273] : memref<4x32x16xbf16, #tpu.memory_space<vmem>>, vector<1x32x16xbf16>
    %515 = vector.shape_cast %514 : vector<1x32x16xbf16> to vector<32x16xbf16>
    %cst_274 = arith.constant dense<0.000000e+00> : vector<1x16xf32>
    %516 = tpu.matmul %481, %515, %cst_274 {dimension_numbers = #tpu.dot_dimension_numbers<[1], [0], [0], [1], [0, 0, 1, 1], [], []>} : vector<1x32xbf16>, vector<32x16xbf16>, vector<1x16xf32> -> vector<1x16xf32>
    %c3_275 = arith.constant 3 : index
    %c0_276 = arith.constant 0 : index
    %c0_277 = arith.constant 0 : index
    %517 = vector.load %arg6[%c3_275, %c0_276, %c0_277] : memref<4x1x16xf32, #tpu.memory_space<vmem>>, vector<1x1x16xf32>
    %518 = vector.shape_cast %517 : vector<1x1x16xf32> to vector<1x16xf32>
    %519 = arith.addf %516, %518 : vector<1x16xf32>
    %520 = arith.truncf %519 : vector<1x16xf32> to vector<1x16xbf16>
    %521 = vector.extract_strided_slice %277 {offsets = [8, 0], sizes = [8, 16], strides = [1, 1]} : vector<16x16xbf16> to vector<8x16xbf16>
    %522 = vector.extract_strided_slice %285 {offsets = [8, 0], sizes = [8, 16], strides = [1, 1]} : vector<16x16xbf16> to vector<8x16xbf16>
    %cst_278 = arith.constant dense<0.000000e+00> : vector<1x8xf32>
    %523 = tpu.matmul %520, %521, %cst_278 {dimension_numbers = #tpu.dot_dimension_numbers<[1], [1], [0], [0], [0, 0, 1, 0], [], []>} : vector<1x16xbf16>, vector<8x16xbf16>, vector<1x8xf32> -> vector<1x8xf32>
    %cst_279 = arith.constant -1.000000e+30 : f32
    %524 = vector.broadcast %cst_279 : f32 to vector<1x8xf32>
    %525 = arith.select %483, %523, %524 : vector<1x8xi1>, vector<1x8xf32>
    %cst_280 = arith.constant dense<0xFF800000> : vector<1xf32>
    %526 = vector.multi_reduction <maximumf>, %525, %cst_280 [1] : vector<1x8xf32> to vector<1xf32>
    %527 = vector.shape_cast %526 : vector<1xf32> to vector<1x1xf32>
    %528 = vector.broadcast %527 : vector<1x1xf32> to vector<1x8xf32>
    %529 = arith.subf %525, %528 : vector<1x8xf32>
    %530 = math.exp %529 : vector<1x8xf32>
    %cst_281 = arith.constant dense<0.000000e+00> : vector<1xf32>
    %531 = vector.multi_reduction <add>, %530, %cst_281 [1] : vector<1x8xf32> to vector<1xf32>
    %532 = vector.shape_cast %531 : vector<1xf32> to vector<1x1xf32>
    %533 = tpu.reciprocal %532 {approx = true} : vector<1x1xf32> -> vector<1x1xf32>
    %534 = vector.broadcast %533 : vector<1x1xf32> to vector<1x8xf32>
    %535 = arith.mulf %530, %534 : vector<1x8xf32>
    %536 = arith.truncf %535 : vector<1x8xf32> to vector<1x8xbf16>
    %cst_282 = arith.constant dense<0.000000e+00> : vector<1x16xf32>
    %537 = tpu.matmul %536, %522, %cst_282 {dimension_numbers = #tpu.dot_dimension_numbers<[1], [0], [0], [1], [0, 0, 1, 1], [], []>} : vector<1x8xbf16>, vector<8x16xbf16>, vector<1x16xf32> -> vector<1x16xf32>
    %538 = arith.truncf %537 : vector<1x16xf32> to vector<1x16xbf16>
    %c3_283 = arith.constant 3 : index
    %c0_284 = arith.constant 0 : index
    %c0_285 = arith.constant 0 : index
    %539 = vector.load %arg11[%c3_283, %c0_284, %c0_285] : memref<4x16x32xbf16, #tpu.memory_space<vmem>>, vector<1x16x32xbf16>
    %540 = vector.shape_cast %539 : vector<1x16x32xbf16> to vector<16x32xbf16>
    %cst_286 = arith.constant dense<0.000000e+00> : vector<1x32xf32>
    %541 = tpu.matmul %538, %540, %cst_286 {dimension_numbers = #tpu.dot_dimension_numbers<[1], [0], [0], [1], [0, 0, 1, 1], [], []>} : vector<1x16xbf16>, vector<16x32xbf16>, vector<1x32xf32> -> vector<1x32xf32>
    %542 = arith.addf %513, %541 : vector<1x32xf32>
    %543 = arith.addf %456, %542 : vector<1x32xf32>
    %c1_287 = arith.constant 1 : index
    %c0_288 = arith.constant 0 : index
    %c0_289 = arith.constant 0 : index
    %544 = vector.load %arg12[%c1_287, %c0_288, %c0_289] : memref<2x1x32xf32, #tpu.memory_space<vmem>>, vector<1x1x32xf32>
    %545 = vector.shape_cast %544 : vector<1x1x32xf32> to vector<1x32xf32>
    %546 = arith.addf %543, %545 : vector<1x32xf32>
    %c1_290 = arith.constant 1 : index
    %c0_291 = arith.constant 0 : index
    %c0_292 = arith.constant 0 : index
    %547 = vector.load %arg13[%c1_290, %c0_291, %c0_292] : memref<2x1x32xf32, #tpu.memory_space<vmem>>, vector<1x1x32xf32>
    %548 = vector.shape_cast %547 : vector<1x1x32xf32> to vector<1x32xf32>
    %c1_293 = arith.constant 1 : index
    %c0_294 = arith.constant 0 : index
    %c0_295 = arith.constant 0 : index
    %549 = vector.load %arg14[%c1_293, %c0_294, %c0_295] : memref<2x1x32xf32, #tpu.memory_space<vmem>>, vector<1x1x32xf32>
    %550 = vector.shape_cast %549 : vector<1x1x32xf32> to vector<1x32xf32>
    %cst_296 = arith.constant dense<0.000000e+00> : vector<1xf32>
    %551 = vector.multi_reduction <add>, %546, %cst_296 [1] : vector<1x32xf32> to vector<1xf32>
    %552 = vector.shape_cast %551 : vector<1xf32> to vector<1x1xf32>
    %cst_297 = arith.constant 3.200000e+01 : f32
    %553 = vector.broadcast %cst_297 : f32 to vector<1x1xf32>
    %554 = arith.divf %552, %553 : vector<1x1xf32>
    %555 = vector.broadcast %554 : vector<1x1xf32> to vector<1x32xf32>
    %556 = arith.subf %546, %555 : vector<1x32xf32>
    %557 = arith.mulf %556, %556 : vector<1x32xf32>
    %cst_298 = arith.constant dense<0.000000e+00> : vector<1xf32>
    %558 = vector.multi_reduction <add>, %557, %cst_298 [1] : vector<1x32xf32> to vector<1xf32>
    %559 = vector.shape_cast %558 : vector<1xf32> to vector<1x1xf32>
    %cst_299 = arith.constant 3.200000e+01 : f32
    %560 = vector.broadcast %cst_299 : f32 to vector<1x1xf32>
    %561 = arith.divf %559, %560 : vector<1x1xf32>
    %562 = vector.broadcast %554 : vector<1x1xf32> to vector<1x32xf32>
    %563 = arith.subf %546, %562 : vector<1x32xf32>
    %cst_300 = arith.constant 9.99999974E-6 : f32
    %564 = vector.broadcast %cst_300 : f32 to vector<1x1xf32>
    %565 = arith.addf %561, %564 : vector<1x1xf32>
    %566 = math.rsqrt %565 : vector<1x1xf32>
    %567 = vector.broadcast %566 : vector<1x1xf32> to vector<1x32xf32>
    %568 = arith.mulf %563, %567 : vector<1x32xf32>
    %569 = arith.mulf %568, %548 : vector<1x32xf32>
    %570 = arith.addf %569, %550 : vector<1x32xf32>
    %571 = arith.truncf %570 : vector<1x32xf32> to vector<1x32xbf16>
    %c1_301 = arith.constant 1 : index
    %c0_302 = arith.constant 0 : index
    %c0_303 = arith.constant 0 : index
    %572 = vector.load %arg15[%c1_301, %c0_302, %c0_303] : memref<2x32x128xbf16, #tpu.memory_space<vmem>>, vector<1x32x128xbf16>
    %573 = vector.shape_cast %572 : vector<1x32x128xbf16> to vector<32x128xbf16>
    %cst_304 = arith.constant dense<0.000000e+00> : vector<1x128xf32>
    %574 = tpu.matmul %571, %573, %cst_304 {dimension_numbers = #tpu.dot_dimension_numbers<[1], [0], [0], [1], [0, 0, 1, 1], [], []>} : vector<1x32xbf16>, vector<32x128xbf16>, vector<1x128xf32> -> vector<1x128xf32>
    %c1_305 = arith.constant 1 : index
    %c0_306 = arith.constant 0 : index
    %c0_307 = arith.constant 0 : index
    %575 = vector.load %arg16[%c1_305, %c0_306, %c0_307] : memref<2x1x128xf32, #tpu.memory_space<vmem>>, vector<1x1x128xf32>
    %576 = vector.shape_cast %575 : vector<1x1x128xf32> to vector<1x128xf32>
    %577 = arith.addf %574, %576 : vector<1x128xf32>
    %cst_308 = arith.constant 1.702000e+00 : f32
    %578 = vector.broadcast %cst_308 : f32 to vector<1x128xf32>
    %579 = arith.mulf %578, %577 : vector<1x128xf32>
    %580 = arith.negf %579 : vector<1x128xf32>
    %581 = math.exp %580 : vector<1x128xf32>
    %cst_309 = arith.constant 1.000000e+00 : f32
    %582 = vector.broadcast %cst_309 : f32 to vector<1x128xf32>
    %583 = arith.addf %582, %581 : vector<1x128xf32>
    %584 = arith.divf %582, %583 : vector<1x128xf32>
    %585 = arith.mulf %577, %584 : vector<1x128xf32>
    %586 = arith.truncf %585 : vector<1x128xf32> to vector<1x128xbf16>
    %c1_310 = arith.constant 1 : index
    %c0_311 = arith.constant 0 : index
    %c0_312 = arith.constant 0 : index
    %587 = vector.load %arg17[%c1_310, %c0_311, %c0_312] : memref<2x128x32xbf16, #tpu.memory_space<vmem>>, vector<1x128x32xbf16>
    %588 = vector.shape_cast %587 : vector<1x128x32xbf16> to vector<128x32xbf16>
    %cst_313 = arith.constant dense<0.000000e+00> : vector<1x32xf32>
    %589 = tpu.matmul %586, %588, %cst_313 {dimension_numbers = #tpu.dot_dimension_numbers<[1], [0], [0], [1], [0, 0, 1, 1], [], []>} : vector<1x128xbf16>, vector<128x32xbf16>, vector<1x32xf32> -> vector<1x32xf32>
    %c1_314 = arith.constant 1 : index
    %c0_315 = arith.constant 0 : index
    %c0_316 = arith.constant 0 : index
    %590 = vector.load %arg18[%c1_314, %c0_315, %c0_316] : memref<2x1x32xf32, #tpu.memory_space<vmem>>, vector<1x1x32xf32>
    %591 = vector.shape_cast %590 : vector<1x1x32xf32> to vector<1x32xf32>
    %592 = arith.addf %589, %591 : vector<1x32xf32>
    %593 = arith.addf %546, %592 : vector<1x32xf32>
    %c0_317 = arith.constant 0 : index
    %c0_318 = arith.constant 0 : index
    %594 = vector.load %arg19[%c0_317, %c0_318] : memref<1x32xf32, #tpu.memory_space<vmem>>, vector<1x32xf32>
    %c0_319 = arith.constant 0 : index
    %c0_320 = arith.constant 0 : index
    %595 = vector.load %arg20[%c0_319, %c0_320] : memref<1x32xf32, #tpu.memory_space<vmem>>, vector<1x32xf32>
    %cst_321 = arith.constant dense<0.000000e+00> : vector<1xf32>
    %596 = vector.multi_reduction <add>, %593, %cst_321 [1] : vector<1x32xf32> to vector<1xf32>
    %597 = vector.shape_cast %596 : vector<1xf32> to vector<1x1xf32>
    %cst_322 = arith.constant 3.200000e+01 : f32
    %598 = vector.broadcast %cst_322 : f32 to vector<1x1xf32>
    %599 = arith.divf %597, %598 : vector<1x1xf32>
    %600 = vector.broadcast %599 : vector<1x1xf32> to vector<1x32xf32>
    %601 = arith.subf %593, %600 : vector<1x32xf32>
    %602 = arith.mulf %601, %601 : vector<1x32xf32>
    %cst_323 = arith.constant dense<0.000000e+00> : vector<1xf32>
    %603 = vector.multi_reduction <add>, %602, %cst_323 [1] : vector<1x32xf32> to vector<1xf32>
    %604 = vector.shape_cast %603 : vector<1xf32> to vector<1x1xf32>
    %cst_324 = arith.constant 3.200000e+01 : f32
    %605 = vector.broadcast %cst_324 : f32 to vector<1x1xf32>
    %606 = arith.divf %604, %605 : vector<1x1xf32>
    %607 = vector.broadcast %599 : vector<1x1xf32> to vector<1x32xf32>
    %608 = arith.subf %593, %607 : vector<1x32xf32>
    %cst_325 = arith.constant 9.99999974E-6 : f32
    %609 = vector.broadcast %cst_325 : f32 to vector<1x1xf32>
    %610 = arith.addf %606, %609 : vector<1x1xf32>
    %611 = math.rsqrt %610 : vector<1x1xf32>
    %612 = vector.broadcast %611 : vector<1x1xf32> to vector<1x32xf32>
    %613 = arith.mulf %608, %612 : vector<1x32xf32>
    %614 = arith.mulf %613, %594 : vector<1x32xf32>
    %615 = arith.addf %614, %595 : vector<1x32xf32>
    %616 = arith.truncf %615 : vector<1x32xf32> to vector<1x32xbf16>
    %c0_326 = arith.constant 0 : index
    %c0_327 = arith.constant 0 : index
    %617 = vector.load %arg21[%c0_326, %c0_327] : memref<32x16xbf16, #tpu.memory_space<vmem>>, vector<32x16xbf16>
    %cst_328 = arith.constant dense<0.000000e+00> : vector<1x16xf32>
    %618 = tpu.matmul %616, %617, %cst_328 {dimension_numbers = #tpu.dot_dimension_numbers<[1], [0], [0], [1], [0, 0, 1, 1], [], []>} : vector<1x32xbf16>, vector<32x16xbf16>, vector<1x16xf32> -> vector<1x16xf32>
    %619 = tpu.concatenate %452, %618 in 0 : vector<1x16xf32>, vector<1x16xf32> -> vector<2x16xf32>
    %c0_329 = arith.constant 0 : index
    %c0_330 = arith.constant 0 : index
    %620 = vector.load %arg22[%c0_329, %c0_330] : memref<2x16xf32, #tpu.memory_space<vmem>>, vector<2x16xf32>
    tpu.vector_store %arg22[%c0_329, %c0_330], %619 {strides = array<i32>} : memref<2x16xf32, #tpu.memory_space<vmem>>, vector<2x16xf32>,
    return
  }
  func.func @transform_0(%arg0: i32, %arg1: memref<2xi32, #tpu.memory_space<smem>>) -> (i32, i32) {
    %c0_i32 = arith.constant 0 : i32
    %c0_i32_0 = arith.constant 0 : i32
    %c0_i32_1 = arith.constant 0 : i32
    return %c0_i32, %c0_i32_0 : i32, i32
  }
  func.func @transform_1(%arg0: i32, %arg1: memref<2xi32, #tpu.memory_space<smem>>) -> (i32, i32, i32) {
    %c0_i32 = arith.constant 0 : i32
    %c0_i32_0 = arith.constant 0 : i32
    %c0_i32_1 = arith.constant 0 : i32
    %c0_i32_2 = arith.constant 0 : i32
    return %c0_i32, %c0_i32_0, %c0_i32_1 : i32, i32, i32
  }
  func.func @transform_2(%arg0: i32, %arg1: memref<2xi32, #tpu.memory_space<smem>>) -> (i32, i32, i32) {
    %c0_i32 = arith.constant 0 : i32
    %c0_i32_0 = arith.constant 0 : i32
    %c0_i32_1 = arith.constant 0 : i32
    %c0_i32_2 = arith.constant 0 : i32
    return %c0_i32, %c0_i32_0, %c0_i32_1 : i32, i32, i32
  }
  func.func @transform_3(%arg0: i32, %arg1: memref<2xi32, #tpu.memory_space<smem>>) -> (i32, i32, i32) {
    %c0_i32 = arith.constant 0 : i32
    %c0_i32_0 = arith.constant 0 : i32
    %c0_i32_1 = arith.constant 0 : i32
    %c0_i32_2 = arith.constant 0 : i32
    return %c0_i32, %c0_i32_0, %c0_i32_1 : i32, i32, i32
  }
  func.func @transform_4(%arg0: i32, %arg1: memref<2xi32, #tpu.memory_space<smem>>) -> (i32, i32, i32) {
    %c0_i32 = arith.constant 0 : i32
    %c0_i32_0 = arith.constant 0 : i32
    %c0_i32_1 = arith.constant 0 : i32
    %c0_i32_2 = arith.constant 0 : i32
    return %c0_i32, %c0_i32_0, %c0_i32_1 : i32, i32, i32
  }
  func.func @transform_5(%arg0: i32, %arg1: memref<2xi32, #tpu.memory_space<smem>>) -> (i32, i32, i32) {
    %c0_i32 = arith.constant 0 : i32
    %c0_i32_0 = arith.constant 0 : i32
    %c0_i32_1 = arith.constant 0 : i32
    %c0_i32_2 = arith.constant 0 : i32
    return %c0_i32, %c0_i32_0, %c0_i32_1 : i32, i32, i32
  }
  func.func @transform_6(%arg0: i32, %arg1: memref<2xi32, #tpu.memory_space<smem>>) -> (i32, i32, i32) {
    %c0_i32 = arith.constant 0 : i32
    %c0_i32_0 = arith.constant 0 : i32
    %c0_i32_1 = arith.constant 0 : i32
    %c0_i32_2 = arith.constant 0 : i32
    return %c0_i32, %c0_i32_0, %c0_i32_1 : i32, i32, i32
  }
  func.func @transform_7(%arg0: i32, %arg1: memref<2xi32, #tpu.memory_space<smem>>) -> (i32, i32, i32) {
    %c0_i32 = arith.constant 0 : i32
    %c0_i32_0 = arith.constant 0 : i32
    %c0_i32_1 = arith.constant 0 : i32
    %c0_i32_2 = arith.constant 0 : i32
    return %c0_i32, %c0_i32_0, %c0_i32_1 : i32, i32, i32
  }
  func.func @transform_8(%arg0: i32, %arg1: memref<2xi32, #tpu.memory_space<smem>>) -> (i32, i32, i32) {
    %c0_i32 = arith.constant 0 : i32
    %c0_i32_0 = arith.constant 0 : i32
    %c0_i32_1 = arith.constant 0 : i32
    %c0_i32_2 = arith.constant 0 : i32
    return %c0_i32, %c0_i32_0, %c0_i32_1 : i32, i32, i32
  }
  func.func @transform_9(%arg0: i32, %arg1: memref<2xi32, #tpu.memory_space<smem>>) -> (i32, i32, i32) {
    %c0_i32 = arith.constant 0 : i32
    %c0_i32_0 = arith.constant 0 : i32
    %c0_i32_1 = arith.constant 0 : i32
    %c0_i32_2 = arith.constant 0 : i32
    return %c0_i32, %c0_i32_0, %c0_i32_1 : i32, i32, i32
  }
  func.func @transform_10(%arg0: i32, %arg1: memref<2xi32, #tpu.memory_space<smem>>) -> (i32, i32, i32) {
    %c0_i32 = arith.constant 0 : i32
    %c0_i32_0 = arith.constant 0 : i32
    %c0_i32_1 = arith.constant 0 : i32
    %c0_i32_2 = arith.constant 0 : i32
    return %c0_i32, %c0_i32_0, %c0_i32_1 : i32, i32, i32
  }
  func.func @transform_11(%arg0: i32, %arg1: memref<2xi32, #tpu.memory_space<smem>>) -> (i32, i32, i32) {
    %c0_i32 = arith.constant 0 : i32
    %c0_i32_0 = arith.constant 0 : i32
    %c0_i32_1 = arith.constant 0 : i32
    %c0_i32_2 = arith.constant 0 : i32
    return %c0_i32, %c0_i32_0, %c0_i32_1 : i32, i32, i32
  }
  func.func @transform_12(%arg0: i32, %arg1: memref<2xi32, #tpu.memory_space<smem>>) -> (i32, i32, i32) {
    %c0_i32 = arith.constant 0 : i32
    %c0_i32_0 = arith.constant 0 : i32
    %c0_i32_1 = arith.constant 0 : i32
    %c0_i32_2 = arith.constant 0 : i32
    return %c0_i32, %c0_i32_0, %c0_i32_1 : i32, i32, i32
  }
  func.func @transform_13(%arg0: i32, %arg1: memref<2xi32, #tpu.memory_space<smem>>) -> (i32, i32, i32) {
    %c0_i32 = arith.constant 0 : i32
    %c0_i32_0 = arith.constant 0 : i32
    %c0_i32_1 = arith.constant 0 : i32
    %c0_i32_2 = arith.constant 0 : i32
    return %c0_i32, %c0_i32_0, %c0_i32_1 : i32, i32, i32
  }
  func.func @transform_14(%arg0: i32, %arg1: memref<2xi32, #tpu.memory_space<smem>>) -> (i32, i32, i32) {
    %c0_i32 = arith.constant 0 : i32
    %c0_i32_0 = arith.constant 0 : i32
    %c0_i32_1 = arith.constant 0 : i32
    %c0_i32_2 = arith.constant 0 : i32
    return %c0_i32, %c0_i32_0, %c0_i32_1 : i32, i32, i32
  }
  func.func @transform_15(%arg0: i32, %arg1: memref<2xi32, #tpu.memory_space<smem>>) -> (i32, i32, i32) {
    %c0_i32 = arith.constant 0 : i32
    %c0_i32_0 = arith.constant 0 : i32
    %c0_i32_1 = arith.constant 0 : i32
    %c0_i32_2 = arith.constant 0 : i32
    return %c0_i32, %c0_i32_0, %c0_i32_1 : i32, i32, i32
  }
  func.func @transform_16(%arg0: i32, %arg1: memref<2xi32, #tpu.memory_space<smem>>) -> (i32, i32, i32) {
    %c0_i32 = arith.constant 0 : i32
    %c0_i32_0 = arith.constant 0 : i32
    %c0_i32_1 = arith.constant 0 : i32
    %c0_i32_2 = arith.constant 0 : i32
    return %c0_i32, %c0_i32_0, %c0_i32_1 : i32, i32, i32
  }
  func.func @transform_17(%arg0: i32, %arg1: memref<2xi32, #tpu.memory_space<smem>>) -> (i32, i32) {
    %c0_i32 = arith.constant 0 : i32
    %c0_i32_0 = arith.constant 0 : i32
    %c0_i32_1 = arith.constant 0 : i32
    return %c0_i32, %c0_i32_0 : i32, i32
  }
  func.func @transform_18(%arg0: i32, %arg1: memref<2xi32, #tpu.memory_space<smem>>) -> (i32, i32) {
    %c0_i32 = arith.constant 0 : i32
    %c0_i32_0 = arith.constant 0 : i32
    %c0_i32_1 = arith.constant 0 : i32
    return %c0_i32, %c0_i32_0 : i32, i32
  }
  func.func @transform_19(%arg0: i32, %arg1: memref<2xi32, #tpu.memory_space<smem>>) -> (i32, i32) {
    %c0_i32 = arith.constant 0 : i32
    %c0_i32_0 = arith.constant 0 : i32
    %c0_i32_1 = arith.constant 0 : i32
    return %c0_i32, %c0_i32_0 : i32, i32
  }
  func.func @transform_20(%arg0: i32, %arg1: memref<2xi32, #tpu.memory_space<smem>>) -> (i32, i32) {
    %c0_i32 = arith.constant 0 : i32
    %c0_i32_0 = arith.constant 0 : i32
    %c0_i32_1 = arith.constant 0 : i32
    return %c0_i32, %c0_i32_0 : i32, i32
  }
}

</mosaic_0001>

<llo_original>
// kernel: tpu_custom_call.1
$region0: #{tpu_custom_call.1}
  #allocation0 [shape = 'u32[]', space=smem, size = 0x4, offset = 0x4, fixed_abs, tag = 'smem constant byte address 0x4 - core index']
  #allocation1 [shape = 'u32[144,128]{1,0:T(1,128)}', space=vmem, size = 0x12000, scoped, tag = 'internal scratch']
  #allocation2 [shape = 'f32[16,32]{1,0:T(8,128)}', space=vmem, size = 0x2000, scoped, tag = 'scratch operand']
  #allocation3 [shape = 's32[1]{0}', space=sflag, size = 0x4, scoped, tag = 'scoped memory for tpu_custom_call.1']
  #allocation4 [shape = 'u8[512]{0}', space=smem, size = 0x200, scoped, tag = 'prefetched SMEM operand 0']
  %s0 = inlined_call_operand.vmem [shape: s32[2], index: 0, kind: input, shape index: {}]
  %s1 = inlined_call_operand.vmem [shape: f32[16,32], index: 1, kind: input, shape index: {}]
  %s2 = inlined_call_operand.vmem [shape: f32[2,1,32], index: 2, kind: input, shape index: {}]
  %s3 = inlined_call_operand.vmem [shape: f32[2,1,32], index: 3, kind: input, shape index: {}]
  %s4 = inlined_call_operand.vmem [shape: bf16[4,32,16], index: 4, kind: input, shape index: {}]
  %s5 = inlined_call_operand.vmem [shape: f32[4,1,16], index: 5, kind: input, shape index: {}]
  %s6 = inlined_call_operand.vmem [shape: bf16[4,32,16], index: 6, kind: input, shape index: {}]
  %s7 = inlined_call_operand.vmem [shape: f32[4,1,16], index: 7, kind: input, shape index: {}]
  %s8 = inlined_call_operand.vmem [shape: bf16[4,32,16], index: 8, kind: input, shape index: {}]
  %s9 = inlined_call_operand.vmem [shape: f32[4,1,16], index: 9, kind: input, shape index: {}]
  %s10 = inlined_call_operand.vmem [shape: bf16[4,16,32], index: 10, kind: input, shape index: {}]
  %s11 = inlined_call_operand.vmem [shape: f32[2,1,32], index: 11, kind: input, shape index: {}]
  %s12 = inlined_call_operand.vmem [shape: f32[2,1,32], index: 12, kind: input, shape index: {}]
  %s13 = inlined_call_operand.vmem [shape: f32[2,1,32], index: 13, kind: input, shape index: {}]
  %s14 = inlined_call_operand.vmem [shape: bf16[2,32,128], index: 14, kind: input, shape index: {}]
  %s15 = inlined_call_operand.vmem [shape: f32[2,1,128], index: 15, kind: input, shape index: {}]
  %s16 = inlined_call_operand.vmem [shape: bf16[2,128,32], index: 16, kind: input, shape index: {}]
  %s17 = inlined_call_operand.vmem [shape: f32[2,1,32], index: 17, kind: input, shape index: {}]
  %s18 = inlined_call_operand.vmem [shape: f32[1,32], index: 18, kind: input, shape index: {}]
  %s19 = inlined_call_operand.vmem [shape: f32[1,32], index: 19, kind: input, shape index: {}]
  %s20 = inlined_call_operand.vmem [shape: bf16[32,16], index: 20, kind: input, shape index: {}]
  %s21 = inlined_call_operand.hbm [shape: f32[2,16], index: 21, kind: output, shape index: {}]
  %s22 = sld [smem:[#allocation0]]
  $region90: #{tpu_custom_call.1} parent=0
    _
  %s24 = ssub.s32 1, %s22
  %s25 = scalar_select 0, %s24, %s22
  %s26 = sshll.u32 %s0, 4
  %s27 = int_to_ptr.vmem [resolvable:$true] %s26
  %29 = dma.vmem_to_smem %s27, 16, [#allocation4], [#allocation3]
  %30 = dma.done [#allocation3], 16
  %31 = sfence
  $region1: #{tpu_custom_call.1} parent=0
    #allocation5 [shape = 'u8[1024]{0}', space=vmem, size = 0x400, scoped, tag = 'output window, operand 0, single buffered']
    #allocation6 [shape = 's32[1]{0}', space=sflag, size = 0x4, scoped, tag = 'scoped memory for tpu_custom_call.1']
    %32 = vsyncpa [#allocation6], 0
    // Predicated region
    $region2: #{tpu_custom_call.1} parent=1 // pred_check
      _
    $region3: #{tpu_custom_call.1} parent=1 // pred_check_branch
      %34 = sbr.rel (0) target = $region5
    $region4: #{tpu_custom_call.1} parent=1 // pred_region
      _
    $region5: #{tpu_custom_call.1} parent=1 // pred_fallthru
      _
    // Predicated region
    $region6: #{tpu_custom_call.1} parent=1 // pred_check
      _
    $region7: #{tpu_custom_call.1} parent=1 // pred_check_branch
      %36 = sbr.rel (0) target = $region9
    $region8: #{tpu_custom_call.1} parent=1 // pred_region
      _
    $region9: #{tpu_custom_call.1} parent=1 // pred_fallthru
      _
    // Predicated region
    $region10: #{tpu_custom_call.1} parent=1 // pred_check
      _
    $region11: #{tpu_custom_call.1} parent=1 // pred_check_branch
      %38 = sbr.rel (0) target = $region13
    $region12: #{tpu_custom_call.1} parent=1 // pred_region
      _
    $region13: #{tpu_custom_call.1} parent=1 // pred_fallthru
      _
    // Predicated region
    $region14: #{tpu_custom_call.1} parent=1 // pred_check
      _
    $region15: #{tpu_custom_call.1} parent=1 // pred_check_branch
      %40 = sbr.rel (0) target = $region17
    $region16: #{tpu_custom_call.1} parent=1 // pred_region
      _
    $region17: #{tpu_custom_call.1} parent=1 // pred_fallthru
      _
    // Predicated region
    $region18: #{tpu_custom_call.1} parent=1 // pred_check
      _
    $region19: #{tpu_custom_call.1} parent=1 // pred_check_branch
      %42 = sbr.rel (0) target = $region21
    $region20: #{tpu_custom_call.1} parent=1 // pred_region
      _
    $region21: #{tpu_custom_call.1} parent=1 // pred_fallthru
      _
    // Predicated region
    $region22: #{tpu_custom_call.1} parent=1 // pred_check
      _
    $region23: #{tpu_custom_call.1} parent=1 // pred_check_branch
      %44 = sbr.rel (0) target = $region25
    $region24: #{tpu_custom_call.1} parent=1 // pred_region
      _
    $region25: #{tpu_custom_call.1} parent=1 // pred_fallthru
      _
    // Predicated region
    $region26: #{tpu_custom_call.1} parent=1 // pred_check
      _
    $region27: #{tpu_custom_call.1} parent=1 // pred_check_branch
      %46 = sbr.rel (0) target = $region29
    $region28: #{tpu_custom_call.1} parent=1 // pred_region
      _
    $region29: #{tpu_custom_call.1} parent=1 // pred_fallthru
      _
    // Predicated region
    $region30: #{tpu_custom_call.1} parent=1 // pred_check
      _
    $region31: #{tpu_custom_call.1} parent=1 // pred_check_branch
      %48 = sbr.rel (0) target = $region33
    $region32: #{tpu_custom_call.1} parent=1 // pred_region
      _
    $region33: #{tpu_custom_call.1} parent=1 // pred_fallthru
      _
    // Predicated region
    $region34: #{tpu_custom_call.1} parent=1 // pred_check
      _
    $region35: #{tpu_custom_call.1} parent=1 // pred_check_branch
      %50 = sbr.rel (0) target = $region37
    $region36: #{tpu_custom_call.1} parent=1 // pred_region
      _
    $region37: #{tpu_custom_call.1} parent=1 // pred_fallthru
      _
    // Predicated region
    $region38: #{tpu_custom_call.1} parent=1 // pred_check
      _
    $region39: #{tpu_custom_call.1} parent=1 // pred_check_branch
      %52 = sbr.rel (0) target = $region41
    $region40: #{tpu_custom_call.1} parent=1 // pred_region
      _
    $region41: #{tpu_custom_call.1} parent=1 // pred_fallthru
      _
    // Predicated region
    $region42: #{tpu_custom_call.1} parent=1 // pred_check
      _
    $region43: #{tpu_custom_call.1} parent=1 // pred_check_branch
      %54 = sbr.rel (0) target = $region45
    $region44: #{tpu_custom_call.1} parent=1 // pred_region
      _
    $region45: #{tpu_custom_call.1} parent=1 // pred_fallthru
      _
    // Predicated region
    $region46: #{tpu_custom_call.1} parent=1 // pred_check
      _
    $region47: #{tpu_custom_call.1} parent=1 // pred_check_branch
      %56 = sbr.rel (0) target = $region49
    $region48: #{tpu_custom_call.1} parent=1 // pred_region
      _
    $region49: #{tpu_custom_call.1} parent=1 // pred_fallthru
      _
    // Predicated region
    $region50: #{tpu_custom_call.1} parent=1 // pred_check
      _
    $region51: #{tpu_custom_call.1} parent=1 // pred_check_branch
      %58 = sbr.rel (0) target = $region53
    $region52: #{tpu_custom_call.1} parent=1 // pred_region
      _
    $region53: #{tpu_custom_call.1} parent=1 // pred_fallthru
      _
    // Predicated region
    $region54: #{tpu_custom_call.1} parent=1 // pred_check
      _
    $region55: #{tpu_custom_call.1} parent=1 // pred_check_branch
      %60 = sbr.rel (0) target = $region57
    $region56: #{tpu_custom_call.1} parent=1 // pred_region
      _
    $region57: #{tpu_custom_call.1} parent=1 // pred_fallthru
      _
    // Predicated region
    $region58: #{tpu_custom_call.1} parent=1 // pred_check
      _
    $region59: #{tpu_custom_call.1} parent=1 // pred_check_branch
      %62 = sbr.rel (0) target = $region61
    $region60: #{tpu_custom_call.1} parent=1 // pred_region
      _
    $region61: #{tpu_custom_call.1} parent=1 // pred_fallthru
      _
    // Predicated region
    $region62: #{tpu_custom_call.1} parent=1 // pred_check
      _
    $region63: #{tpu_custom_call.1} parent=1 // pred_check_branch
      %64 = sbr.rel (0) target = $region65
    $region64: #{tpu_custom_call.1} parent=1 // pred_region
      _
    $region65: #{tpu_custom_call.1} parent=1 // pred_fallthru
      _
    // Predicated region
    $region66: #{tpu_custom_call.1} parent=1 // pred_check
      _
    $region67: #{tpu_custom_call.1} parent=1 // pred_check_branch
      %66 = sbr.rel (0) target = $region69
    $region68: #{tpu_custom_call.1} parent=1 // pred_region
      _
    $region69: #{tpu_custom_call.1} parent=1 // pred_fallthru
      _
    // Predicated region
    $region70: #{tpu_custom_call.1} parent=1 // pred_check
      _
    $region71: #{tpu_custom_call.1} parent=1 // pred_check_branch
      %68 = sbr.rel (0) target = $region73
    $region72: #{tpu_custom_call.1} parent=1 // pred_region
      _
    $region73: #{tpu_custom_call.1} parent=1 // pred_fallthru
      _
    // Predicated region
    $region74: #{tpu_custom_call.1} parent=1 // pred_check
      _
    $region75: #{tpu_custom_call.1} parent=1 // pred_check_branch
      %70 = sbr.rel (0) target = $region77
    $region76: #{tpu_custom_call.1} parent=1 // pred_region
      _
    $region77: #{tpu_custom_call.1} parent=1 // pred_fallthru
      _
    // Predicated region
    $region78: #{tpu_custom_call.1} parent=1 // pred_check
      _
    $region79: #{tpu_custom_call.1} parent=1 // pred_check_branch
      %72 = sbr.rel (0) target = $region81
    $region80: #{tpu_custom_call.1} parent=1 // pred_region
      _
    $region81: #{tpu_custom_call.1} parent=1 // pred_fallthru
      _
    %v74 = vld [vmem:[%s1] sm:$0xff]
    %v75 = vld [vmem:[%s1 + $0x8] sm:$0xff]
    %v76 = vlaneseq
    %v77 = vshrl.u32 %v76, 7
    %v78 = vlaneseq
    %v79 = vand.u32 %v78, 127
    %vm80 = vcmp.le.s32.totalorder %v79, %v77
    %v81 = vld [vmem:[%s2] sm:$0x1]
    %v82 = vld [vmem:[%s3] sm:$0x1]
    %vm83 = vcmask 261120
    %v84 = vsel %vm83, %v74, 0.0
    %85 = vadd.xlane.f32.xlu0 %v84
    %v86 = vpop.xlane.xlu0 %85
    %v87 = vsel %vm83, %v75, 0.0
    %88 = vadd.xlane.f32.xlu0 %v87
    %v89 = vpop.xlane.xlu0 %88
    %v90 = vrcp.pop 32.0
    %v91 = vmul.f32 %v86, %v90
    %v92 = vmul.f32 %v89, %v90
    %v93 = vsub.f32 %v74, %v91
    %v94 = vsub.f32 %v75, %v92
    %v95 = vmul.f32 %v93, %v93
    %v96 = vmul.f32 %v94, %v94
    %v97 = vsel %vm83, %v95, 0.0
    %98 = vadd.xlane.f32.xlu0 %v97
    %v99 = vpop.xlane.xlu0 %98
    %v100 = vsel %vm83, %v96, 0.0
    %101 = vadd.xlane.f32.xlu0 %v100
    %v102 = vpop.xlane.xlu0 %101
    %v103 = vmul.f32 %v99, %v90
    %v104 = vmul.f32 %v102, %v90
    %v105 = vadd.f32 %v103, 1e-05
    %v106 = vadd.f32 %v104, 1e-05
    %v107 = vrsqrt.pop %v105
    %v108 = vrsqrt.pop %v106
    %v109 = vmul.f32 %v93, %v107
    %v110 = vmul.f32 %v94, %v108
    %v112 = vlaneseq
    %v113 = vshrl.u32 %v112, 7
    %v114 = vsub.s32 0, %v113
    %v115 = vrot.slane %v81, %v114
    %v117 = vmul.f32 %v109, %v115
    %v118 = vmul.f32 %v110, %v115
    %v120 = vlaneseq
    %v121 = vshrl.u32 %v120, 7
    %v122 = vsub.s32 0, %v121
    %v123 = vrot.slane %v82, %v122
    %v125 = vadd.f32 %v117, %v123
    %v126 = vadd.f32 %v118, %v123
    %v127 = vpack.c.bf16 %v126, %v125
    %v128 = vld [vmem:[%s4] sm:$0xf]
    %v129 = vld [vmem:[%s4 + $0x4] sm:$0xf]
    %v130 = vld [vmem:[%s4 + $0x8] sm:$0xf]
    %v131 = vld [vmem:[%s4 + $0xc] sm:$0xf]
    %v132 = vld [vmem:[%s5] sm:$0x1]
    %v134 = vlaneseq
    %v135 = vshrl.u32 %v134, 7
    %v136 = vsub.s32 0, %v135
    %v137 = vrot.slane %v132, %v136
    %v143 = vunpack.c.l.b16 %v128
    %v144 = vunpack.c.l.b16 %v129
    %v145 = vunpack.c.l.b16 %v130
    %v146 = vunpack.c.l.b16 %v131
    %v147 = vpack.c.b16 %v144, %v143
    %v148 = vpack.c.b16 %v146, %v145
    %v152 = vsel %vm83, %v127, 0
    %154 = vmatprep.subr.bf16.mxu0 0
    %155 = vmatpush1.bf16.msra.mxu0 %v147
    %156 = vmatprep.subr.bf16.mxu0 0
    %157 = vmatpush1.bf16.msra.mxu0 %v148
    %158 = vmatprep.subr.bf16.mxu0 0
    %159 = vmatpush1.bf16.msra.mxu0 0
    %160 = vmatprep.subr.bf16.mxu0 0
    %161 = vmatpush1.bf16.msra.mxu0 0
    %162 = vmatprep.subr.bf16.mxu0 0
    %163 = vmatpush1.bf16.msra.mxu0 0
    %164 = vmatprep.subr.bf16.mxu0 0
    %165 = vmatpush1.bf16.msra.mxu0 0
    %166 = vmatprep.subr.bf16.mxu0 0
    %167 = vmatpush1.bf16.msra.mxu0 0
    %168 = vmatprep.subr.bf16.mxu0 0
    %169 = vmatpush1.bf16.msra.mxu0 0
    %170 = vmatprep.subr.bf16.mxu0 0
    %171 = vmatpush1.bf16.msra.mxu0 0
    %172 = vmatprep.subr.bf16.mxu0 0
    %173 = vmatpush1.bf16.msra.mxu0 0
    %174 = vmatprep.subr.bf16.mxu0 0
    %175 = vmatpush1.bf16.msra.mxu0 0
    %176 = vmatprep.subr.bf16.mxu0 0
    %177 = vmatpush1.bf16.msra.mxu0 0
    %178 = vmatprep.subr.bf16.mxu0 0
    %179 = vmatpush1.bf16.msra.mxu0 0
    %180 = vmatprep.subr.bf16.mxu0 0
    %181 = vmatpush1.bf16.msra.mxu0 0
    %182 = vmatprep.subr.bf16.mxu0 0
    %183 = vmatpush1.bf16.msra.mxu0 0
    %184 = vmatprep.subr.bf16.mxu0 0
    %185 = vmatpush1.bf16.msra.mxu0 0
    %186 = vmatprep.mubr.bf16.mxu0 0
    %187 = vmatmul.mubr.bf16.gmra.mrb[0].mxu0 %v152
    %v188 = vpop.f32.mrb[0].mxu0
    %v189 = vadd.f32 %v137, %v188
    %v190 = vpop.f32.mrb[0].mxu0
    %v191 = vpop.f32.mrb[0].mxu0
    %v192 = vadd.f32 %v137, %v191
    %v193 = vpop.f32.mrb[0].mxu0
    %194 = vdwg.mxu0
    %v195 = vpack.c.bf16 %v192, %v189
    %v196 = vld [vmem:[%s6] sm:$0xf]
    %v197 = vld [vmem:[%s6 + $0x4] sm:$0xf]
    %v198 = vld [vmem:[%s6 + $0x8] sm:$0xf]
    %v199 = vld [vmem:[%s6 + $0xc] sm:$0xf]
    %v200 = vld [vmem:[%s7] sm:$0x1]
    %v202 = vlaneseq
    %v203 = vshrl.u32 %v202, 7
    %v204 = vsub.s32 0, %v203
    %v205 = vrot.slane %v200, %v204
    %v211 = vunpack.c.l.b16 %v196
    %v212 = vunpack.c.l.b16 %v197
    %v213 = vunpack.c.l.b16 %v198
    %v214 = vunpack.c.l.b16 %v199
    %v215 = vpack.c.b16 %v212, %v211
    %v216 = vpack.c.b16 %v214, %v213
    %219 = vmatprep.subr.bf16.mxu0 0
    %220 = vmatpush1.bf16.msra.mxu0 %v215
    %221 = vmatprep.subr.bf16.mxu0 0
    %222 = vmatpush1.bf16.msra.mxu0 %v216
    %223 = vmatprep.subr.bf16.mxu0 0
    %224 = vmatpush1.bf16.msra.mxu0 0
    %225 = vmatprep.subr.bf16.mxu0 0
    %226 = vmatpush1.bf16.msra.mxu0 0
    %227 = vmatprep.subr.bf16.mxu0 0
    %228 = vmatpush1.bf16.msra.mxu0 0
    %229 = vmatprep.subr.bf16.mxu0 0
    %230 = vmatpush1.bf16.msra.mxu0 0
    %231 = vmatprep.subr.bf16.mxu0 0
    %232 = vmatpush1.bf16.msra.mxu0 0
    %233 = vmatprep.subr.bf16.mxu0 0
    %234 = vmatpush1.bf16.msra.mxu0 0
    %235 = vmatprep.subr.bf16.mxu0 0
    %236 = vmatpush1.bf16.msra.mxu0 0
    %237 = vmatprep.subr.bf16.mxu0 0
    %238 = vmatpush1.bf16.msra.mxu0 0
    %239 = vmatprep.subr.bf16.mxu0 0
    %240 = vmatpush1.bf16.msra.mxu0 0
    %241 = vmatprep.subr.bf16.mxu0 0
    %242 = vmatpush1.bf16.msra.mxu0 0
    %243 = vmatprep.subr.bf16.mxu0 0
    %244 = vmatpush1.bf16.msra.mxu0 0
    %245 = vmatprep.subr.bf16.mxu0 0
    %246 = vmatpush1.bf16.msra.mxu0 0
    %247 = vmatprep.subr.bf16.mxu0 0
    %248 = vmatpush1.bf16.msra.mxu0 0
    %249 = vmatprep.subr.bf16.mxu0 0
    %250 = vmatpush1.bf16.msra.mxu0 0
    %251 = vmatprep.mubr.bf16.mxu0 0
    %252 = vmatmul.mubr.bf16.gmra.mrb[0].mxu0 %v152
    %v253 = vpop.f32.mrb[0].mxu0
    %v254 = vadd.f32 %v205, %v253
    %v255 = vpop.f32.mrb[0].mxu0
    %v256 = vpop.f32.mrb[0].mxu0
    %v257 = vadd.f32 %v205, %v256
    %v258 = vpop.f32.mrb[0].mxu0
    %259 = vdwg.mxu0
    %v260 = vpack.c.bf16 %v257, %v254
    %v261 = vld [vmem:[%s8] sm:$0xf]
    %v262 = vld [vmem:[%s8 + $0x4] sm:$0xf]
    %v263 = vld [vmem:[%s8 + $0x8] sm:$0xf]
    %v264 = vld [vmem:[%s8 + $0xc] sm:$0xf]
    %v265 = vld [vmem:[%s9] sm:$0x1]
    %v267 = vlaneseq
    %v268 = vshrl.u32 %v267, 7
    %v269 = vsub.s32 0, %v268
    %v270 = vrot.slane %v265, %v269
    %v276 = vunpack.c.l.b16 %v261
    %v277 = vunpack.c.l.b16 %v262
    %v278 = vunpack.c.l.b16 %v263
    %v279 = vunpack.c.l.b16 %v264
    %v280 = vpack.c.b16 %v277, %v276
    %v281 = vpack.c.b16 %v279, %v278
    %284 = vmatprep.subr.bf16.mxu0 0
    %285 = vmatpush1.bf16.msra.mxu0 %v280
    %286 = vmatprep.subr.bf16.mxu0 0
    %287 = vmatpush1.bf16.msra.mxu0 %v281
    %288 = vmatprep.subr.bf16.mxu0 0
    %289 = vmatpush1.bf16.msra.mxu0 0
    %290 = vmatprep.subr.bf16.mxu0 0
    %291 = vmatpush1.bf16.msra.mxu0 0
    %292 = vmatprep.subr.bf16.mxu0 0
    %293 = vmatpush1.bf16.msra.mxu0 0
    %294 = vmatprep.subr.bf16.mxu0 0
    %295 = vmatpush1.bf16.msra.mxu0 0
    %296 = vmatprep.subr.bf16.mxu0 0
    %297 = vmatpush1.bf16.msra.mxu0 0
    %298 = vmatprep.subr.bf16.mxu0 0
    %299 = vmatpush1.bf16.msra.mxu0 0
    %300 = vmatprep.subr.bf16.mxu0 0
    %301 = vmatpush1.bf16.msra.mxu0 0
    %302 = vmatprep.subr.bf16.mxu0 0
    %303 = vmatpush1.bf16.msra.mxu0 0
    %304 = vmatprep.subr.bf16.mxu0 0
    %305 = vmatpush1.bf16.msra.mxu0 0
    %306 = vmatprep.subr.bf16.mxu0 0
    %307 = vmatpush1.bf16.msra.mxu0 0
    %308 = vmatprep.subr.bf16.mxu0 0
    %309 = vmatpush1.bf16.msra.mxu0 0
    %310 = vmatprep.subr.bf16.mxu0 0
    %311 = vmatpush1.bf16.msra.mxu0 0
    %312 = vmatprep.subr.bf16.mxu0 0
    %313 = vmatpush1.bf16.msra.mxu0 0
    %314 = vmatprep.subr.bf16.mxu0 0
    %315 = vmatpush1.bf16.msra.mxu0 0
    %316 = vmatprep.mubr.bf16.mxu0 0
    %317 = vmatmul.mubr.bf16.gmra.mrb[0].mxu0 %v152
    %v318 = vpop.f32.mrb[0].mxu0
    %v319 = vadd.f32 %v270, %v318
    %v320 = vpop.f32.mrb[0].mxu0
    %v321 = vpop.f32.mrb[0].mxu0
    %v322 = vadd.f32 %v270, %v321
    %v323 = vpop.f32.mrb[0].mxu0
    %324 = vdwg.mxu0
    %v325 = vpack.c.bf16 %v322, %v319
    %v326 = vld [vmem:[%s10] sm:$0xf]
    %v327 = vld [vmem:[%s10 + $0x4] sm:$0xf]
    %vm328 = vcmask 130048
    %v330 = vsel %vm328, %v195, 0
    %v333 = vsel %vm328, %v260, 0
    %335 = vmatprep.subr.bf16.mxu0 0
    %336 = vmatpush1.bf16.xpose.msra.mxu0 %v333
    %337 = vmatprep.subr.bf16.mxu0 0
    %338 = vmatpush1.bf16.xpose.msra.mxu0 0
    %339 = vmatprep.subr.bf16.mxu0 0
    %340 = vmatpush1.bf16.xpose.msra.mxu0 0
    %341 = vmatprep.subr.bf16.mxu0 0
    %342 = vmatpush1.bf16.xpose.msra.mxu0 0
    %343 = vmatprep.subr.bf16.mxu0 0
    %344 = vmatpush1.bf16.xpose.msra.mxu0 0
    %345 = vmatprep.subr.bf16.mxu0 0
    %346 = vmatpush1.bf16.xpose.msra.mxu0 0
    %347 = vmatprep.subr.bf16.mxu0 0
    %348 = vmatpush1.bf16.xpose.msra.mxu0 0
    %349 = vmatprep.subr.bf16.mxu0 0
    %350 = vmatpush1.bf16.xpose.msra.mxu0 0
    %351 = vmatprep.subr.bf16.mxu0 0
    %352 = vmatpush1.bf16.xpose.msra.mxu0 0
    %353 = vmatprep.subr.bf16.mxu0 0
    %354 = vmatpush1.bf16.xpose.msra.mxu0 0
    %355 = vmatprep.subr.bf16.mxu0 0
    %356 = vmatpush1.bf16.xpose.msra.mxu0 0
    %357 = vmatprep.subr.bf16.mxu0 0
    %358 = vmatpush1.bf16.xpose.msra.mxu0 0
    %359 = vmatprep.subr.bf16.mxu0 0
    %360 = vmatpush1.bf16.xpose.msra.mxu0 0
    %361 = vmatprep.subr.bf16.mxu0 0
    %362 = vmatpush1.bf16.xpose.msra.mxu0 0
    %363 = vmatprep.subr.bf16.mxu0 0
    %364 = vmatpush1.bf16.xpose.msra.mxu0 0
    %365 = vmatprep.subr.bf16.mxu0 0
    %366 = vmatpush1.bf16.xpose.msra.mxu0 0
    %367 = vmatprep.mubr.bf16.mxu0 0
    %368 = vmatmul.mubr.bf16.gmra.mrb[0].mxu0 %v330
    %v369 = vpop.f32.mrb[0].mxu0
    %v370 = vadd.f32 0.0, %v369
    %v371 = vpop.f32.mrb[0].mxu0
    %v372 = vpop.f32.mrb[0].mxu0
    %v373 = vpop.f32.mrb[0].mxu0
    %374 = vdwg.mxu0
    %v375 = vsel %vm80, %v370, -1e+30
    %vm376 = vcmask 64512
    %v377 = vsel %vm376, %v375, -inf
    %378 = vmax.xlane.f32.xlu0 %v377
    %v379 = vpop.xlane.xlu0 %378
    %v380 = vsub.f32 %v375, %v379
    %v381 = vmul.f32 %v380, 1.442695
    %v382 = vpow.pop %v381
    %v383 = vsel %vm376, %v382, 0.0
    %384 = vadd.xlane.f32.xlu0 %v383
    %v385 = vpop.xlane.xlu0 %384
    %v386 = vrcp.pop %v385
    %v387 = vmul.f32 %v382, %v386
    %v388 = vpack.c.bf16 %v387, %v387
    %v390 = vsel %vm376, %v388, 0
    %vm392 = vcmask 1043456
    %v394 = vsel %vm392, %v325, 0
    %396 = vmatprep.subr.bf16.mxu0 0
    %397 = vmatpush1.bf16.msra.mxu0 %v394
    %398 = vmatprep.subr.bf16.mxu0 0
    %399 = vmatpush1.bf16.msra.mxu0 0
    %400 = vmatprep.subr.bf16.mxu0 0
    %401 = vmatpush1.bf16.msra.mxu0 0
    %402 = vmatprep.subr.bf16.mxu0 0
    %403 = vmatpush1.bf16.msra.mxu0 0
    %404 = vmatprep.subr.bf16.mxu0 0
    %405 = vmatpush1.bf16.msra.mxu0 0
    %406 = vmatprep.subr.bf16.mxu0 0
    %407 = vmatpush1.bf16.msra.mxu0 0
    %408 = vmatprep.subr.bf16.mxu0 0
    %409 = vmatpush1.bf16.msra.mxu0 0
    %410 = vmatprep.subr.bf16.mxu0 0
    %411 = vmatpush1.bf16.msra.mxu0 0
    %412 = vmatprep.subr.bf16.mxu0 0
    %413 = vmatpush1.bf16.msra.mxu0 0
    %414 = vmatprep.subr.bf16.mxu0 0
    %415 = vmatpush1.bf16.msra.mxu0 0
    %416 = vmatprep.subr.bf16.mxu0 0
    %417 = vmatpush1.bf16.msra.mxu0 0
    %418 = vmatprep.subr.bf16.mxu0 0
    %419 = vmatpush1.bf16.msra.mxu0 0
    %420 = vmatprep.subr.bf16.mxu0 0
    %421 = vmatpush1.bf16.msra.mxu0 0
    %422 = vmatprep.subr.bf16.mxu0 0
    %423 = vmatpush1.bf16.msra.mxu0 0
    %424 = vmatprep.subr.bf16.mxu0 0
    %425 = vmatpush1.bf16.msra.mxu0 0
    %426 = vmatprep.subr.bf16.mxu0 0
    %427 = vmatpush1.bf16.msra.mxu0 0
    %428 = vmatprep.mubr.bf16.mxu0 0
    %429 = vmatmul.mubr.bf16.gmra.mrb[0].mxu0 %v390
    %v430 = vpop.f32.mrb[0].mxu0
    %v431 = vadd.f32 0.0, %v430
    %v432 = vpop.f32.mrb[0].mxu0
    %v433 = vpop.f32.mrb[0].mxu0
    %v434 = vpop.f32.mrb[0].mxu0
    %435 = vdwg.mxu0
    %v436 = vpack.c.bf16 %v431, %v431
    %v438 = vrot.slane %v195, 4
    %v440 = vrot.slane %v260, 4
    %v442 = vsel %vm328, %v438, 0
    %v445 = vsel %vm328, %v440, 0
    %447 = vmatprep.subr.bf16.mxu0 0
    %448 = vmatpush1.bf16.xpose.msra.mxu0 %v445
    %449 = vmatprep.subr.bf16.mxu0 0
    %450 = vmatpush1.bf16.xpose.msra.mxu0 0
    %451 = vmatprep.subr.bf16.mxu0 0
    %452 = vmatpush1.bf16.xpose.msra.mxu0 0
    %453 = vmatprep.subr.bf16.mxu0 0
    %454 = vmatpush1.bf16.xpose.msra.mxu0 0
    %455 = vmatprep.subr.bf16.mxu0 0
    %456 = vmatpush1.bf16.xpose.msra.mxu0 0
    %457 = vmatprep.subr.bf16.mxu0 0
    %458 = vmatpush1.bf16.xpose.msra.mxu0 0
    %459 = vmatprep.subr.bf16.mxu0 0
    %460 = vmatpush1.bf16.xpose.msra.mxu0 0
    %461 = vmatprep.subr.bf16.mxu0 0
    %462 = vmatpush1.bf16.xpose.msra.mxu0 0
    %463 = vmatprep.subr.bf16.mxu0 0
    %464 = vmatpush1.bf16.xpose.msra.mxu0 0
    %465 = vmatprep.subr.bf16.mxu0 0
    %466 = vmatpush1.bf16.xpose.msra.mxu0 0
    %467 = vmatprep.subr.bf16.mxu0 0
    %468 = vmatpush1.bf16.xpose.msra.mxu0 0
    %469 = vmatprep.subr.bf16.mxu0 0
    %470 = vmatpush1.bf16.xpose.msra.mxu0 0
    %471 = vmatprep.subr.bf16.mxu0 0
    %472 = vmatpush1.bf16.xpose.msra.mxu0 0
    %473 = vmatprep.subr.bf16.mxu0 0
    %474 = vmatpush1.bf16.xpose.msra.mxu0 0
    %475 = vmatprep.subr.bf16.mxu0 0
    %476 = vmatpush1.bf16.xpose.msra.mxu0 0
    %477 = vmatprep.subr.bf16.mxu0 0
    %478 = vmatpush1.bf16.xpose.msra.mxu0 0
    %479 = vmatprep.mubr.bf16.mxu0 0
    %480 = vmatmul.mubr.bf16.gmra.mrb[0].mxu0 %v442
    %v481 = vpop.f32.mrb[0].mxu0
    %v482 = vadd.f32 0.0, %v481
    %v483 = vpop.f32.mrb[0].mxu0
    %v484 = vpop.f32.mrb[0].mxu0
    %v485 = vpop.f32.mrb[0].mxu0
    %486 = vdwg.mxu0
    %v487 = vsel %vm80, %v482, -1e+30
    %v488 = vsel %vm376, %v487, -inf
    %489 = vmax.xlane.f32.xlu0 %v488
    %v490 = vpop.xlane.xlu0 %489
    %v491 = vsub.f32 %v487, %v490
    %v492 = vmul.f32 %v491, 1.442695
    %v493 = vpow.pop %v492
    %v494 = vsel %vm376, %v493, 0.0
    %495 = vadd.xlane.f32.xlu0 %v494
    %v496 = vpop.xlane.xlu0 %495
    %v497 = vrcp.pop %v496
    %v498 = vmul.f32 %v493, %v497
    %v499 = vpack.c.bf16 %v498, %v498
    %v501 = vrot.slane %v325, 4
    %v503 = vsel %vm376, %v499, 0
    %v506 = vsel %vm392, %v501, 0
    %508 = vmatprep.subr.bf16.mxu0 0
    %509 = vmatpush1.bf16.msra.mxu0 %v506
    %510 = vmatprep.subr.bf16.mxu0 0
    %511 = vmatpush1.bf16.msra.mxu0 0
    %512 = vmatprep.subr.bf16.mxu0 0
    %513 = vmatpush1.bf16.msra.mxu0 0
    %514 = vmatprep.subr.bf16.mxu0 0
    %515 = vmatpush1.bf16.msra.mxu0 0
    %516 = vmatprep.subr.bf16.mxu0 0
    %517 = vmatpush1.bf16.msra.mxu0 0
    %518 = vmatprep.subr.bf16.mxu0 0
    %519 = vmatpush1.bf16.msra.mxu0 0
    %520 = vmatprep.subr.bf16.mxu0 0
    %521 = vmatpush1.bf16.msra.mxu0 0
    %522 = vmatprep.subr.bf16.mxu0 0
    %523 = vmatpush1.bf16.msra.mxu0 0
    %524 = vmatprep.subr.bf16.mxu0 0
    %525 = vmatpush1.bf16.msra.mxu0 0
    %526 = vmatprep.subr.bf16.mxu0 0
    %527 = vmatpush1.bf16.msra.mxu0 0
    %528 = vmatprep.subr.bf16.mxu0 0
    %529 = vmatpush1.bf16.msra.mxu0 0
    %530 = vmatprep.subr.bf16.mxu0 0
    %531 = vmatpush1.bf16.msra.mxu0 0
    %532 = vmatprep.subr.bf16.mxu0 0
    %533 = vmatpush1.bf16.msra.mxu0 0
    %534 = vmatprep.subr.bf16.mxu0 0
    %535 = vmatpush1.bf16.msra.mxu0 0
    %536 = vmatprep.subr.bf16.mxu0 0
    %537 = vmatpush1.bf16.msra.mxu0 0
    %538 = vmatprep.subr.bf16.mxu0 0
    %539 = vmatpush1.bf16.msra.mxu0 0
    %540 = vmatprep.mubr.bf16.mxu0 0
    %541 = vmatmul.mubr.bf16.gmra.mrb[0].mxu0 %v503
    %v542 = vpop.f32.mrb[0].mxu0
    %v543 = vadd.f32 0.0, %v542
    %v544 = vpop.f32.mrb[0].mxu0
    %v545 = vpop.f32.mrb[0].mxu0
    %v546 = vpop.f32.mrb[0].mxu0
    %547 = vdwg.mxu0
    %v548 = vpack.c.bf16 %v543, %v543
    %s549 = scalar_lea.vmem %s4, 16
    %v550 = vld [vmem:[%s549] sm:$0xf]
    %v551 = vld [vmem:[%s549 + $0x4] sm:$0xf]
    %v552 = vld [vmem:[%s549 + $0x8] sm:$0xf]
    %v553 = vld [vmem:[%s549 + $0xc] sm:$0xf]
    %s554 = scalar_lea.vmem %s5, 1
    %v555 = vld [vmem:[%s554] sm:$0x1]
    %v557 = vlaneseq
    %v558 = vshrl.u32 %v557, 7
    %v559 = vsub.s32 0, %v558
    %v560 = vrot.slane %v555, %v559
    %v566 = vunpack.c.l.b16 %v550
    %v567 = vunpack.c.l.b16 %v551
    %v568 = vunpack.c.l.b16 %v552
    %v569 = vunpack.c.l.b16 %v553
    %v570 = vpack.c.b16 %v567, %v566
    %v571 = vpack.c.b16 %v569, %v568
    %574 = vmatprep.subr.bf16.mxu0 0
    %575 = vmatpush1.bf16.msra.mxu0 %v570
    %576 = vmatprep.subr.bf16.mxu0 0
    %577 = vmatpush1.bf16.msra.mxu0 %v571
    %578 = vmatprep.subr.bf16.mxu0 0
    %579 = vmatpush1.bf16.msra.mxu0 0
    %580 = vmatprep.subr.bf16.mxu0 0
    %581 = vmatpush1.bf16.msra.mxu0 0
    %582 = vmatprep.subr.bf16.mxu0 0
    %583 = vmatpush1.bf16.msra.mxu0 0
    %584 = vmatprep.subr.bf16.mxu0 0
    %585 = vmatpush1.bf16.msra.mxu0 0
    %586 = vmatprep.subr.bf16.mxu0 0
    %587 = vmatpush1.bf16.msra.mxu0 0
    %588 = vmatprep.subr.bf16.mxu0 0
    %589 = vmatpush1.bf16.msra.mxu0 0
    %590 = vmatprep.subr.bf16.mxu0 0
    %591 = vmatpush1.bf16.msra.mxu0 0
    %592 = vmatprep.subr.bf16.mxu0 0
    %593 = vmatpush1.bf16.msra.mxu0 0
    %594 = vmatprep.subr.bf16.mxu0 0
    %595 = vmatpush1.bf16.msra.mxu0 0
    %596 = vmatprep.subr.bf16.mxu0 0
    %597 = vmatpush1.bf16.msra.mxu0 0
    %598 = vmatprep.subr.bf16.mxu0 0
    %599 = vmatpush1.bf16.msra.mxu0 0
    %600 = vmatprep.subr.bf16.mxu0 0
    %601 = vmatpush1.bf16.msra.mxu0 0
    %602 = vmatprep.subr.bf16.mxu0 0
    %603 = vmatpush1.bf16.msra.mxu0 0
    %604 = vmatprep.subr.bf16.mxu0 0
    %605 = vmatpush1.bf16.msra.mxu0 0
    %606 = vmatprep.mubr.bf16.mxu0 0
    %607 = vmatmul.mubr.bf16.gmra.mrb[0].mxu0 %v152
    %v608 = vpop.f32.mrb[0].mxu0
    %v609 = vadd.f32 %v560, %v608
    %v610 = vpop.f32.mrb[0].mxu0
    %v611 = vpop.f32.mrb[0].mxu0
    %v612 = vadd.f32 %v560, %v611
    %v613 = vpop.f32.mrb[0].mxu0
    %614 = vdwg.mxu0
    %v615 = vpack.c.bf16 %v612, %v609
    %s616 = scalar_lea.vmem %s6, 16
    %v617 = vld [vmem:[%s616] sm:$0xf]
    %v618 = vld [vmem:[%s616 + $0x4] sm:$0xf]
    %v619 = vld [vmem:[%s616 + $0x8] sm:$0xf]
    %v620 = vld [vmem:[%s616 + $0xc] sm:$0xf]
    %s621 = scalar_lea.vmem %s7, 1
    %v622 = vld [vmem:[%s621] sm:$0x1]
    %v624 = vlaneseq
    %v625 = vshrl.u32 %v624, 7
    %v626 = vsub.s32 0, %v625
    %v627 = vrot.slane %v622, %v626
    %v633 = vunpack.c.l.b16 %v617
    %v634 = vunpack.c.l.b16 %v618
    %v635 = vunpack.c.l.b16 %v619
    %v636 = vunpack.c.l.b16 %v620
    %v637 = vpack.c.b16 %v634, %v633
    %v638 = vpack.c.b16 %v636, %v635
    %641 = vmatprep.subr.bf16.mxu0 0
    %642 = vmatpush1.bf16.msra.mxu0 %v637
    %643 = vmatprep.subr.bf16.mxu0 0
    %644 = vmatpush1.bf16.msra.mxu0 %v638
    %645 = vmatprep.subr.bf16.mxu0 0
    %646 = vmatpush1.bf16.msra.mxu0 0
    %647 = vmatprep.subr.bf16.mxu0 0
    %648 = vmatpush1.bf16.msra.mxu0 0
    %649 = vmatprep.subr.bf16.mxu0 0
    %650 = vmatpush1.bf16.msra.mxu0 0
    %651 = vmatprep.subr.bf16.mxu0 0
    %652 = vmatpush1.bf16.msra.mxu0 0
    %653 = vmatprep.subr.bf16.mxu0 0
    %654 = vmatpush1.bf16.msra.mxu0 0
    %655 = vmatprep.subr.bf16.mxu0 0
    %656 = vmatpush1.bf16.msra.mxu0 0
    %657 = vmatprep.subr.bf16.mxu0 0
    %658 = vmatpush1.bf16.msra.mxu0 0
    %659 = vmatprep.subr.bf16.mxu0 0
    %660 = vmatpush1.bf16.msra.mxu0 0
    %661 = vmatprep.subr.bf16.mxu0 0
    %662 = vmatpush1.bf16.msra.mxu0 0
    %663 = vmatprep.subr.bf16.mxu0 0
    %664 = vmatpush1.bf16.msra.mxu0 0
    %665 = vmatprep.subr.bf16.mxu0 0
    %666 = vmatpush1.bf16.msra.mxu0 0
    %667 = vmatprep.subr.bf16.mxu0 0
    %668 = vmatpush1.bf16.msra.mxu0 0
    %669 = vmatprep.subr.bf16.mxu0 0
    %670 = vmatpush1.bf16.msra.mxu0 0
    %671 = vmatprep.subr.bf16.mxu0 0
    %672 = vmatpush1.bf16.msra.mxu0 0
    %673 = vmatprep.mubr.bf16.mxu0 0
    %674 = vmatmul.mubr.bf16.gmra.mrb[0].mxu0 %v152
    %v675 = vpop.f32.mrb[0].mxu0
    %v676 = vadd.f32 %v627, %v675
    %v677 = vpop.f32.mrb[0].mxu0
    %v678 = vpop.f32.mrb[0].mxu0
    %v679 = vadd.f32 %v627, %v678
    %v680 = vpop.f32.mrb[0].mxu0
    %681 = vdwg.mxu0
    %v682 = vpack.c.bf16 %v679, %v676
    %s683 = scalar_lea.vmem %s8, 16
    %v684 = vld [vmem:[%s683] sm:$0xf]
    %v685 = vld [vmem:[%s683 + $0x4] sm:$0xf]
    %v686 = vld [vmem:[%s683 + $0x8] sm:$0xf]
    %v687 = vld [vmem:[%s683 + $0xc] sm:$0xf]
    %s688 = scalar_lea.vmem %s9, 1
    %v689 = vld [vmem:[%s688] sm:$0x1]
    %v691 = vlaneseq
    %v692 = vshrl.u32 %v691, 7
    %v693 = vsub.s32 0, %v692
    %v694 = vrot.slane %v689, %v693
    %v700 = vunpack.c.l.b16 %v684
    %v701 = vunpack.c.l.b16 %v685
    %v702 = vunpack.c.l.b16 %v686
    %v703 = vunpack.c.l.b16 %v687
    %v704 = vpack.c.b16 %v701, %v700
    %v705 = vpack.c.b16 %v703, %v702
    %708 = vmatprep.subr.bf16.mxu0 0
    %709 = vmatpush1.bf16.msra.mxu0 %v704
    %710 = vmatprep.subr.bf16.mxu0 0
    %711 = vmatpush1.bf16.msra.mxu0 %v705
    %712 = vmatprep.subr.bf16.mxu0 0
    %713 = vmatpush1.bf16.msra.mxu0 0
    %714 = vmatprep.subr.bf16.mxu0 0
    %715 = vmatpush1.bf16.msra.mxu0 0
    %716 = vmatprep.subr.bf16.mxu0 0
    %717 = vmatpush1.bf16.msra.mxu0 0
    %718 = vmatprep.subr.bf16.mxu0 0
    %719 = vmatpush1.bf16.msra.mxu0 0
    %720 = vmatprep.subr.bf16.mxu0 0
    %721 = vmatpush1.bf16.msra.mxu0 0
    %722 = vmatprep.subr.bf16.mxu0 0
    %723 = vmatpush1.bf16.msra.mxu0 0
    %724 = vmatprep.subr.bf16.mxu0 0
    %725 = vmatpush1.bf16.msra.mxu0 0
    %726 = vmatprep.subr.bf16.mxu0 0
    %727 = vmatpush1.bf16.msra.mxu0 0
    %728 = vmatprep.subr.bf16.mxu0 0
    %729 = vmatpush1.bf16.msra.mxu0 0
    %730 = vmatprep.subr.bf16.mxu0 0
    %731 = vmatpush1.bf16.msra.mxu0 0
    %732 = vmatprep.subr.bf16.mxu0 0
    %733 = vmatpush1.bf16.msra.mxu0 0
    %734 = vmatprep.subr.bf16.mxu0 0
    %735 = vmatpush1.bf16.msra.mxu0 0
    %736 = vmatprep.subr.bf16.mxu0 0
    %737 = vmatpush1.bf16.msra.mxu0 0
    %738 = vmatprep.subr.bf16.mxu0 0
    %739 = vmatpush1.bf16.msra.mxu0 0
    %740 = vmatprep.mubr.bf16.mxu0 0
    %741 = vmatmul.mubr.bf16.gmra.mrb[0].mxu0 %v152
    %v742 = vpop.f32.mrb[0].mxu0
    %v743 = vadd.f32 %v694, %v742
    %v744 = vpop.f32.mrb[0].mxu0
    %v745 = vpop.f32.mrb[0].mxu0
    %v746 = vadd.f32 %v694, %v745
    %v747 = vpop.f32.mrb[0].mxu0
    %748 = vdwg.mxu0
    %v749 = vpack.c.bf16 %v746, %v743
    %s750 = scalar_lea.vmem %s10, 8
    %v751 = vld [vmem:[%s750] sm:$0xf]
    %v752 = vld [vmem:[%s750 + $0x4] sm:$0xf]
    %v754 = vsel %vm328, %v615, 0
    %v757 = vsel %vm328, %v682, 0
    %759 = vmatprep.subr.bf16.mxu0 0
    %760 = vmatpush1.bf16.xpose.msra.mxu0 %v757
    %761 = vmatprep.subr.bf16.mxu0 0
    %762 = vmatpush1.bf16.xpose.msra.mxu0 0
    %763 = vmatprep.subr.bf16.mxu0 0
    %764 = vmatpush1.bf16.xpose.msra.mxu0 0
    %765 = vmatprep.subr.bf16.mxu0 0
    %766 = vmatpush1.bf16.xpose.msra.mxu0 0
    %767 = vmatprep.subr.bf16.mxu0 0
    %768 = vmatpush1.bf16.xpose.msra.mxu0 0
    %769 = vmatprep.subr.bf16.mxu0 0
    %770 = vmatpush1.bf16.xpose.msra.mxu0 0
    %771 = vmatprep.subr.bf16.mxu0 0
    %772 = vmatpush1.bf16.xpose.msra.mxu0 0
    %773 = vmatprep.subr.bf16.mxu0 0
    %774 = vmatpush1.bf16.xpose.msra.mxu0 0
    %775 = vmatprep.subr.bf16.mxu0 0
    %776 = vmatpush1.bf16.xpose.msra.mxu0 0
    %777 = vmatprep.subr.bf16.mxu0 0
    %778 = vmatpush1.bf16.xpose.msra.mxu0 0
    %779 = vmatprep.subr.bf16.mxu0 0
    %780 = vmatpush1.bf16.xpose.msra.mxu0 0
    %781 = vmatprep.subr.bf16.mxu0 0
    %782 = vmatpush1.bf16.xpose.msra.mxu0 0
    %783 = vmatprep.subr.bf16.mxu0 0
    %784 = vmatpush1.bf16.xpose.msra.mxu0 0
    %785 = vmatprep.subr.bf16.mxu0 0
    %786 = vmatpush1.bf16.xpose.msra.mxu0 0
    %787 = vmatprep.subr.bf16.mxu0 0
    %788 = vmatpush1.bf16.xpose.msra.mxu0 0
    %789 = vmatprep.subr.bf16.mxu0 0
    %790 = vmatpush1.bf16.xpose.msra.mxu0 0
    %791 = vmatprep.mubr.bf16.mxu0 0
    %792 = vmatmul.mubr.bf16.gmra.mrb[0].mxu0 %v754
    %v793 = vpop.f32.mrb[0].mxu0
    %v794 = vadd.f32 0.0, %v793
    %v795 = vpop.f32.mrb[0].mxu0
    %v796 = vpop.f32.mrb[0].mxu0
    %v797 = vpop.f32.mrb[0].mxu0
    %798 = vdwg.mxu0
    %v799 = vsel %vm80, %v794, -1e+30
    %v800 = vsel %vm376, %v799, -inf
    %801 = vmax.xlane.f32.xlu0 %v800
    %v802 = vpop.xlane.xlu0 %801
    %v803 = vsub.f32 %v799, %v802
    %v804 = vmul.f32 %v803, 1.442695
    %v805 = vpow.pop %v804
    %v806 = vsel %vm376, %v805, 0.0
    %807 = vadd.xlane.f32.xlu0 %v806
    %v808 = vpop.xlane.xlu0 %807
    %v809 = vrcp.pop %v808
    %v810 = vmul.f32 %v805, %v809
    %v811 = vpack.c.bf16 %v810, %v810
    %v813 = vsel %vm376, %v811, 0
    %v816 = vsel %vm392, %v749, 0
    %818 = vmatprep.subr.bf16.mxu0 0
    %819 = vmatpush1.bf16.msra.mxu0 %v816
    %820 = vmatprep.subr.bf16.mxu0 0
    %821 = vmatpush1.bf16.msra.mxu0 0
    %822 = vmatprep.subr.bf16.mxu0 0
    %823 = vmatpush1.bf16.msra.mxu0 0
    %824 = vmatprep.subr.bf16.mxu0 0
    %825 = vmatpush1.bf16.msra.mxu0 0
    %826 = vmatprep.subr.bf16.mxu0 0
    %827 = vmatpush1.bf16.msra.mxu0 0
    %828 = vmatprep.subr.bf16.mxu0 0
    %829 = vmatpush1.bf16.msra.mxu0 0
    %830 = vmatprep.subr.bf16.mxu0 0
    %831 = vmatpush1.bf16.msra.mxu0 0
    %832 = vmatprep.subr.bf16.mxu0 0
    %833 = vmatpush1.bf16.msra.mxu0 0
    %834 = vmatprep.subr.bf16.mxu0 0
    %835 = vmatpush1.bf16.msra.mxu0 0
    %836 = vmatprep.subr.bf16.mxu0 0
    %837 = vmatpush1.bf16.msra.mxu0 0
    %838 = vmatprep.subr.bf16.mxu0 0
    %839 = vmatpush1.bf16.msra.mxu0 0
    %840 = vmatprep.subr.bf16.mxu0 0
    %841 = vmatpush1.bf16.msra.mxu0 0
    %842 = vmatprep.subr.bf16.mxu0 0
    %843 = vmatpush1.bf16.msra.mxu0 0
    %844 = vmatprep.subr.bf16.mxu0 0
    %845 = vmatpush1.bf16.msra.mxu0 0
    %846 = vmatprep.subr.bf16.mxu0 0
    %847 = vmatpush1.bf16.msra.mxu0 0
    %848 = vmatprep.subr.bf16.mxu0 0
    %849 = vmatpush1.bf16.msra.mxu0 0
    %850 = vmatprep.mubr.bf16.mxu0 0
    %851 = vmatmul.mubr.bf16.gmra.mrb[0].mxu0 %v813
    %v852 = vpop.f32.mrb[0].mxu0
    %v853 = vadd.f32 0.0, %v852
    %v854 = vpop.f32.mrb[0].mxu0
    %v855 = vpop.f32.mrb[0].mxu0
    %v856 = vpop.f32.mrb[0].mxu0
    %857 = vdwg.mxu0
    %v858 = vpack.c.bf16 %v853, %v853
    %v861 = vunpack.c.l.b16 %v751
    %v862 = vunpack.c.l.b16 %v752
    %v863 = vpack.c.b16 %v862, %v861
    %v866 = vsel %vm328, %v858, 0
    %868 = vmatprep.subr.bf16.mxu0 0
    %869 = vmatpush1.bf16.msra.mxu0 %v863
    %870 = vmatprep.subr.bf16.mxu0 0
    %871 = vmatpush1.bf16.msra.mxu0 0
    %872 = vmatprep.subr.bf16.mxu0 0
    %873 = vmatpush1.bf16.msra.mxu0 0
    %874 = vmatprep.subr.bf16.mxu0 0
    %875 = vmatpush1.bf16.msra.mxu0 0
    %876 = vmatprep.subr.bf16.mxu0 0
    %877 = vmatpush1.bf16.msra.mxu0 0
    %878 = vmatprep.subr.bf16.mxu0 0
    %879 = vmatpush1.bf16.msra.mxu0 0
    %880 = vmatprep.subr.bf16.mxu0 0
    %881 = vmatpush1.bf16.msra.mxu0 0
    %882 = vmatprep.subr.bf16.mxu0 0
    %883 = vmatpush1.bf16.msra.mxu0 0
    %884 = vmatprep.subr.bf16.mxu0 0
    %885 = vmatpush1.bf16.msra.mxu0 0
    %886 = vmatprep.subr.bf16.mxu0 0
    %887 = vmatpush1.bf16.msra.mxu0 0
    %888 = vmatprep.subr.bf16.mxu0 0
    %889 = vmatpush1.bf16.msra.mxu0 0
    %890 = vmatprep.subr.bf16.mxu0 0
    %891 = vmatpush1.bf16.msra.mxu0 0
    %892 = vmatprep.subr.bf16.mxu0 0
    %893 = vmatpush1.bf16.msra.mxu0 0
    %894 = vmatprep.subr.bf16.mxu0 0
    %895 = vmatpush1.bf16.msra.mxu0 0
    %896 = vmatprep.subr.bf16.mxu0 0
    %897 = vmatpush1.bf16.msra.mxu0 0
    %898 = vmatprep.subr.bf16.mxu0 0
    %899 = vmatpush1.bf16.msra.mxu0 0
    %900 = vmatprep.mubr.bf16.mxu0 0
    %901 = vmatmul.mubr.bf16.gmra.mrb[0].mxu0 %v866
    %v902 = vpop.f32.mrb[0].mxu0
    %v903 = vadd.f32 0.0, %v902
    %v904 = vpop.f32.mrb[0].mxu0
    %v905 = vpop.f32.mrb[0].mxu0
    %v906 = vpop.f32.mrb[0].mxu0
    %907 = vdwg.mxu0
    %v910 = vunpack.c.l.b16 %v326
    %v911 = vunpack.c.l.b16 %v327
    %v912 = vpack.c.b16 %v911, %v910
    %v915 = vsel %vm328, %v436, 0
    %917 = vmatprep.subr.bf16.mxu0 0
    %918 = vmatpush1.bf16.msra.mxu0 %v912
    %919 = vmatprep.subr.bf16.mxu0 0
    %920 = vmatpush1.bf16.msra.mxu0 0
    %921 = vmatprep.subr.bf16.mxu0 0
    %922 = vmatpush1.bf16.msra.mxu0 0
    %923 = vmatprep.subr.bf16.mxu0 0
    %924 = vmatpush1.bf16.msra.mxu0 0
    %925 = vmatprep.subr.bf16.mxu0 0
    %926 = vmatpush1.bf16.msra.mxu0 0
    %927 = vmatprep.subr.bf16.mxu0 0
    %928 = vmatpush1.bf16.msra.mxu0 0
    %929 = vmatprep.subr.bf16.mxu0 0
    %930 = vmatpush1.bf16.msra.mxu0 0
    %931 = vmatprep.subr.bf16.mxu0 0
    %932 = vmatpush1.bf16.msra.mxu0 0
    %933 = vmatprep.subr.bf16.mxu0 0
    %934 = vmatpush1.bf16.msra.mxu0 0
    %935 = vmatprep.subr.bf16.mxu0 0
    %936 = vmatpush1.bf16.msra.mxu0 0
    %937 = vmatprep.subr.bf16.mxu0 0
    %938 = vmatpush1.bf16.msra.mxu0 0
    %939 = vmatprep.subr.bf16.mxu0 0
    %940 = vmatpush1.bf16.msra.mxu0 0
    %941 = vmatprep.subr.bf16.mxu0 0
    %942 = vmatpush1.bf16.msra.mxu0 0
    %943 = vmatprep.subr.bf16.mxu0 0
    %944 = vmatpush1.bf16.msra.mxu0 0
    %945 = vmatprep.subr.bf16.mxu0 0
    %946 = vmatpush1.bf16.msra.mxu0 0
    %947 = vmatprep.subr.bf16.mxu0 0
    %948 = vmatpush1.bf16.msra.mxu0 0
    %949 = vmatprep.mubr.bf16.mxu0 0
    %950 = vmatmul.mubr.bf16.gmra.mrb[0].mxu0 %v915
    %v951 = vpop.f32.mrb[0].mxu0
    %v952 = vadd.f32 %v903, %v951
    %v953 = vpop.f32.mrb[0].mxu0
    %v954 = vpop.f32.mrb[0].mxu0
    %v955 = vpop.f32.mrb[0].mxu0
    %956 = vdwg.mxu0
    %v958 = vrot.slane %v615, 4
    %v960 = vrot.slane %v682, 4
    %v962 = vsel %vm328, %v958, 0
    %v965 = vsel %vm328, %v960, 0
    %967 = vmatprep.subr.bf16.mxu0 0
    %968 = vmatpush1.bf16.xpose.msra.mxu0 %v965
    %969 = vmatprep.subr.bf16.mxu0 0
    %970 = vmatpush1.bf16.xpose.msra.mxu0 0
    %971 = vmatprep.subr.bf16.mxu0 0
    %972 = vmatpush1.bf16.xpose.msra.mxu0 0
    %973 = vmatprep.subr.bf16.mxu0 0
    %974 = vmatpush1.bf16.xpose.msra.mxu0 0
    %975 = vmatprep.subr.bf16.mxu0 0
    %976 = vmatpush1.bf16.xpose.msra.mxu0 0
    %977 = vmatprep.subr.bf16.mxu0 0
    %978 = vmatpush1.bf16.xpose.msra.mxu0 0
    %979 = vmatprep.subr.bf16.mxu0 0
    %980 = vmatpush1.bf16.xpose.msra.mxu0 0
    %981 = vmatprep.subr.bf16.mxu0 0
    %982 = vmatpush1.bf16.xpose.msra.mxu0 0
    %983 = vmatprep.subr.bf16.mxu0 0
    %984 = vmatpush1.bf16.xpose.msra.mxu0 0
    %985 = vmatprep.subr.bf16.mxu0 0
    %986 = vmatpush1.bf16.xpose.msra.mxu0 0
    %987 = vmatprep.subr.bf16.mxu0 0
    %988 = vmatpush1.bf16.xpose.msra.mxu0 0
    %989 = vmatprep.subr.bf16.mxu0 0
    %990 = vmatpush1.bf16.xpose.msra.mxu0 0
    %991 = vmatprep.subr.bf16.mxu0 0
    %992 = vmatpush1.bf16.xpose.msra.mxu0 0
    %993 = vmatprep.subr.bf16.mxu0 0
    %994 = vmatpush1.bf16.xpose.msra.mxu0 0
    %995 = vmatprep.subr.bf16.mxu0 0
    %996 = vmatpush1.bf16.xpose.msra.mxu0 0
    %997 = vmatprep.subr.bf16.mxu0 0
    %998 = vmatpush1.bf16.xpose.msra.mxu0 0
    %999 = vmatprep.mubr.bf16.mxu0 0
    %1000 = vmatmul.mubr.bf16.gmra.mrb[0].mxu0 %v962
    %v1001 = vpop.f32.mrb[0].mxu0
    %v1002 = vadd.f32 0.0, %v1001
    %v1003 = vpop.f32.mrb[0].mxu0
    %v1004 = vpop.f32.mrb[0].mxu0
    %v1005 = vpop.f32.mrb[0].mxu0
    %1006 = vdwg.mxu0
    %v1007 = vsel %vm80, %v1002, -1e+30
    %v1008 = vsel %vm376, %v1007, -inf
    %1009 = vmax.xlane.f32.xlu0 %v1008
    %v1010 = vpop.xlane.xlu0 %1009
    %v1011 = vsub.f32 %v1007, %v1010
    %v1012 = vmul.f32 %v1011, 1.442695
    %v1013 = vpow.pop %v1012
    %v1014 = vsel %vm376, %v1013, 0.0
    %1015 = vadd.xlane.f32.xlu0 %v1014
    %v1016 = vpop.xlane.xlu0 %1015
    %v1017 = vrcp.pop %v1016
    %v1018 = vmul.f32 %v1013, %v1017
    %v1019 = vpack.c.bf16 %v1018, %v1018
    %v1021 = vrot.slane %v749, 4
    %v1023 = vsel %vm376, %v1019, 0
    %v1026 = vsel %vm392, %v1021, 0
    %1028 = vmatprep.subr.bf16.mxu0 0
    %1029 = vmatpush1.bf16.msra.mxu0 %v1026
    %1030 = vmatprep.subr.bf16.mxu0 0
    %1031 = vmatpush1.bf16.msra.mxu0 0
    %1032 = vmatprep.subr.bf16.mxu0 0
    %1033 = vmatpush1.bf16.msra.mxu0 0
    %1034 = vmatprep.subr.bf16.mxu0 0
    %1035 = vmatpush1.bf16.msra.mxu0 0
    %1036 = vmatprep.subr.bf16.mxu0 0
    %1037 = vmatpush1.bf16.msra.mxu0 0
    %1038 = vmatprep.subr.bf16.mxu0 0
    %1039 = vmatpush1.bf16.msra.mxu0 0
    %1040 = vmatprep.subr.bf16.mxu0 0
    %1041 = vmatpush1.bf16.msra.mxu0 0
    %1042 = vmatprep.subr.bf16.mxu0 0
    %1043 = vmatpush1.bf16.msra.mxu0 0
    %1044 = vmatprep.subr.bf16.mxu0 0
    %1045 = vmatpush1.bf16.msra.mxu0 0
    %1046 = vmatprep.subr.bf16.mxu0 0
    %1047 = vmatpush1.bf16.msra.mxu0 0
    %1048 = vmatprep.subr.bf16.mxu0 0
    %1049 = vmatpush1.bf16.msra.mxu0 0
    %1050 = vmatprep.subr.bf16.mxu0 0
    %1051 = vmatpush1.bf16.msra.mxu0 0
    %1052 = vmatprep.subr.bf16.mxu0 0
    %1053 = vmatpush1.bf16.msra.mxu0 0
    %1054 = vmatprep.subr.bf16.mxu0 0
    %1055 = vmatpush1.bf16.msra.mxu0 0
    %1056 = vmatprep.subr.bf16.mxu0 0
    %1057 = vmatpush1.bf16.msra.mxu0 0
    %1058 = vmatprep.subr.bf16.mxu0 0
    %1059 = vmatpush1.bf16.msra.mxu0 0
    %1060 = vmatprep.mubr.bf16.mxu0 0
    %1061 = vmatmul.mubr.bf16.gmra.mrb[0].mxu0 %v1023
    %v1062 = vpop.f32.mrb[0].mxu0
    %v1063 = vadd.f32 0.0, %v1062
    %v1064 = vpop.f32.mrb[0].mxu0
    %v1065 = vpop.f32.mrb[0].mxu0
    %v1066 = vpop.f32.mrb[0].mxu0
    %1067 = vdwg.mxu0
    %v1068 = vpack.c.bf16 %v1063, %v1063
    %v1070 = vsel %vm328, %v1068, 0
    %1072 = vmatprep.subr.bf16.mxu0 0
    %1073 = vmatpush1.bf16.msra.mxu0 %v863
    %1074 = vmatprep.subr.bf16.mxu0 0
    %1075 = vmatpush1.bf16.msra.mxu0 0
    %1076 = vmatprep.subr.bf16.mxu0 0
    %1077 = vmatpush1.bf16.msra.mxu0 0
    %1078 = vmatprep.subr.bf16.mxu0 0
    %1079 = vmatpush1.bf16.msra.mxu0 0
    %1080 = vmatprep.subr.bf16.mxu0 0
    %1081 = vmatpush1.bf16.msra.mxu0 0
    %1082 = vmatprep.subr.bf16.mxu0 0
    %1083 = vmatpush1.bf16.msra.mxu0 0
    %1084 = vmatprep.subr.bf16.mxu0 0
    %1085 = vmatpush1.bf16.msra.mxu0 0
    %1086 = vmatprep.subr.bf16.mxu0 0
    %1087 = vmatpush1.bf16.msra.mxu0 0
    %1088 = vmatprep.subr.bf16.mxu0 0
    %1089 = vmatpush1.bf16.msra.mxu0 0
    %1090 = vmatprep.subr.bf16.mxu0 0
    %1091 = vmatpush1.bf16.msra.mxu0 0
    %1092 = vmatprep.subr.bf16.mxu0 0
    %1093 = vmatpush1.bf16.msra.mxu0 0
    %1094 = vmatprep.subr.bf16.mxu0 0
    %1095 = vmatpush1.bf16.msra.mxu0 0
    %1096 = vmatprep.subr.bf16.mxu0 0
    %1097 = vmatpush1.bf16.msra.mxu0 0
    %1098 = vmatprep.subr.bf16.mxu0 0
    %1099 = vmatpush1.bf16.msra.mxu0 0
    %1100 = vmatprep.subr.bf16.mxu0 0
    %1101 = vmatpush1.bf16.msra.mxu0 0
    %1102 = vmatprep.subr.bf16.mxu0 0
    %1103 = vmatpush1.bf16.msra.mxu0 0
    %1104 = vmatprep.mubr.bf16.mxu0 0
    %1105 = vmatmul.mubr.bf16.gmra.mrb[0].mxu0 %v1070
    %v1106 = vpop.f32.mrb[0].mxu0
    %v1107 = vadd.f32 0.0, %v1106
    %v1108 = vpop.f32.mrb[0].mxu0
    %v1109 = vpop.f32.mrb[0].mxu0
    %v1110 = vpop.f32.mrb[0].mxu0
    %1111 = vdwg.mxu0
    %v1113 = vsel %vm328, %v548, 0
    %1115 = vmatprep.subr.bf16.mxu0 0
    %1116 = vmatpush1.bf16.msra.mxu0 %v912
    %1117 = vmatprep.subr.bf16.mxu0 0
    %1118 = vmatpush1.bf16.msra.mxu0 0
    %1119 = vmatprep.subr.bf16.mxu0 0
    %1120 = vmatpush1.bf16.msra.mxu0 0
    %1121 = vmatprep.subr.bf16.mxu0 0
    %1122 = vmatpush1.bf16.msra.mxu0 0
    %1123 = vmatprep.subr.bf16.mxu0 0
    %1124 = vmatpush1.bf16.msra.mxu0 0
    %1125 = vmatprep.subr.bf16.mxu0 0
    %1126 = vmatpush1.bf16.msra.mxu0 0
    %1127 = vmatprep.subr.bf16.mxu0 0
    %1128 = vmatpush1.bf16.msra.mxu0 0
    %1129 = vmatprep.subr.bf16.mxu0 0
    %1130 = vmatpush1.bf16.msra.mxu0 0
    %1131 = vmatprep.subr.bf16.mxu0 0
    %1132 = vmatpush1.bf16.msra.mxu0 0
    %1133 = vmatprep.subr.bf16.mxu0 0
    %1134 = vmatpush1.bf16.msra.mxu0 0
    %1135 = vmatprep.subr.bf16.mxu0 0
    %1136 = vmatpush1.bf16.msra.mxu0 0
    %1137 = vmatprep.subr.bf16.mxu0 0
    %1138 = vmatpush1.bf16.msra.mxu0 0
    %1139 = vmatprep.subr.bf16.mxu0 0
    %1140 = vmatpush1.bf16.msra.mxu0 0
    %1141 = vmatprep.subr.bf16.mxu0 0
    %1142 = vmatpush1.bf16.msra.mxu0 0
    %1143 = vmatprep.subr.bf16.mxu0 0
    %1144 = vmatpush1.bf16.msra.mxu0 0
    %1145 = vmatprep.subr.bf16.mxu0 0
    %1146 = vmatpush1.bf16.msra.mxu0 0
    %1147 = vmatprep.mubr.bf16.mxu0 0
    %1148 = vmatmul.mubr.bf16.gmra.mrb[0].mxu0 %v1113
    %v1149 = vpop.f32.mrb[0].mxu0
    %v1150 = vadd.f32 %v1107, %v1149
    %v1151 = vpop.f32.mrb[0].mxu0
    %v1152 = vpop.f32.mrb[0].mxu0
    %v1153 = vpop.f32.mrb[0].mxu0
    %1154 = vdwg.mxu0
    %v1155 = vld [vmem:[%s11] sm:$0x1]
    %v1157 = vlaneseq
    %v1158 = vshrl.u32 %v1157, 7
    %v1159 = vsub.s32 0, %v1158
    %v1160 = vrot.slane %v1155, %v1159
    %v1162 = vadd.f32 %v952, %v1160
    %v1163 = vadd.f32 %v1150, %v1160
    %v1164 = vadd.f32 %v74, %v1162
    %v1165 = vadd.f32 %v75, %v1163
    %v1166 = vld [vmem:[%s12] sm:$0x1]
    %v1167 = vld [vmem:[%s13] sm:$0x1]
    %v1168 = vsel %vm83, %v1164, 0.0
    %1169 = vadd.xlane.f32.xlu0 %v1168
    %v1170 = vpop.xlane.xlu0 %1169
    %v1171 = vsel %vm83, %v1165, 0.0
    %1172 = vadd.xlane.f32.xlu0 %v1171
    %v1173 = vpop.xlane.xlu0 %1172
    %v1174 = vmul.f32 %v1170, %v90
    %v1175 = vmul.f32 %v1173, %v90
    %v1176 = vsub.f32 %v1164, %v1174
    %v1177 = vsub.f32 %v1165, %v1175
    %v1178 = vmul.f32 %v1176, %v1176
    %v1179 = vmul.f32 %v1177, %v1177
    %v1180 = vsel %vm83, %v1178, 0.0
    %1181 = vadd.xlane.f32.xlu0 %v1180
    %v1182 = vpop.xlane.xlu0 %1181
    %v1183 = vsel %vm83, %v1179, 0.0
    %1184 = vadd.xlane.f32.xlu0 %v1183
    %v1185 = vpop.xlane.xlu0 %1184
    %v1186 = vmul.f32 %v1182, %v90
    %v1187 = vmul.f32 %v1185, %v90
    %v1188 = vadd.f32 %v1186, 1e-05
    %v1189 = vadd.f32 %v1187, 1e-05
    %v1190 = vrsqrt.pop %v1188
    %v1191 = vrsqrt.pop %v1189
    %v1192 = vmul.f32 %v1176, %v1190
    %v1193 = vmul.f32 %v1177, %v1191
    %v1195 = vlaneseq
    %v1196 = vshrl.u32 %v1195, 7
    %v1197 = vsub.s32 0, %v1196
    %v1198 = vrot.slane %v1166, %v1197
    %v1200 = vmul.f32 %v1192, %v1198
    %v1201 = vmul.f32 %v1193, %v1198
    %v1203 = vlaneseq
    %v1204 = vshrl.u32 %v1203, 7
    %v1205 = vsub.s32 0, %v1204
    %v1206 = vrot.slane %v1167, %v1205
    %v1208 = vadd.f32 %v1200, %v1206
    %v1209 = vadd.f32 %v1201, %v1206
    %v1210 = vpack.c.bf16 %v1209, %v1208
    %v1211 = vld [vmem:[%s14] sm:$0xf]
    %v1212 = vld [vmem:[%s14 + $0x4] sm:$0xf]
    %v1213 = vld [vmem:[%s14 + $0x8] sm:$0xf]
    %v1214 = vld [vmem:[%s14 + $0xc] sm:$0xf]
    %v1215 = vld [vmem:[%s15] sm:$0x1]
    %v1217 = vlaneseq
    %v1218 = vshrl.u32 %v1217, 7
    %v1219 = vsub.s32 0, %v1218
    %v1220 = vrot.slane %v1215, %v1219
    %v1226 = vunpack.c.l.b16 %v1211
    %v1227 = vunpack.c.l.b16 %v1212
    %v1228 = vunpack.c.l.b16 %v1213
    %v1229 = vunpack.c.l.b16 %v1214
    %v1230 = vpack.c.b16 %v1227, %v1226
    %v1231 = vpack.c.b16 %v1229, %v1228
    %v1235 = vsel %vm83, %v1210, 0
    %1237 = vmatprep.subr.bf16.mxu0 0
    %1238 = vmatpush1.bf16.msra.mxu0 %v1230
    %1239 = vmatprep.subr.bf16.mxu0 0
    %1240 = vmatpush1.bf16.msra.mxu0 %v1231
    %1241 = vmatprep.subr.bf16.mxu0 0
    %1242 = vmatpush1.bf16.msra.mxu0 0
    %1243 = vmatprep.subr.bf16.mxu0 0
    %1244 = vmatpush1.bf16.msra.mxu0 0
    %1245 = vmatprep.subr.bf16.mxu0 0
    %1246 = vmatpush1.bf16.msra.mxu0 0
    %1247 = vmatprep.subr.bf16.mxu0 0
    %1248 = vmatpush1.bf16.msra.mxu0 0
    %1249 = vmatprep.subr.bf16.mxu0 0
    %1250 = vmatpush1.bf16.msra.mxu0 0
    %1251 = vmatprep.subr.bf16.mxu0 0
    %1252 = vmatpush1.bf16.msra.mxu0 0
    %1253 = vmatprep.subr.bf16.mxu0 0
    %1254 = vmatpush1.bf16.msra.mxu0 0
    %1255 = vmatprep.subr.bf16.mxu0 0
    %1256 = vmatpush1.bf16.msra.mxu0 0
    %1257 = vmatprep.subr.bf16.mxu0 0
    %1258 = vmatpush1.bf16.msra.mxu0 0
    %1259 = vmatprep.subr.bf16.mxu0 0
    %1260 = vmatpush1.bf16.msra.mxu0 0
    %1261 = vmatprep.subr.bf16.mxu0 0
    %1262 = vmatpush1.bf16.msra.mxu0 0
    %1263 = vmatprep.subr.bf16.mxu0 0
    %1264 = vmatpush1.bf16.msra.mxu0 0
    %1265 = vmatprep.subr.bf16.mxu0 0
    %1266 = vmatpush1.bf16.msra.mxu0 0
    %1267 = vmatprep.subr.bf16.mxu0 0
    %1268 = vmatpush1.bf16.msra.mxu0 0
    %1269 = vmatprep.mubr.bf16.mxu0 0
    %1270 = vmatmul.mubr.bf16.gmra.mrb[0].mxu0 %v1235
    %v1271 = vpop.f32.mrb[0].mxu0
    %v1272 = vadd.f32 %v1220, %v1271
    %v1273 = vpop.f32.mrb[0].mxu0
    %v1274 = vpop.f32.mrb[0].mxu0
    %v1275 = vadd.f32 %v1220, %v1274
    %v1276 = vpop.f32.mrb[0].mxu0
    %1277 = vdwg.mxu0
    %v1278 = vmul.f32 %v1272, 1.702
    %v1279 = vmul.f32 %v1275, 1.702
    %v1280 = vxor.u32 %v1278, 2147483648
    %v1281 = vxor.u32 %v1279, 2147483648
    %v1282 = vmul.f32 %v1280, 1.442695
    %v1283 = vpow.pop %v1282
    %v1284 = vmul.f32 %v1281, 1.442695
    %v1285 = vpow.pop %v1284
    %v1286 = vadd.f32 %v1283, 1.0
    %v1287 = vadd.f32 %v1285, 1.0
    %v1288 = vrcp.pop %v1286
    %v1289 = vmul.f32 1.0, %v1288
    %v1290 = vrcp.pop %v1287
    %v1291 = vmul.f32 1.0, %v1290
    %v1292 = vmul.f32 %v1272, %v1289
    %v1293 = vmul.f32 %v1275, %v1291
    %v1294 = vpack.c.bf16 %v1293, %v1292
    %v1295 = vld [vmem:[%s16] sm:$0xf]
    %v1296 = vld [vmem:[%s16 + $0x4] sm:$0xf]
    %v1297 = vld [vmem:[%s16 + $0x8] sm:$0xf]
    %v1298 = vld [vmem:[%s16 + $0xc] sm:$0xf]
    %v1299 = vld [vmem:[%s16 + $0x10] sm:$0xf]
    %v1300 = vld [vmem:[%s16 + $0x14] sm:$0xf]
    %v1301 = vld [vmem:[%s16 + $0x18] sm:$0xf]
    %v1302 = vld [vmem:[%s16 + $0x1c] sm:$0xf]
    %v1303 = vld [vmem:[%s16 + $0x20] sm:$0xf]
    %v1304 = vld [vmem:[%s16 + $0x24] sm:$0xf]
    %v1305 = vld [vmem:[%s16 + $0x28] sm:$0xf]
    %v1306 = vld [vmem:[%s16 + $0x2c] sm:$0xf]
    %v1307 = vld [vmem:[%s16 + $0x30] sm:$0xf]
    %v1308 = vld [vmem:[%s16 + $0x34] sm:$0xf]
    %v1309 = vld [vmem:[%s16 + $0x38] sm:$0xf]
    %v1310 = vld [vmem:[%s16 + $0x3c] sm:$0xf]
    %v1311 = vld [vmem:[%s17] sm:$0x1]
    %v1313 = vlaneseq
    %v1314 = vshrl.u32 %v1313, 7
    %v1315 = vsub.s32 0, %v1314
    %v1316 = vrot.slane %v1311, %v1315
    %v1334 = vunpack.c.l.b16 %v1295
    %v1335 = vunpack.c.l.b16 %v1296
    %v1336 = vunpack.c.l.b16 %v1297
    %v1337 = vunpack.c.l.b16 %v1298
    %v1338 = vunpack.c.l.b16 %v1299
    %v1339 = vunpack.c.l.b16 %v1300
    %v1340 = vunpack.c.l.b16 %v1301
    %v1341 = vunpack.c.l.b16 %v1302
    %v1342 = vunpack.c.l.b16 %v1303
    %v1343 = vunpack.c.l.b16 %v1304
    %v1344 = vunpack.c.l.b16 %v1305
    %v1345 = vunpack.c.l.b16 %v1306
    %v1346 = vunpack.c.l.b16 %v1307
    %v1347 = vunpack.c.l.b16 %v1308
    %v1348 = vunpack.c.l.b16 %v1309
    %v1349 = vunpack.c.l.b16 %v1310
    %v1350 = vpack.c.b16 %v1335, %v1334
    %v1351 = vpack.c.b16 %v1337, %v1336
    %v1352 = vpack.c.b16 %v1339, %v1338
    %v1353 = vpack.c.b16 %v1341, %v1340
    %v1354 = vpack.c.b16 %v1343, %v1342
    %v1355 = vpack.c.b16 %v1345, %v1344
    %v1356 = vpack.c.b16 %v1347, %v1346
    %v1357 = vpack.c.b16 %v1349, %v1348
    %1366 = vmatprep.subr.bf16.mxu0 0
    %1367 = vmatpush1.bf16.msra.mxu0 %v1350
    %1368 = vmatprep.subr.bf16.mxu0 0
    %1369 = vmatpush1.bf16.msra.mxu0 %v1351
    %1370 = vmatprep.subr.bf16.mxu0 0
    %1371 = vmatpush1.bf16.msra.mxu0 %v1352
    %1372 = vmatprep.subr.bf16.mxu0 0
    %1373 = vmatpush1.bf16.msra.mxu0 %v1353
    %1374 = vmatprep.subr.bf16.mxu0 0
    %1375 = vmatpush1.bf16.msra.mxu0 %v1354
    %1376 = vmatprep.subr.bf16.mxu0 0
    %1377 = vmatpush1.bf16.msra.mxu0 %v1355
    %1378 = vmatprep.subr.bf16.mxu0 0
    %1379 = vmatpush1.bf16.msra.mxu0 %v1356
    %1380 = vmatprep.subr.bf16.mxu0 0
    %1381 = vmatpush1.bf16.msra.mxu0 %v1357
    %1382 = vmatprep.subr.bf16.mxu0 0
    %1383 = vmatpush1.bf16.msra.mxu0 0
    %1384 = vmatprep.subr.bf16.mxu0 0
    %1385 = vmatpush1.bf16.msra.mxu0 0
    %1386 = vmatprep.subr.bf16.mxu0 0
    %1387 = vmatpush1.bf16.msra.mxu0 0
    %1388 = vmatprep.subr.bf16.mxu0 0
    %1389 = vmatpush1.bf16.msra.mxu0 0
    %1390 = vmatprep.subr.bf16.mxu0 0
    %1391 = vmatpush1.bf16.msra.mxu0 0
    %1392 = vmatprep.subr.bf16.mxu0 0
    %1393 = vmatpush1.bf16.msra.mxu0 0
    %1394 = vmatprep.subr.bf16.mxu0 0
    %1395 = vmatpush1.bf16.msra.mxu0 0
    %1396 = vmatprep.subr.bf16.mxu0 0
    %1397 = vmatpush1.bf16.msra.mxu0 0
    %1398 = vmatprep.mubr.bf16.mxu0 0
    %1399 = vmatmul.mubr.bf16.gmra.mrb[0].mxu0 %v1294
    %v1400 = vpop.f32.mrb[0].mxu0
    %v1401 = vadd.f32 %v1316, %v1400
    %v1402 = vpop.f32.mrb[0].mxu0
    %v1403 = vpop.f32.mrb[0].mxu0
    %v1404 = vadd.f32 %v1316, %v1403
    %v1405 = vpop.f32.mrb[0].mxu0
    %1406 = vdwg.mxu0
    %v1407 = vadd.f32 %v1164, %v1401
    %v1408 = vadd.f32 %v1165, %v1404
    %1409 = vst.msk [vmem:[#allocation2] sm:$0xff] %vm83, %v1407
    %1410 = vst.msk [vmem:[#allocation2 + $0x8] sm:$0xff] %vm83, %v1408
    %s1411 = scalar_lea.vmem %s2, 1
    %v1412 = vld [vmem:[%s1411] sm:$0x1]
    %s1413 = scalar_lea.vmem %s3, 1
    %v1414 = vld [vmem:[%s1413] sm:$0x1]
    %v1415 = vsel %vm83, %v1407, 0.0
    %1416 = vadd.xlane.f32.xlu0 %v1415
    %v1417 = vpop.xlane.xlu0 %1416
    %v1418 = vsel %vm83, %v1408, 0.0
    %1419 = vadd.xlane.f32.xlu0 %v1418
    %v1420 = vpop.xlane.xlu0 %1419
    %v1421 = vmul.f32 %v1417, %v90
    %v1422 = vmul.f32 %v1420, %v90
    %v1423 = vsub.f32 %v1407, %v1421
    %v1424 = vsub.f32 %v1408, %v1422
    %v1425 = vmul.f32 %v1423, %v1423
    %v1426 = vmul.f32 %v1424, %v1424
    %v1427 = vsel %vm83, %v1425, 0.0
    %1428 = vadd.xlane.f32.xlu0 %v1427
    %v1429 = vpop.xlane.xlu0 %1428
    %v1430 = vsel %vm83, %v1426, 0.0
    %1431 = vadd.xlane.f32.xlu0 %v1430
    %v1432 = vpop.xlane.xlu0 %1431
    %v1433 = vmul.f32 %v1429, %v90
    %v1434 = vmul.f32 %v1432, %v90
    %v1435 = vadd.f32 %v1433, 1e-05
    %v1436 = vadd.f32 %v1434, 1e-05
    %v1437 = vrsqrt.pop %v1435
    %v1438 = vrsqrt.pop %v1436
    %v1439 = vmul.f32 %v1423, %v1437
    %v1440 = vmul.f32 %v1424, %v1438
    %v1442 = vlaneseq
    %v1443 = vshrl.u32 %v1442, 7
    %v1444 = vsub.s32 0, %v1443
    %v1445 = vrot.slane %v1412, %v1444
    %v1447 = vmul.f32 %v1439, %v1445
    %v1448 = vmul.f32 %v1440, %v1445
    %v1450 = vlaneseq
    %v1451 = vshrl.u32 %v1450, 7
    %v1452 = vsub.s32 0, %v1451
    %v1453 = vrot.slane %v1414, %v1452
    %v1455 = vadd.f32 %v1447, %v1453
    %v1456 = vadd.f32 %v1448, %v1453
    %v1457 = vpack.c.bf16 %v1456, %v1455
    %s1458 = scalar_lea.vmem %s6, 32
    %v1459 = vld [vmem:[%s1458] sm:$0xf]
    %v1460 = vld [vmem:[%s1458 + $0x4] sm:$0xf]
    %v1461 = vld [vmem:[%s1458 + $0x8] sm:$0xf]
    %v1462 = vld [vmem:[%s1458 + $0xc] sm:$0xf]
    %s1463 = scalar_lea.vmem %s7, 2
    %v1464 = vld [vmem:[%s1463] sm:$0x1]
    %v1466 = vlaneseq
    %v1467 = vshrl.u32 %v1466, 7
    %v1468 = vsub.s32 0, %v1467
    %v1469 = vrot.slane %v1464, %v1468
    %v1475 = vunpack.c.l.b16 %v1459
    %v1476 = vunpack.c.l.b16 %v1460
    %v1477 = vunpack.c.l.b16 %v1461
    %v1478 = vunpack.c.l.b16 %v1462
    %v1479 = vpack.c.b16 %v1476, %v1475
    %v1480 = vpack.c.b16 %v1478, %v1477
    %v1484 = vsel %vm83, %v1457, 0
    %1486 = vmatprep.subr.bf16.mxu0 0
    %1487 = vmatpush1.bf16.msra.mxu0 %v1479
    %1488 = vmatprep.subr.bf16.mxu0 0
    %1489 = vmatpush1.bf16.msra.mxu0 %v1480
    %1490 = vmatprep.subr.bf16.mxu0 0
    %1491 = vmatpush1.bf16.msra.mxu0 0
    %1492 = vmatprep.subr.bf16.mxu0 0
    %1493 = vmatpush1.bf16.msra.mxu0 0
    %1494 = vmatprep.subr.bf16.mxu0 0
    %1495 = vmatpush1.bf16.msra.mxu0 0
    %1496 = vmatprep.subr.bf16.mxu0 0
    %1497 = vmatpush1.bf16.msra.mxu0 0
    %1498 = vmatprep.subr.bf16.mxu0 0
    %1499 = vmatpush1.bf16.msra.mxu0 0
    %1500 = vmatprep.subr.bf16.mxu0 0
    %1501 = vmatpush1.bf16.msra.mxu0 0
    %1502 = vmatprep.subr.bf16.mxu0 0
    %1503 = vmatpush1.bf16.msra.mxu0 0
    %1504 = vmatprep.subr.bf16.mxu0 0
    %1505 = vmatpush1.bf16.msra.mxu0 0
    %1506 = vmatprep.subr.bf16.mxu0 0
    %1507 = vmatpush1.bf16.msra.mxu0 0
    %1508 = vmatprep.subr.bf16.mxu0 0
    %1509 = vmatpush1.bf16.msra.mxu0 0
    %1510 = vmatprep.subr.bf16.mxu0 0
    %1511 = vmatpush1.bf16.msra.mxu0 0
    %1512 = vmatprep.subr.bf16.mxu0 0
    %1513 = vmatpush1.bf16.msra.mxu0 0
    %1514 = vmatprep.subr.bf16.mxu0 0
    %1515 = vmatpush1.bf16.msra.mxu0 0
    %1516 = vmatprep.subr.bf16.mxu0 0
    %1517 = vmatpush1.bf16.msra.mxu0 0
    %1518 = vmatprep.mubr.bf16.mxu0 0
    %1519 = vmatmul.mubr.bf16.gmra.mrb[0].mxu0 %v1484
    %v1520 = vpop.f32.mrb[0].mxu0
    %v1521 = vadd.f32 %v1469, %v1520
    %v1522 = vpop.f32.mrb[0].mxu0
    %v1523 = vpop.f32.mrb[0].mxu0
    %v1524 = vadd.f32 %v1469, %v1523
    %v1525 = vpop.f32.mrb[0].mxu0
    %1526 = vdwg.mxu0
    %v1527 = vpack.c.bf16 %v1524, %v1521
    %s1528 = scalar_lea.vmem %s8, 32
    %v1529 = vld [vmem:[%s1528] sm:$0xf]
    %v1530 = vld [vmem:[%s1528 + $0x4] sm:$0xf]
    %v1531 = vld [vmem:[%s1528 + $0x8] sm:$0xf]
    %v1532 = vld [vmem:[%s1528 + $0xc] sm:$0xf]
    %s1533 = scalar_lea.vmem %s9, 2
    %v1534 = vld [vmem:[%s1533] sm:$0x1]
    %v1536 = vlaneseq
    %v1537 = vshrl.u32 %v1536, 7
    %v1538 = vsub.s32 0, %v1537
    %v1539 = vrot.slane %v1534, %v1538
    %v1545 = vunpack.c.l.b16 %v1529
    %v1546 = vunpack.c.l.b16 %v1530
    %v1547 = vunpack.c.l.b16 %v1531
    %v1548 = vunpack.c.l.b16 %v1532
    %v1549 = vpack.c.b16 %v1546, %v1545
    %v1550 = vpack.c.b16 %v1548, %v1547
    %1553 = vmatprep.subr.bf16.mxu0 0
    %1554 = vmatpush1.bf16.msra.mxu0 %v1549
    %1555 = vmatprep.subr.bf16.mxu0 0
    %1556 = vmatpush1.bf16.msra.mxu0 %v1550
    %1557 = vmatprep.subr.bf16.mxu0 0
    %1558 = vmatpush1.bf16.msra.mxu0 0
    %1559 = vmatprep.subr.bf16.mxu0 0
    %1560 = vmatpush1.bf16.msra.mxu0 0
    %1561 = vmatprep.subr.bf16.mxu0 0
    %1562 = vmatpush1.bf16.msra.mxu0 0
    %1563 = vmatprep.subr.bf16.mxu0 0
    %1564 = vmatpush1.bf16.msra.mxu0 0
    %1565 = vmatprep.subr.bf16.mxu0 0
    %1566 = vmatpush1.bf16.msra.mxu0 0
    %1567 = vmatprep.subr.bf16.mxu0 0
    %1568 = vmatpush1.bf16.msra.mxu0 0
    %1569 = vmatprep.subr.bf16.mxu0 0
    %1570 = vmatpush1.bf16.msra.mxu0 0
    %1571 = vmatprep.subr.bf16.mxu0 0
    %1572 = vmatpush1.bf16.msra.mxu0 0
    %1573 = vmatprep.subr.bf16.mxu0 0
    %1574 = vmatpush1.bf16.msra.mxu0 0
    %1575 = vmatprep.subr.bf16.mxu0 0
    %1576 = vmatpush1.bf16.msra.mxu0 0
    %1577 = vmatprep.subr.bf16.mxu0 0
    %1578 = vmatpush1.bf16.msra.mxu0 0
    %1579 = vmatprep.subr.bf16.mxu0 0
    %1580 = vmatpush1.bf16.msra.mxu0 0
    %1581 = vmatprep.subr.bf16.mxu0 0
    %1582 = vmatpush1.bf16.msra.mxu0 0
    %1583 = vmatprep.subr.bf16.mxu0 0
    %1584 = vmatpush1.bf16.msra.mxu0 0
    %1585 = vmatprep.mubr.bf16.mxu0 0
    %1586 = vmatmul.mubr.bf16.gmra.mrb[0].mxu0 %v1484
    %v1587 = vpop.f32.mrb[0].mxu0
    %v1588 = vadd.f32 %v1539, %v1587
    %v1589 = vpop.f32.mrb[0].mxu0
    %v1590 = vpop.f32.mrb[0].mxu0
    %v1591 = vadd.f32 %v1539, %v1590
    %v1592 = vpop.f32.mrb[0].mxu0
    %1593 = vdwg.mxu0
    %v1594 = vpack.c.bf16 %v1591, %v1588
    %s1595 = scalar_lea.vmem %s6, 48
    %v1596 = vld [vmem:[%s1595] sm:$0xf]
    %v1597 = vld [vmem:[%s1595 + $0x4] sm:$0xf]
    %v1598 = vld [vmem:[%s1595 + $0x8] sm:$0xf]
    %v1599 = vld [vmem:[%s1595 + $0xc] sm:$0xf]
    %s1600 = scalar_lea.vmem %s7, 3
    %v1601 = vld [vmem:[%s1600] sm:$0x1]
    %v1603 = vlaneseq
    %v1604 = vshrl.u32 %v1603, 7
    %v1605 = vsub.s32 0, %v1604
    %v1606 = vrot.slane %v1601, %v1605
    %v1612 = vunpack.c.l.b16 %v1596
    %v1613 = vunpack.c.l.b16 %v1597
    %v1614 = vunpack.c.l.b16 %v1598
    %v1615 = vunpack.c.l.b16 %v1599
    %v1616 = vpack.c.b16 %v1613, %v1612
    %v1617 = vpack.c.b16 %v1615, %v1614
    %1620 = vmatprep.subr.bf16.mxu0 0
    %1621 = vmatpush1.bf16.msra.mxu0 %v1616
    %1622 = vmatprep.subr.bf16.mxu0 0
    %1623 = vmatpush1.bf16.msra.mxu0 %v1617
    %1624 = vmatprep.subr.bf16.mxu0 0
    %1625 = vmatpush1.bf16.msra.mxu0 0
    %1626 = vmatprep.subr.bf16.mxu0 0
    %1627 = vmatpush1.bf16.msra.mxu0 0
    %1628 = vmatprep.subr.bf16.mxu0 0
    %1629 = vmatpush1.bf16.msra.mxu0 0
    %1630 = vmatprep.subr.bf16.mxu0 0
    %1631 = vmatpush1.bf16.msra.mxu0 0
    %1632 = vmatprep.subr.bf16.mxu0 0
    %1633 = vmatpush1.bf16.msra.mxu0 0
    %1634 = vmatprep.subr.bf16.mxu0 0
    %1635 = vmatpush1.bf16.msra.mxu0 0
    %1636 = vmatprep.subr.bf16.mxu0 0
    %1637 = vmatpush1.bf16.msra.mxu0 0
    %1638 = vmatprep.subr.bf16.mxu0 0
    %1639 = vmatpush1.bf16.msra.mxu0 0
    %1640 = vmatprep.subr.bf16.mxu0 0
    %1641 = vmatpush1.bf16.msra.mxu0 0
    %1642 = vmatprep.subr.bf16.mxu0 0
    %1643 = vmatpush1.bf16.msra.mxu0 0
    %1644 = vmatprep.subr.bf16.mxu0 0
    %1645 = vmatpush1.bf16.msra.mxu0 0
    %1646 = vmatprep.subr.bf16.mxu0 0
    %1647 = vmatpush1.bf16.msra.mxu0 0
    %1648 = vmatprep.subr.bf16.mxu0 0
    %1649 = vmatpush1.bf16.msra.mxu0 0
    %1650 = vmatprep.subr.bf16.mxu0 0
    %1651 = vmatpush1.bf16.msra.mxu0 0
    %1652 = vmatprep.mubr.bf16.mxu0 0
    %1653 = vmatmul.mubr.bf16.gmra.mrb[0].mxu0 %v1484
    %v1654 = vpop.f32.mrb[0].mxu0
    %v1655 = vadd.f32 %v1606, %v1654
    %v1656 = vpop.f32.mrb[0].mxu0
    %v1657 = vpop.f32.mrb[0].mxu0
    %v1658 = vadd.f32 %v1606, %v1657
    %v1659 = vpop.f32.mrb[0].mxu0
    %1660 = vdwg.mxu0
    %v1661 = vpack.c.bf16 %v1658, %v1655
    %s1662 = scalar_lea.vmem %s8, 48
    %v1663 = vld [vmem:[%s1662] sm:$0xf]
    %v1664 = vld [vmem:[%s1662 + $0x4] sm:$0xf]
    %v1665 = vld [vmem:[%s1662 + $0x8] sm:$0xf]
    %v1666 = vld [vmem:[%s1662 + $0xc] sm:$0xf]
    %s1667 = scalar_lea.vmem %s9, 3
    %v1668 = vld [vmem:[%s1667] sm:$0x1]
    %v1670 = vlaneseq
    %v1671 = vshrl.u32 %v1670, 7
    %v1672 = vsub.s32 0, %v1671
    %v1673 = vrot.slane %v1668, %v1672
    %v1679 = vunpack.c.l.b16 %v1663
    %v1680 = vunpack.c.l.b16 %v1664
    %v1681 = vunpack.c.l.b16 %v1665
    %v1682 = vunpack.c.l.b16 %v1666
    %v1683 = vpack.c.b16 %v1680, %v1679
    %v1684 = vpack.c.b16 %v1682, %v1681
    %1687 = vmatprep.subr.bf16.mxu0 0
    %1688 = vmatpush1.bf16.msra.mxu0 %v1683
    %1689 = vmatprep.subr.bf16.mxu0 0
    %1690 = vmatpush1.bf16.msra.mxu0 %v1684
    %1691 = vmatprep.subr.bf16.mxu0 0
    %1692 = vmatpush1.bf16.msra.mxu0 0
    %1693 = vmatprep.subr.bf16.mxu0 0
    %1694 = vmatpush1.bf16.msra.mxu0 0
    %1695 = vmatprep.subr.bf16.mxu0 0
    %1696 = vmatpush1.bf16.msra.mxu0 0
    %1697 = vmatprep.subr.bf16.mxu0 0
    %1698 = vmatpush1.bf16.msra.mxu0 0
    %1699 = vmatprep.subr.bf16.mxu0 0
    %1700 = vmatpush1.bf16.msra.mxu0 0
    %1701 = vmatprep.subr.bf16.mxu0 0
    %1702 = vmatpush1.bf16.msra.mxu0 0
    %1703 = vmatprep.subr.bf16.mxu0 0
    %1704 = vmatpush1.bf16.msra.mxu0 0
    %1705 = vmatprep.subr.bf16.mxu0 0
    %1706 = vmatpush1.bf16.msra.mxu0 0
    %1707 = vmatprep.subr.bf16.mxu0 0
    %1708 = vmatpush1.bf16.msra.mxu0 0
    %1709 = vmatprep.subr.bf16.mxu0 0
    %1710 = vmatpush1.bf16.msra.mxu0 0
    %1711 = vmatprep.subr.bf16.mxu0 0
    %1712 = vmatpush1.bf16.msra.mxu0 0
    %1713 = vmatprep.subr.bf16.mxu0 0
    %1714 = vmatpush1.bf16.msra.mxu0 0
    %1715 = vmatprep.subr.bf16.mxu0 0
    %1716 = vmatpush1.bf16.msra.mxu0 0
    %1717 = vmatprep.subr.bf16.mxu0 0
    %1718 = vmatpush1.bf16.msra.mxu0 0
    %1719 = vmatprep.mubr.bf16.mxu0 0
    %1720 = vmatmul.mubr.bf16.gmra.mrb[0].mxu0 %v1484
    %v1721 = vpop.f32.mrb[0].mxu0
    %v1722 = vadd.f32 %v1673, %v1721
    %v1723 = vpop.f32.mrb[0].mxu0
    %v1724 = vpop.f32.mrb[0].mxu0
    %v1725 = vadd.f32 %v1673, %v1724
    %v1726 = vpop.f32.mrb[0].mxu0
    %1727 = vdwg.mxu0
    %v1728 = vpack.c.bf16 %v1725, %v1722
    %s1729 = sld [smem:[#allocation4]]
    %s1730 = scalar_lea.vmem [#allocation2], %s1729
    %v1731 = vld [vmem:[%s1730] sm:$0x1]
    %vm1732 = vcmask 253952
    %v1733 = vsel %vm1732, %v1731, 0.0
    %1734 = vadd.xlane.f32.xlu0 %v1733
    %v1735 = vpop.xlane.xlu0 %1734
    %v1736 = vmul.f32 %v1735, %v90
    %v1737 = vsub.f32 %v1731, %v1736
    %v1738 = vmul.f32 %v1737, %v1737
    %v1739 = vsel %vm1732, %v1738, 0.0
    %1740 = vadd.xlane.f32.xlu0 %v1739
    %v1741 = vpop.xlane.xlu0 %1740
    %v1742 = vmul.f32 %v1741, %v90
    %v1743 = vadd.f32 %v1742, 1e-05
    %v1744 = vrsqrt.pop %v1743
    %v1745 = vmul.f32 %v1737, %v1744
    %v1746 = vmul.f32 %v1745, %v1412
    %v1747 = vadd.f32 %v1746, %v1414
    %v1748 = vpack.c.bf16 %v1747, %v1747
    %v1749 = vstv %s1729
    %vm1750 = vcmp.le.s32.totalorder %v79, %v1749
    %s1751 = scalar_lea.vmem %s4, 32
    %v1752 = vld [vmem:[%s1751] sm:$0xf]
    %v1753 = vld [vmem:[%s1751 + $0x4] sm:$0xf]
    %v1754 = vld [vmem:[%s1751 + $0x8] sm:$0xf]
    %v1755 = vld [vmem:[%s1751 + $0xc] sm:$0xf]
    %s1756 = scalar_lea.vmem %s5, 2
    %v1757 = vld [vmem:[%s1756] sm:$0x1]
    %v1762 = vunpack.c.l.b16 %v1752
    %v1763 = vunpack.c.l.b16 %v1753
    %v1764 = vunpack.c.l.b16 %v1754
    %v1765 = vunpack.c.l.b16 %v1755
    %v1766 = vpack.c.b16 %v1763, %v1762
    %v1767 = vpack.c.b16 %v1765, %v1764
    %v1771 = vsel %vm83, %v1748, 0
    %1773 = vmatprep.subr.bf16.mxu0 0
    %1774 = vmatpush1.bf16.msra.mxu0 %v1766
    %1775 = vmatprep.subr.bf16.mxu0 0
    %1776 = vmatpush1.bf16.msra.mxu0 %v1767
    %1777 = vmatprep.subr.bf16.mxu0 0
    %1778 = vmatpush1.bf16.msra.mxu0 0
    %1779 = vmatprep.subr.bf16.mxu0 0
    %1780 = vmatpush1.bf16.msra.mxu0 0
    %1781 = vmatprep.subr.bf16.mxu0 0
    %1782 = vmatpush1.bf16.msra.mxu0 0
    %1783 = vmatprep.subr.bf16.mxu0 0
    %1784 = vmatpush1.bf16.msra.mxu0 0
    %1785 = vmatprep.subr.bf16.mxu0 0
    %1786 = vmatpush1.bf16.msra.mxu0 0
    %1787 = vmatprep.subr.bf16.mxu0 0
    %1788 = vmatpush1.bf16.msra.mxu0 0
    %1789 = vmatprep.subr.bf16.mxu0 0
    %1790 = vmatpush1.bf16.msra.mxu0 0
    %1791 = vmatprep.subr.bf16.mxu0 0
    %1792 = vmatpush1.bf16.msra.mxu0 0
    %1793 = vmatprep.subr.bf16.mxu0 0
    %1794 = vmatpush1.bf16.msra.mxu0 0
    %1795 = vmatprep.subr.bf16.mxu0 0
    %1796 = vmatpush1.bf16.msra.mxu0 0
    %1797 = vmatprep.subr.bf16.mxu0 0
    %1798 = vmatpush1.bf16.msra.mxu0 0
    %1799 = vmatprep.subr.bf16.mxu0 0
    %1800 = vmatpush1.bf16.msra.mxu0 0
    %1801 = vmatprep.subr.bf16.mxu0 0
    %1802 = vmatpush1.bf16.msra.mxu0 0
    %1803 = vmatprep.subr.bf16.mxu0 0
    %1804 = vmatpush1.bf16.msra.mxu0 0
    %1805 = vmatprep.mubr.bf16.mxu0 0
    %1806 = vmatmul.mubr.bf16.gmra.mrb[0].mxu0 %v1771
    %v1807 = vpop.f32.mrb[0].mxu0
    %v1808 = vadd.f32 %v1757, %v1807
    %v1809 = vpop.f32.mrb[0].mxu0
    %v1810 = vpop.f32.mrb[0].mxu0
    %v1811 = vpop.f32.mrb[0].mxu0
    %1812 = vdwg.mxu0
    %v1813 = vpack.c.bf16 %v1808, %v1808
    %v1815 = vsel %vm328, %v1813, 0
    %v1818 = vsel %vm328, %v1527, 0
    %1820 = vmatprep.subr.bf16.mxu0 0
    %1821 = vmatpush1.bf16.xpose.msra.mxu0 %v1818
    %1822 = vmatprep.subr.bf16.mxu0 0
    %1823 = vmatpush1.bf16.xpose.msra.mxu0 0
    %1824 = vmatprep.subr.bf16.mxu0 0
    %1825 = vmatpush1.bf16.xpose.msra.mxu0 0
    %1826 = vmatprep.subr.bf16.mxu0 0
    %1827 = vmatpush1.bf16.xpose.msra.mxu0 0
    %1828 = vmatprep.subr.bf16.mxu0 0
    %1829 = vmatpush1.bf16.xpose.msra.mxu0 0
    %1830 = vmatprep.subr.bf16.mxu0 0
    %1831 = vmatpush1.bf16.xpose.msra.mxu0 0
    %1832 = vmatprep.subr.bf16.mxu0 0
    %1833 = vmatpush1.bf16.xpose.msra.mxu0 0
    %1834 = vmatprep.subr.bf16.mxu0 0
    %1835 = vmatpush1.bf16.xpose.msra.mxu0 0
    %1836 = vmatprep.subr.bf16.mxu0 0
    %1837 = vmatpush1.bf16.xpose.msra.mxu0 0
    %1838 = vmatprep.subr.bf16.mxu0 0
    %1839 = vmatpush1.bf16.xpose.msra.mxu0 0
    %1840 = vmatprep.subr.bf16.mxu0 0
    %1841 = vmatpush1.bf16.xpose.msra.mxu0 0
    %1842 = vmatprep.subr.bf16.mxu0 0
    %1843 = vmatpush1.bf16.xpose.msra.mxu0 0
    %1844 = vmatprep.subr.bf16.mxu0 0
    %1845 = vmatpush1.bf16.xpose.msra.mxu0 0
    %1846 = vmatprep.subr.bf16.mxu0 0
    %1847 = vmatpush1.bf16.xpose.msra.mxu0 0
    %1848 = vmatprep.subr.bf16.mxu0 0
    %1849 = vmatpush1.bf16.xpose.msra.mxu0 0
    %1850 = vmatprep.subr.bf16.mxu0 0
    %1851 = vmatpush1.bf16.xpose.msra.mxu0 0
    %1852 = vmatprep.mubr.bf16.mxu0 0
    %1853 = vmatmul.mubr.bf16.gmra.mrb[0].mxu0 %v1815
    %v1854 = vpop.f32.mrb[0].mxu0
    %v1855 = vadd.f32 0.0, %v1854
    %v1856 = vpop.f32.mrb[0].mxu0
    %v1857 = vpop.f32.mrb[0].mxu0
    %v1858 = vpop.f32.mrb[0].mxu0
    %1859 = vdwg.mxu0
    %v1860 = vsel %vm1750, %v1855, -1e+30
    %vm1861 = vcmask 57344
    %v1862 = vsel %vm1861, %v1860, -inf
    %1863 = vmax.xlane.f32.xlu0 %v1862
    %v1864 = vpop.xlane.xlu0 %1863
    %v1865 = vsub.f32 %v1860, %v1864
    %v1866 = vmul.f32 %v1865, 1.442695
    %v1867 = vpow.pop %v1866
    %v1868 = vsel %vm1861, %v1867, 0.0
    %1869 = vadd.xlane.f32.xlu0 %v1868
    %v1870 = vpop.xlane.xlu0 %1869
    %v1871 = vrcp.pop %v1870
    %v1872 = vmul.f32 %v1867, %v1871
    %v1873 = vpack.c.bf16 %v1872, %v1872
    %v1875 = vsel %vm376, %v1873, 0
    %v1878 = vsel %vm392, %v1594, 0
    %1880 = vmatprep.subr.bf16.mxu0 0
    %1881 = vmatpush1.bf16.msra.mxu0 %v1878
    %1882 = vmatprep.subr.bf16.mxu0 0
    %1883 = vmatpush1.bf16.msra.mxu0 0
    %1884 = vmatprep.subr.bf16.mxu0 0
    %1885 = vmatpush1.bf16.msra.mxu0 0
    %1886 = vmatprep.subr.bf16.mxu0 0
    %1887 = vmatpush1.bf16.msra.mxu0 0
    %1888 = vmatprep.subr.bf16.mxu0 0
    %1889 = vmatpush1.bf16.msra.mxu0 0
    %1890 = vmatprep.subr.bf16.mxu0 0
    %1891 = vmatpush1.bf16.msra.mxu0 0
    %1892 = vmatprep.subr.bf16.mxu0 0
    %1893 = vmatpush1.bf16.msra.mxu0 0
    %1894 = vmatprep.subr.bf16.mxu0 0
    %1895 = vmatpush1.bf16.msra.mxu0 0
    %1896 = vmatprep.subr.bf16.mxu0 0
    %1897 = vmatpush1.bf16.msra.mxu0 0
    %1898 = vmatprep.subr.bf16.mxu0 0
    %1899 = vmatpush1.bf16.msra.mxu0 0
    %1900 = vmatprep.subr.bf16.mxu0 0
    %1901 = vmatpush1.bf16.msra.mxu0 0
    %1902 = vmatprep.subr.bf16.mxu0 0
    %1903 = vmatpush1.bf16.msra.mxu0 0
    %1904 = vmatprep.subr.bf16.mxu0 0
    %1905 = vmatpush1.bf16.msra.mxu0 0
    %1906 = vmatprep.subr.bf16.mxu0 0
    %1907 = vmatpush1.bf16.msra.mxu0 0
    %1908 = vmatprep.subr.bf16.mxu0 0
    %1909 = vmatpush1.bf16.msra.mxu0 0
    %1910 = vmatprep.subr.bf16.mxu0 0
    %1911 = vmatpush1.bf16.msra.mxu0 0
    %1912 = vmatprep.mubr.bf16.mxu0 0
    %1913 = vmatmul.mubr.bf16.gmra.mrb[0].mxu0 %v1875
    %v1914 = vpop.f32.mrb[0].mxu0
    %v1915 = vadd.f32 0.0, %v1914
    %v1916 = vpop.f32.mrb[0].mxu0
    %v1917 = vpop.f32.mrb[0].mxu0
    %v1918 = vpop.f32.mrb[0].mxu0
    %1919 = vdwg.mxu0
    %v1920 = vpack.c.bf16 %v1915, %v1915
    %s1921 = scalar_lea.vmem %s10, 16
    %v1922 = vld [vmem:[%s1921] sm:$0xf]
    %v1923 = vld [vmem:[%s1921 + $0x4] sm:$0xf]
    %s1924 = scalar_lea.vmem %s4, 48
    %v1925 = vld [vmem:[%s1924] sm:$0xf]
    %v1926 = vld [vmem:[%s1924 + $0x4] sm:$0xf]
    %v1927 = vld [vmem:[%s1924 + $0x8] sm:$0xf]
    %v1928 = vld [vmem:[%s1924 + $0xc] sm:$0xf]
    %s1929 = scalar_lea.vmem %s5, 3
    %v1930 = vld [vmem:[%s1929] sm:$0x1]
    %v1935 = vunpack.c.l.b16 %v1925
    %v1936 = vunpack.c.l.b16 %v1926
    %v1937 = vunpack.c.l.b16 %v1927
    %v1938 = vunpack.c.l.b16 %v1928
    %v1939 = vpack.c.b16 %v1936, %v1935
    %v1940 = vpack.c.b16 %v1938, %v1937
    %1943 = vmatprep.subr.bf16.mxu0 0
    %1944 = vmatpush1.bf16.msra.mxu0 %v1939
    %1945 = vmatprep.subr.bf16.mxu0 0
    %1946 = vmatpush1.bf16.msra.mxu0 %v1940
    %1947 = vmatprep.subr.bf16.mxu0 0
    %1948 = vmatpush1.bf16.msra.mxu0 0
    %1949 = vmatprep.subr.bf16.mxu0 0
    %1950 = vmatpush1.bf16.msra.mxu0 0
    %1951 = vmatprep.subr.bf16.mxu0 0
    %1952 = vmatpush1.bf16.msra.mxu0 0
    %1953 = vmatprep.subr.bf16.mxu0 0
    %1954 = vmatpush1.bf16.msra.mxu0 0
    %1955 = vmatprep.subr.bf16.mxu0 0
    %1956 = vmatpush1.bf16.msra.mxu0 0
    %1957 = vmatprep.subr.bf16.mxu0 0
    %1958 = vmatpush1.bf16.msra.mxu0 0
    %1959 = vmatprep.subr.bf16.mxu0 0
    %1960 = vmatpush1.bf16.msra.mxu0 0
    %1961 = vmatprep.subr.bf16.mxu0 0
    %1962 = vmatpush1.bf16.msra.mxu0 0
    %1963 = vmatprep.subr.bf16.mxu0 0
    %1964 = vmatpush1.bf16.msra.mxu0 0
    %1965 = vmatprep.subr.bf16.mxu0 0
    %1966 = vmatpush1.bf16.msra.mxu0 0
    %1967 = vmatprep.subr.bf16.mxu0 0
    %1968 = vmatpush1.bf16.msra.mxu0 0
    %1969 = vmatprep.subr.bf16.mxu0 0
    %1970 = vmatpush1.bf16.msra.mxu0 0
    %1971 = vmatprep.subr.bf16.mxu0 0
    %1972 = vmatpush1.bf16.msra.mxu0 0
    %1973 = vmatprep.subr.bf16.mxu0 0
    %1974 = vmatpush1.bf16.msra.mxu0 0
    %1975 = vmatprep.mubr.bf16.mxu0 0
    %1976 = vmatmul.mubr.bf16.gmra.mrb[0].mxu0 %v1771
    %v1977 = vpop.f32.mrb[0].mxu0
    %v1978 = vadd.f32 %v1930, %v1977
    %v1979 = vpop.f32.mrb[0].mxu0
    %v1980 = vpop.f32.mrb[0].mxu0
    %v1981 = vpop.f32.mrb[0].mxu0
    %1982 = vdwg.mxu0
    %v1983 = vpack.c.bf16 %v1978, %v1978
    %v1985 = vsel %vm328, %v1983, 0
    %v1988 = vsel %vm328, %v1661, 0
    %1990 = vmatprep.subr.bf16.mxu0 0
    %1991 = vmatpush1.bf16.xpose.msra.mxu0 %v1988
    %1992 = vmatprep.subr.bf16.mxu0 0
    %1993 = vmatpush1.bf16.xpose.msra.mxu0 0
    %1994 = vmatprep.subr.bf16.mxu0 0
    %1995 = vmatpush1.bf16.xpose.msra.mxu0 0
    %1996 = vmatprep.subr.bf16.mxu0 0
    %1997 = vmatpush1.bf16.xpose.msra.mxu0 0
    %1998 = vmatprep.subr.bf16.mxu0 0
    %1999 = vmatpush1.bf16.xpose.msra.mxu0 0
    %2000 = vmatprep.subr.bf16.mxu0 0
    %2001 = vmatpush1.bf16.xpose.msra.mxu0 0
    %2002 = vmatprep.subr.bf16.mxu0 0
    %2003 = vmatpush1.bf16.xpose.msra.mxu0 0
    %2004 = vmatprep.subr.bf16.mxu0 0
    %2005 = vmatpush1.bf16.xpose.msra.mxu0 0
    %2006 = vmatprep.subr.bf16.mxu0 0
    %2007 = vmatpush1.bf16.xpose.msra.mxu0 0
    %2008 = vmatprep.subr.bf16.mxu0 0
    %2009 = vmatpush1.bf16.xpose.msra.mxu0 0
    %2010 = vmatprep.subr.bf16.mxu0 0
    %2011 = vmatpush1.bf16.xpose.msra.mxu0 0
    %2012 = vmatprep.subr.bf16.mxu0 0
    %2013 = vmatpush1.bf16.xpose.msra.mxu0 0
    %2014 = vmatprep.subr.bf16.mxu0 0
    %2015 = vmatpush1.bf16.xpose.msra.mxu0 0
    %2016 = vmatprep.subr.bf16.mxu0 0
    %2017 = vmatpush1.bf16.xpose.msra.mxu0 0
    %2018 = vmatprep.subr.bf16.mxu0 0
    %2019 = vmatpush1.bf16.xpose.msra.mxu0 0
    %2020 = vmatprep.subr.bf16.mxu0 0
    %2021 = vmatpush1.bf16.xpose.msra.mxu0 0
    %2022 = vmatprep.mubr.bf16.mxu0 0
    %2023 = vmatmul.mubr.bf16.gmra.mrb[0].mxu0 %v1985
    %v2024 = vpop.f32.mrb[0].mxu0
    %v2025 = vadd.f32 0.0, %v2024
    %v2026 = vpop.f32.mrb[0].mxu0
    %v2027 = vpop.f32.mrb[0].mxu0
    %v2028 = vpop.f32.mrb[0].mxu0
    %2029 = vdwg.mxu0
    %v2030 = vsel %vm1750, %v2025, -1e+30
    %v2031 = vsel %vm1861, %v2030, -inf
    %2032 = vmax.xlane.f32.xlu0 %v2031
    %v2033 = vpop.xlane.xlu0 %2032
    %v2034 = vsub.f32 %v2030, %v2033
    %v2035 = vmul.f32 %v2034, 1.442695
    %v2036 = vpow.pop %v2035
    %v2037 = vsel %vm1861, %v2036, 0.0
    %2038 = vadd.xlane.f32.xlu0 %v2037
    %v2039 = vpop.xlane.xlu0 %2038
    %v2040 = vrcp.pop %v2039
    %v2041 = vmul.f32 %v2036, %v2040
    %v2042 = vpack.c.bf16 %v2041, %v2041
    %v2044 = vsel %vm376, %v2042, 0
    %v2047 = vsel %vm392, %v1728, 0
    %2049 = vmatprep.subr.bf16.mxu0 0
    %2050 = vmatpush1.bf16.msra.mxu0 %v2047
    %2051 = vmatprep.subr.bf16.mxu0 0
    %2052 = vmatpush1.bf16.msra.mxu0 0
    %2053 = vmatprep.subr.bf16.mxu0 0
    %2054 = vmatpush1.bf16.msra.mxu0 0
    %2055 = vmatprep.subr.bf16.mxu0 0
    %2056 = vmatpush1.bf16.msra.mxu0 0
    %2057 = vmatprep.subr.bf16.mxu0 0
    %2058 = vmatpush1.bf16.msra.mxu0 0
    %2059 = vmatprep.subr.bf16.mxu0 0
    %2060 = vmatpush1.bf16.msra.mxu0 0
    %2061 = vmatprep.subr.bf16.mxu0 0
    %2062 = vmatpush1.bf16.msra.mxu0 0
    %2063 = vmatprep.subr.bf16.mxu0 0
    %2064 = vmatpush1.bf16.msra.mxu0 0
    %2065 = vmatprep.subr.bf16.mxu0 0
    %2066 = vmatpush1.bf16.msra.mxu0 0
    %2067 = vmatprep.subr.bf16.mxu0 0
    %2068 = vmatpush1.bf16.msra.mxu0 0
    %2069 = vmatprep.subr.bf16.mxu0 0
    %2070 = vmatpush1.bf16.msra.mxu0 0
    %2071 = vmatprep.subr.bf16.mxu0 0
    %2072 = vmatpush1.bf16.msra.mxu0 0
    %2073 = vmatprep.subr.bf16.mxu0 0
    %2074 = vmatpush1.bf16.msra.mxu0 0
    %2075 = vmatprep.subr.bf16.mxu0 0
    %2076 = vmatpush1.bf16.msra.mxu0 0
    %2077 = vmatprep.subr.bf16.mxu0 0
    %2078 = vmatpush1.bf16.msra.mxu0 0
    %2079 = vmatprep.subr.bf16.mxu0 0
    %2080 = vmatpush1.bf16.msra.mxu0 0
    %2081 = vmatprep.mubr.bf16.mxu0 0
    %2082 = vmatmul.mubr.bf16.gmra.mrb[0].mxu0 %v2044
    %v2083 = vpop.f32.mrb[0].mxu0
    %v2084 = vadd.f32 0.0, %v2083
    %v2085 = vpop.f32.mrb[0].mxu0
    %v2086 = vpop.f32.mrb[0].mxu0
    %v2087 = vpop.f32.mrb[0].mxu0
    %2088 = vdwg.mxu0
    %v2089 = vpack.c.bf16 %v2084, %v2084
    %s2090 = scalar_lea.vmem %s10, 24
    %v2091 = vld [vmem:[%s2090] sm:$0xf]
    %v2092 = vld [vmem:[%s2090 + $0x4] sm:$0xf]
    %v2095 = vunpack.c.l.b16 %v2091
    %v2096 = vunpack.c.l.b16 %v2092
    %v2097 = vpack.c.b16 %v2096, %v2095
    %v2100 = vsel %vm328, %v2089, 0
    %2102 = vmatprep.subr.bf16.mxu0 0
    %2103 = vmatpush1.bf16.msra.mxu0 %v2097
    %2104 = vmatprep.subr.bf16.mxu0 0
    %2105 = vmatpush1.bf16.msra.mxu0 0
    %2106 = vmatprep.subr.bf16.mxu0 0
    %2107 = vmatpush1.bf16.msra.mxu0 0
    %2108 = vmatprep.subr.bf16.mxu0 0
    %2109 = vmatpush1.bf16.msra.mxu0 0
    %2110 = vmatprep.subr.bf16.mxu0 0
    %2111 = vmatpush1.bf16.msra.mxu0 0
    %2112 = vmatprep.subr.bf16.mxu0 0
    %2113 = vmatpush1.bf16.msra.mxu0 0
    %2114 = vmatprep.subr.bf16.mxu0 0
    %2115 = vmatpush1.bf16.msra.mxu0 0
    %2116 = vmatprep.subr.bf16.mxu0 0
    %2117 = vmatpush1.bf16.msra.mxu0 0
    %2118 = vmatprep.subr.bf16.mxu0 0
    %2119 = vmatpush1.bf16.msra.mxu0 0
    %2120 = vmatprep.subr.bf16.mxu0 0
    %2121 = vmatpush1.bf16.msra.mxu0 0
    %2122 = vmatprep.subr.bf16.mxu0 0
    %2123 = vmatpush1.bf16.msra.mxu0 0
    %2124 = vmatprep.subr.bf16.mxu0 0
    %2125 = vmatpush1.bf16.msra.mxu0 0
    %2126 = vmatprep.subr.bf16.mxu0 0
    %2127 = vmatpush1.bf16.msra.mxu0 0
    %2128 = vmatprep.subr.bf16.mxu0 0
    %2129 = vmatpush1.bf16.msra.mxu0 0
    %2130 = vmatprep.subr.bf16.mxu0 0
    %2131 = vmatpush1.bf16.msra.mxu0 0
    %2132 = vmatprep.subr.bf16.mxu0 0
    %2133 = vmatpush1.bf16.msra.mxu0 0
    %2134 = vmatprep.mubr.bf16.mxu0 0
    %2135 = vmatmul.mubr.bf16.gmra.mrb[0].mxu0 %v2100
    %v2136 = vpop.f32.mrb[0].mxu0
    %v2137 = vadd.f32 0.0, %v2136
    %v2138 = vpop.f32.mrb[0].mxu0
    %v2139 = vpop.f32.mrb[0].mxu0
    %v2140 = vpop.f32.mrb[0].mxu0
    %2141 = vdwg.mxu0
    %v2144 = vunpack.c.l.b16 %v1922
    %v2145 = vunpack.c.l.b16 %v1923
    %v2146 = vpack.c.b16 %v2145, %v2144
    %v2149 = vsel %vm328, %v1920, 0
    %2151 = vmatprep.subr.bf16.mxu0 0
    %2152 = vmatpush1.bf16.msra.mxu0 %v2146
    %2153 = vmatprep.subr.bf16.mxu0 0
    %2154 = vmatpush1.bf16.msra.mxu0 0
    %2155 = vmatprep.subr.bf16.mxu0 0
    %2156 = vmatpush1.bf16.msra.mxu0 0
    %2157 = vmatprep.subr.bf16.mxu0 0
    %2158 = vmatpush1.bf16.msra.mxu0 0
    %2159 = vmatprep.subr.bf16.mxu0 0
    %2160 = vmatpush1.bf16.msra.mxu0 0
    %2161 = vmatprep.subr.bf16.mxu0 0
    %2162 = vmatpush1.bf16.msra.mxu0 0
    %2163 = vmatprep.subr.bf16.mxu0 0
    %2164 = vmatpush1.bf16.msra.mxu0 0
    %2165 = vmatprep.subr.bf16.mxu0 0
    %2166 = vmatpush1.bf16.msra.mxu0 0
    %2167 = vmatprep.subr.bf16.mxu0 0
    %2168 = vmatpush1.bf16.msra.mxu0 0
    %2169 = vmatprep.subr.bf16.mxu0 0
    %2170 = vmatpush1.bf16.msra.mxu0 0
    %2171 = vmatprep.subr.bf16.mxu0 0
    %2172 = vmatpush1.bf16.msra.mxu0 0
    %2173 = vmatprep.subr.bf16.mxu0 0
    %2174 = vmatpush1.bf16.msra.mxu0 0
    %2175 = vmatprep.subr.bf16.mxu0 0
    %2176 = vmatpush1.bf16.msra.mxu0 0
    %2177 = vmatprep.subr.bf16.mxu0 0
    %2178 = vmatpush1.bf16.msra.mxu0 0
    %2179 = vmatprep.subr.bf16.mxu0 0
    %2180 = vmatpush1.bf16.msra.mxu0 0
    %2181 = vmatprep.subr.bf16.mxu0 0
    %2182 = vmatpush1.bf16.msra.mxu0 0
    %2183 = vmatprep.mubr.bf16.mxu0 0
    %2184 = vmatmul.mubr.bf16.gmra.mrb[0].mxu0 %v2149
    %v2185 = vpop.f32.mrb[0].mxu0
    %v2186 = vadd.f32 %v2137, %v2185
    %v2187 = vpop.f32.mrb[0].mxu0
    %v2188 = vpop.f32.mrb[0].mxu0
    %v2189 = vpop.f32.mrb[0].mxu0
    %2190 = vdwg.mxu0
    %v2191 = vadd.f32 %v1731, %v2186
    %s2192 = scalar_lea.vmem %s11, 1
    %v2193 = vld [vmem:[%s2192] sm:$0x1]
    %v2194 = vadd.f32 %v2191, %v2193
    %s2195 = scalar_lea.vmem %s12, 1
    %v2196 = vld [vmem:[%s2195] sm:$0x1]
    %s2197 = scalar_lea.vmem %s13, 1
    %v2198 = vld [vmem:[%s2197] sm:$0x1]
    %v2199 = vsel %vm1732, %v2194, 0.0
    %2200 = vadd.xlane.f32.xlu0 %v2199
    %v2201 = vpop.xlane.xlu0 %2200
    %v2202 = vmul.f32 %v2201, %v90
    %v2203 = vsub.f32 %v2194, %v2202
    %v2204 = vmul.f32 %v2203, %v2203
    %v2205 = vsel %vm1732, %v2204, 0.0
    %2206 = vadd.xlane.f32.xlu0 %v2205
    %v2207 = vpop.xlane.xlu0 %2206
    %v2208 = vmul.f32 %v2207, %v90
    %v2209 = vadd.f32 %v2208, 1e-05
    %v2210 = vrsqrt.pop %v2209
    %v2211 = vmul.f32 %v2203, %v2210
    %v2212 = vmul.f32 %v2211, %v2196
    %v2213 = vadd.f32 %v2212, %v2198
    %v2214 = vpack.c.bf16 %v2213, %v2213
    %s2215 = scalar_lea.vmem %s14, 16
    %v2216 = vld [vmem:[%s2215] sm:$0xf]
    %v2217 = vld [vmem:[%s2215 + $0x4] sm:$0xf]
    %v2218 = vld [vmem:[%s2215 + $0x8] sm:$0xf]
    %v2219 = vld [vmem:[%s2215 + $0xc] sm:$0xf]
    %s2220 = scalar_lea.vmem %s15, 1
    %v2221 = vld [vmem:[%s2220] sm:$0x1]
    %v2226 = vunpack.c.l.b16 %v2216
    %v2227 = vunpack.c.l.b16 %v2217
    %v2228 = vunpack.c.l.b16 %v2218
    %v2229 = vunpack.c.l.b16 %v2219
    %v2230 = vpack.c.b16 %v2227, %v2226
    %v2231 = vpack.c.b16 %v2229, %v2228
    %v2235 = vsel %vm83, %v2214, 0
    %2237 = vmatprep.subr.bf16.mxu0 0
    %2238 = vmatpush1.bf16.msra.mxu0 %v2230
    %2239 = vmatprep.subr.bf16.mxu0 0
    %2240 = vmatpush1.bf16.msra.mxu0 %v2231
    %2241 = vmatprep.subr.bf16.mxu0 0
    %2242 = vmatpush1.bf16.msra.mxu0 0
    %2243 = vmatprep.subr.bf16.mxu0 0
    %2244 = vmatpush1.bf16.msra.mxu0 0
    %2245 = vmatprep.subr.bf16.mxu0 0
    %2246 = vmatpush1.bf16.msra.mxu0 0
    %2247 = vmatprep.subr.bf16.mxu0 0
    %2248 = vmatpush1.bf16.msra.mxu0 0
    %2249 = vmatprep.subr.bf16.mxu0 0
    %2250 = vmatpush1.bf16.msra.mxu0 0
    %2251 = vmatprep.subr.bf16.mxu0 0
    %2252 = vmatpush1.bf16.msra.mxu0 0
    %2253 = vmatprep.subr.bf16.mxu0 0
    %2254 = vmatpush1.bf16.msra.mxu0 0
    %2255 = vmatprep.subr.bf16.mxu0 0
    %2256 = vmatpush1.bf16.msra.mxu0 0
    %2257 = vmatprep.subr.bf16.mxu0 0
    %2258 = vmatpush1.bf16.msra.mxu0 0
    %2259 = vmatprep.subr.bf16.mxu0 0
    %2260 = vmatpush1.bf16.msra.mxu0 0
    %2261 = vmatprep.subr.bf16.mxu0 0
    %2262 = vmatpush1.bf16.msra.mxu0 0
    %2263 = vmatprep.subr.bf16.mxu0 0
    %2264 = vmatpush1.bf16.msra.mxu0 0
    %2265 = vmatprep.subr.bf16.mxu0 0
    %2266 = vmatpush1.bf16.msra.mxu0 0
    %2267 = vmatprep.subr.bf16.mxu0 0
    %2268 = vmatpush1.bf16.msra.mxu0 0
    %2269 = vmatprep.mubr.bf16.mxu0 0
    %2270 = vmatmul.mubr.bf16.gmra.mrb[0].mxu0 %v2235
    %v2271 = vpop.f32.mrb[0].mxu0
    %v2272 = vadd.f32 %v2221, %v2271
    %v2273 = vpop.f32.mrb[0].mxu0
    %v2274 = vpop.f32.mrb[0].mxu0
    %v2275 = vpop.f32.mrb[0].mxu0
    %2276 = vdwg.mxu0
    %v2277 = vmul.f32 %v2272, 1.702
    %v2278 = vxor.u32 %v2277, 2147483648
    %v2279 = vmul.f32 %v2278, 1.442695
    %v2280 = vpow.pop %v2279
    %v2281 = vadd.f32 %v2280, 1.0
    %v2282 = vrcp.pop %v2281
    %v2283 = vmul.f32 1.0, %v2282
    %v2284 = vmul.f32 %v2272, %v2283
    %v2285 = vpack.c.bf16 %v2284, %v2284
    %s2286 = scalar_lea.vmem %s16, 64
    %v2287 = vld [vmem:[%s2286] sm:$0xf]
    %v2288 = vld [vmem:[%s2286 + $0x4] sm:$0xf]
    %v2289 = vld [vmem:[%s2286 + $0x8] sm:$0xf]
    %v2290 = vld [vmem:[%s2286 + $0xc] sm:$0xf]
    %v2291 = vld [vmem:[%s2286 + $0x10] sm:$0xf]
    %v2292 = vld [vmem:[%s2286 + $0x14] sm:$0xf]
    %v2293 = vld [vmem:[%s2286 + $0x18] sm:$0xf]
    %v2294 = vld [vmem:[%s2286 + $0x1c] sm:$0xf]
    %v2295 = vld [vmem:[%s2286 + $0x20] sm:$0xf]
    %v2296 = vld [vmem:[%s2286 + $0x24] sm:$0xf]
    %v2297 = vld [vmem:[%s2286 + $0x28] sm:$0xf]
    %v2298 = vld [vmem:[%s2286 + $0x2c] sm:$0xf]
    %v2299 = vld [vmem:[%s2286 + $0x30] sm:$0xf]
    %v2300 = vld [vmem:[%s2286 + $0x34] sm:$0xf]
    %v2301 = vld [vmem:[%s2286 + $0x38] sm:$0xf]
    %v2302 = vld [vmem:[%s2286 + $0x3c] sm:$0xf]
    %s2303 = scalar_lea.vmem %s17, 1
    %v2304 = vld [vmem:[%s2303] sm:$0x1]
    %v2321 = vunpack.c.l.b16 %v2287
    %v2322 = vunpack.c.l.b16 %v2288
    %v2323 = vunpack.c.l.b16 %v2289
    %v2324 = vunpack.c.l.b16 %v2290
    %v2325 = vunpack.c.l.b16 %v2291
    %v2326 = vunpack.c.l.b16 %v2292
    %v2327 = vunpack.c.l.b16 %v2293
    %v2328 = vunpack.c.l.b16 %v2294
    %v2329 = vunpack.c.l.b16 %v2295
    %v2330 = vunpack.c.l.b16 %v2296
    %v2331 = vunpack.c.l.b16 %v2297
    %v2332 = vunpack.c.l.b16 %v2298
    %v2333 = vunpack.c.l.b16 %v2299
    %v2334 = vunpack.c.l.b16 %v2300
    %v2335 = vunpack.c.l.b16 %v2301
    %v2336 = vunpack.c.l.b16 %v2302
    %v2337 = vpack.c.b16 %v2322, %v2321
    %v2338 = vpack.c.b16 %v2324, %v2323
    %v2339 = vpack.c.b16 %v2326, %v2325
    %v2340 = vpack.c.b16 %v2328, %v2327
    %v2341 = vpack.c.b16 %v2330, %v2329
    %v2342 = vpack.c.b16 %v2332, %v2331
    %v2343 = vpack.c.b16 %v2334, %v2333
    %v2344 = vpack.c.b16 %v2336, %v2335
    %2353 = vmatprep.subr.bf16.mxu0 0
    %2354 = vmatpush1.bf16.msra.mxu0 %v2337
    %2355 = vmatprep.subr.bf16.mxu0 0
    %2356 = vmatpush1.bf16.msra.mxu0 %v2338
    %2357 = vmatprep.subr.bf16.mxu0 0
    %2358 = vmatpush1.bf16.msra.mxu0 %v2339
    %2359 = vmatprep.subr.bf16.mxu0 0
    %2360 = vmatpush1.bf16.msra.mxu0 %v2340
    %2361 = vmatprep.subr.bf16.mxu0 0
    %2362 = vmatpush1.bf16.msra.mxu0 %v2341
    %2363 = vmatprep.subr.bf16.mxu0 0
    %2364 = vmatpush1.bf16.msra.mxu0 %v2342
    %2365 = vmatprep.subr.bf16.mxu0 0
    %2366 = vmatpush1.bf16.msra.mxu0 %v2343
    %2367 = vmatprep.subr.bf16.mxu0 0
    %2368 = vmatpush1.bf16.msra.mxu0 %v2344
    %2369 = vmatprep.subr.bf16.mxu0 0
    %2370 = vmatpush1.bf16.msra.mxu0 0
    %2371 = vmatprep.subr.bf16.mxu0 0
    %2372 = vmatpush1.bf16.msra.mxu0 0
    %2373 = vmatprep.subr.bf16.mxu0 0
    %2374 = vmatpush1.bf16.msra.mxu0 0
    %2375 = vmatprep.subr.bf16.mxu0 0
    %2376 = vmatpush1.bf16.msra.mxu0 0
    %2377 = vmatprep.subr.bf16.mxu0 0
    %2378 = vmatpush1.bf16.msra.mxu0 0
    %2379 = vmatprep.subr.bf16.mxu0 0
    %2380 = vmatpush1.bf16.msra.mxu0 0
    %2381 = vmatprep.subr.bf16.mxu0 0
    %2382 = vmatpush1.bf16.msra.mxu0 0
    %2383 = vmatprep.subr.bf16.mxu0 0
    %2384 = vmatpush1.bf16.msra.mxu0 0
    %2385 = vmatprep.mubr.bf16.mxu0 0
    %2386 = vmatmul.mubr.bf16.gmra.mrb[0].mxu0 %v2285
    %v2387 = vpop.f32.mrb[0].mxu0
    %v2388 = vadd.f32 %v2304, %v2387
    %v2389 = vpop.f32.mrb[0].mxu0
    %v2390 = vpop.f32.mrb[0].mxu0
    %v2391 = vpop.f32.mrb[0].mxu0
    %2392 = vdwg.mxu0
    %v2393 = vadd.f32 %v2194, %v2388
    %v2394 = vld [vmem:[%s18] sm:$0x1]
    %v2395 = vld [vmem:[%s19] sm:$0x1]
    %v2396 = vsel %vm1732, %v2393, 0.0
    %2397 = vadd.xlane.f32.xlu0 %v2396
    %v2398 = vpop.xlane.xlu0 %2397
    %v2399 = vmul.f32 %v2398, %v90
    %v2400 = vsub.f32 %v2393, %v2399
    %v2401 = vmul.f32 %v2400, %v2400
    %v2402 = vsel %vm1732, %v2401, 0.0
    %2403 = vadd.xlane.f32.xlu0 %v2402
    %v2404 = vpop.xlane.xlu0 %2403
    %v2405 = vmul.f32 %v2404, %v90
    %v2406 = vadd.f32 %v2405, 1e-05
    %v2407 = vrsqrt.pop %v2406
    %v2408 = vmul.f32 %v2400, %v2407
    %v2409 = vmul.f32 %v2408, %v2394
    %v2410 = vadd.f32 %v2409, %v2395
    %v2411 = vpack.c.bf16 %v2410, %v2410
    %v2412 = vld [vmem:[%s20] sm:$0xf]
    %v2413 = vld [vmem:[%s20 + $0x4] sm:$0xf]
    %v2414 = vld [vmem:[%s20 + $0x8] sm:$0xf]
    %v2415 = vld [vmem:[%s20 + $0xc] sm:$0xf]
    %v2420 = vunpack.c.l.b16 %v2412
    %v2421 = vunpack.c.l.b16 %v2413
    %v2422 = vunpack.c.l.b16 %v2414
    %v2423 = vunpack.c.l.b16 %v2415
    %v2424 = vpack.c.b16 %v2421, %v2420
    %v2425 = vpack.c.b16 %v2423, %v2422
    %v2429 = vsel %vm83, %v2411, 0
    %2431 = vmatprep.subr.bf16.mxu0 0
    %2432 = vmatpush1.bf16.msra.mxu0 %v2424
    %2433 = vmatprep.subr.bf16.mxu0 0
    %2434 = vmatpush1.bf16.msra.mxu0 %v2425
    %2435 = vmatprep.subr.bf16.mxu0 0
    %2436 = vmatpush1.bf16.msra.mxu0 0
    %2437 = vmatprep.subr.bf16.mxu0 0
    %2438 = vmatpush1.bf16.msra.mxu0 0
    %2439 = vmatprep.subr.bf16.mxu0 0
    %2440 = vmatpush1.bf16.msra.mxu0 0
    %2441 = vmatprep.subr.bf16.mxu0 0
    %2442 = vmatpush1.bf16.msra.mxu0 0
    %2443 = vmatprep.subr.bf16.mxu0 0
    %2444 = vmatpush1.bf16.msra.mxu0 0
    %2445 = vmatprep.subr.bf16.mxu0 0
    %2446 = vmatpush1.bf16.msra.mxu0 0
    %2447 = vmatprep.subr.bf16.mxu0 0
    %2448 = vmatpush1.bf16.msra.mxu0 0
    %2449 = vmatprep.subr.bf16.mxu0 0
    %2450 = vmatpush1.bf16.msra.mxu0 0
    %2451 = vmatprep.subr.bf16.mxu0 0
    %2452 = vmatpush1.bf16.msra.mxu0 0
    %2453 = vmatprep.subr.bf16.mxu0 0
    %2454 = vmatpush1.bf16.msra.mxu0 0
    %2455 = vmatprep.subr.bf16.mxu0 0
    %2456 = vmatpush1.bf16.msra.mxu0 0
    %2457 = vmatprep.subr.bf16.mxu0 0
    %2458 = vmatpush1.bf16.msra.mxu0 0
    %2459 = vmatprep.subr.bf16.mxu0 0
    %2460 = vmatpush1.bf16.msra.mxu0 0
    %2461 = vmatprep.subr.bf16.mxu0 0
    %2462 = vmatpush1.bf16.msra.mxu0 0
    %2463 = vmatprep.mubr.bf16.mxu0 0
    %2464 = vmatmul.mubr.bf16.gmra.mrb[0].mxu0 %v2429
    %v2465 = vpop.f32.mrb[0].mxu0
    %v2466 = vadd.f32 0.0, %v2465
    %v2467 = vpop.f32.mrb[0].mxu0
    %v2468 = vpop.f32.mrb[0].mxu0
    %v2469 = vpop.f32.mrb[0].mxu0
    %2470 = vdwg.mxu0
    %s2471 = sld [smem:[#allocation4 + $0x1]]
    %s2472 = sadd.s32 %s2471, 8
    %s2473 = scalar_lea.vmem [#allocation2], %s2472
    %v2474 = vld [vmem:[%s2473] sm:$0x1]
    %v2475 = vsel %vm1732, %v2474, 0.0
    %2476 = vadd.xlane.f32.xlu0 %v2475
    %v2477 = vpop.xlane.xlu0 %2476
    %v2478 = vmul.f32 %v2477, %v90
    %v2479 = vsub.f32 %v2474, %v2478
    %v2480 = vmul.f32 %v2479, %v2479
    %v2481 = vsel %vm1732, %v2480, 0.0
    %2482 = vadd.xlane.f32.xlu0 %v2481
    %v2483 = vpop.xlane.xlu0 %2482
    %v2484 = vmul.f32 %v2483, %v90
    %v2485 = vadd.f32 %v2484, 1e-05
    %v2486 = vrsqrt.pop %v2485
    %v2487 = vmul.f32 %v2479, %v2486
    %v2488 = vmul.f32 %v2487, %v1412
    %v2489 = vadd.f32 %v2488, %v1414
    %v2490 = vpack.c.bf16 %v2489, %v2489
    %v2491 = vstv %s2471
    %vm2492 = vcmp.le.s32.totalorder %v79, %v2491
    %v2494 = vsel %vm83, %v2490, 0
    %2496 = vmatprep.subr.bf16.mxu0 0
    %2497 = vmatpush1.bf16.msra.mxu0 %v1766
    %2498 = vmatprep.subr.bf16.mxu0 0
    %2499 = vmatpush1.bf16.msra.mxu0 %v1767
    %2500 = vmatprep.subr.bf16.mxu0 0
    %2501 = vmatpush1.bf16.msra.mxu0 0
    %2502 = vmatprep.subr.bf16.mxu0 0
    %2503 = vmatpush1.bf16.msra.mxu0 0
    %2504 = vmatprep.subr.bf16.mxu0 0
    %2505 = vmatpush1.bf16.msra.mxu0 0
    %2506 = vmatprep.subr.bf16.mxu0 0
    %2507 = vmatpush1.bf16.msra.mxu0 0
    %2508 = vmatprep.subr.bf16.mxu0 0
    %2509 = vmatpush1.bf16.msra.mxu0 0
    %2510 = vmatprep.subr.bf16.mxu0 0
    %2511 = vmatpush1.bf16.msra.mxu0 0
    %2512 = vmatprep.subr.bf16.mxu0 0
    %2513 = vmatpush1.bf16.msra.mxu0 0
    %2514 = vmatprep.subr.bf16.mxu0 0
    %2515 = vmatpush1.bf16.msra.mxu0 0
    %2516 = vmatprep.subr.bf16.mxu0 0
    %2517 = vmatpush1.bf16.msra.mxu0 0
    %2518 = vmatprep.subr.bf16.mxu0 0
    %2519 = vmatpush1.bf16.msra.mxu0 0
    %2520 = vmatprep.subr.bf16.mxu0 0
    %2521 = vmatpush1.bf16.msra.mxu0 0
    %2522 = vmatprep.subr.bf16.mxu0 0
    %2523 = vmatpush1.bf16.msra.mxu0 0
    %2524 = vmatprep.subr.bf16.mxu0 0
    %2525 = vmatpush1.bf16.msra.mxu0 0
    %2526 = vmatprep.subr.bf16.mxu0 0
    %2527 = vmatpush1.bf16.msra.mxu0 0
    %2528 = vmatprep.mubr.bf16.mxu0 0
    %2529 = vmatmul.mubr.bf16.gmra.mrb[0].mxu0 %v2494
    %v2530 = vpop.f32.mrb[0].mxu0
    %v2531 = vadd.f32 %v1757, %v2530
    %v2532 = vpop.f32.mrb[0].mxu0
    %v2533 = vpop.f32.mrb[0].mxu0
    %v2534 = vpop.f32.mrb[0].mxu0
    %2535 = vdwg.mxu0
    %v2536 = vpack.c.bf16 %v2531, %v2531
    %v2538 = vrot.slane %v1527, 4
    %v2540 = vsel %vm328, %v2536, 0
    %v2543 = vsel %vm328, %v2538, 0
    %2545 = vmatprep.subr.bf16.mxu0 0
    %2546 = vmatpush1.bf16.xpose.msra.mxu0 %v2543
    %2547 = vmatprep.subr.bf16.mxu0 0
    %2548 = vmatpush1.bf16.xpose.msra.mxu0 0
    %2549 = vmatprep.subr.bf16.mxu0 0
    %2550 = vmatpush1.bf16.xpose.msra.mxu0 0
    %2551 = vmatprep.subr.bf16.mxu0 0
    %2552 = vmatpush1.bf16.xpose.msra.mxu0 0
    %2553 = vmatprep.subr.bf16.mxu0 0
    %2554 = vmatpush1.bf16.xpose.msra.mxu0 0
    %2555 = vmatprep.subr.bf16.mxu0 0
    %2556 = vmatpush1.bf16.xpose.msra.mxu0 0
    %2557 = vmatprep.subr.bf16.mxu0 0
    %2558 = vmatpush1.bf16.xpose.msra.mxu0 0
    %2559 = vmatprep.subr.bf16.mxu0 0
    %2560 = vmatpush1.bf16.xpose.msra.mxu0 0
    %2561 = vmatprep.subr.bf16.mxu0 0
    %2562 = vmatpush1.bf16.xpose.msra.mxu0 0
    %2563 = vmatprep.subr.bf16.mxu0 0
    %2564 = vmatpush1.bf16.xpose.msra.mxu0 0
    %2565 = vmatprep.subr.bf16.mxu0 0
    %2566 = vmatpush1.bf16.xpose.msra.mxu0 0
    %2567 = vmatprep.subr.bf16.mxu0 0
    %2568 = vmatpush1.bf16.xpose.msra.mxu0 0
    %2569 = vmatprep.subr.bf16.mxu0 0
    %2570 = vmatpush1.bf16.xpose.msra.mxu0 0
    %2571 = vmatprep.subr.bf16.mxu0 0
    %2572 = vmatpush1.bf16.xpose.msra.mxu0 0
    %2573 = vmatprep.subr.bf16.mxu0 0
    %2574 = vmatpush1.bf16.xpose.msra.mxu0 0
    %2575 = vmatprep.subr.bf16.mxu0 0
    %2576 = vmatpush1.bf16.xpose.msra.mxu0 0
    %2577 = vmatprep.mubr.bf16.mxu0 0
    %2578 = vmatmul.mubr.bf16.gmra.mrb[0].mxu0 %v2540
    %v2579 = vpop.f32.mrb[0].mxu0
    %v2580 = vadd.f32 0.0, %v2579
    %v2581 = vpop.f32.mrb[0].mxu0
    %v2582 = vpop.f32.mrb[0].mxu0
    %v2583 = vpop.f32.mrb[0].mxu0
    %2584 = vdwg.mxu0
    %v2585 = vsel %vm2492, %v2580, -1e+30
    %v2586 = vsel %vm1861, %v2585, -inf
    %2587 = vmax.xlane.f32.xlu0 %v2586
    %v2588 = vpop.xlane.xlu0 %2587
    %v2589 = vsub.f32 %v2585, %v2588
    %v2590 = vmul.f32 %v2589, 1.442695
    %v2591 = vpow.pop %v2590
    %v2592 = vsel %vm1861, %v2591, 0.0
    %2593 = vadd.xlane.f32.xlu0 %v2592
    %v2594 = vpop.xlane.xlu0 %2593
    %v2595 = vrcp.pop %v2594
    %v2596 = vmul.f32 %v2591, %v2595
    %v2597 = vpack.c.bf16 %v2596, %v2596
    %v2599 = vrot.slane %v1594, 4
    %v2601 = vsel %vm376, %v2597, 0
    %v2604 = vsel %vm392, %v2599, 0
    %2606 = vmatprep.subr.bf16.mxu0 0
    %2607 = vmatpush1.bf16.msra.mxu0 %v2604
    %2608 = vmatprep.subr.bf16.mxu0 0
    %2609 = vmatpush1.bf16.msra.mxu0 0
    %2610 = vmatprep.subr.bf16.mxu0 0
    %2611 = vmatpush1.bf16.msra.mxu0 0
    %2612 = vmatprep.subr.bf16.mxu0 0
    %2613 = vmatpush1.bf16.msra.mxu0 0
    %2614 = vmatprep.subr.bf16.mxu0 0
    %2615 = vmatpush1.bf16.msra.mxu0 0
    %2616 = vmatprep.subr.bf16.mxu0 0
    %2617 = vmatpush1.bf16.msra.mxu0 0
    %2618 = vmatprep.subr.bf16.mxu0 0
    %2619 = vmatpush1.bf16.msra.mxu0 0
    %2620 = vmatprep.subr.bf16.mxu0 0
    %2621 = vmatpush1.bf16.msra.mxu0 0
    %2622 = vmatprep.subr.bf16.mxu0 0
    %2623 = vmatpush1.bf16.msra.mxu0 0
    %2624 = vmatprep.subr.bf16.mxu0 0
    %2625 = vmatpush1.bf16.msra.mxu0 0
    %2626 = vmatprep.subr.bf16.mxu0 0
    %2627 = vmatpush1.bf16.msra.mxu0 0
    %2628 = vmatprep.subr.bf16.mxu0 0
    %2629 = vmatpush1.bf16.msra.mxu0 0
    %2630 = vmatprep.subr.bf16.mxu0 0
    %2631 = vmatpush1.bf16.msra.mxu0 0
    %2632 = vmatprep.subr.bf16.mxu0 0
    %2633 = vmatpush1.bf16.msra.mxu0 0
    %2634 = vmatprep.subr.bf16.mxu0 0
    %2635 = vmatpush1.bf16.msra.mxu0 0
    %2636 = vmatprep.subr.bf16.mxu0 0
    %2637 = vmatpush1.bf16.msra.mxu0 0
    %2638 = vmatprep.mubr.bf16.mxu0 0
    %2639 = vmatmul.mubr.bf16.gmra.mrb[0].mxu0 %v2601
    %v2640 = vpop.f32.mrb[0].mxu0
    %v2641 = vadd.f32 0.0, %v2640
    %v2642 = vpop.f32.mrb[0].mxu0
    %v2643 = vpop.f32.mrb[0].mxu0
    %v2644 = vpop.f32.mrb[0].mxu0
    %2645 = vdwg.mxu0
    %v2646 = vpack.c.bf16 %v2641, %v2641
    %2647 = vmatprep.subr.bf16.mxu0 0
    %2648 = vmatpush1.bf16.msra.mxu0 %v1939
    %2649 = vmatprep.subr.bf16.mxu0 0
    %2650 = vmatpush1.bf16.msra.mxu0 %v1940
    %2651 = vmatprep.subr.bf16.mxu0 0
    %2652 = vmatpush1.bf16.msra.mxu0 0
    %2653 = vmatprep.subr.bf16.mxu0 0
    %2654 = vmatpush1.bf16.msra.mxu0 0
    %2655 = vmatprep.subr.bf16.mxu0 0
    %2656 = vmatpush1.bf16.msra.mxu0 0
    %2657 = vmatprep.subr.bf16.mxu0 0
    %2658 = vmatpush1.bf16.msra.mxu0 0
    %2659 = vmatprep.subr.bf16.mxu0 0
    %2660 = vmatpush1.bf16.msra.mxu0 0
    %2661 = vmatprep.subr.bf16.mxu0 0
    %2662 = vmatpush1.bf16.msra.mxu0 0
    %2663 = vmatprep.subr.bf16.mxu0 0
    %2664 = vmatpush1.bf16.msra.mxu0 0
    %2665 = vmatprep.subr.bf16.mxu0 0
    %2666 = vmatpush1.bf16.msra.mxu0 0
    %2667 = vmatprep.subr.bf16.mxu0 0
    %2668 = vmatpush1.bf16.msra.mxu0 0
    %2669 = vmatprep.subr.bf16.mxu0 0
    %2670 = vmatpush1.bf16.msra.mxu0 0
    %2671 = vmatprep.subr.bf16.mxu0 0
    %2672 = vmatpush1.bf16.msra.mxu0 0
    %2673 = vmatprep.subr.bf16.mxu0 0
    %2674 = vmatpush1.bf16.msra.mxu0 0
    %2675 = vmatprep.subr.bf16.mxu0 0
    %2676 = vmatpush1.bf16.msra.mxu0 0
    %2677 = vmatprep.subr.bf16.mxu0 0
    %2678 = vmatpush1.bf16.msra.mxu0 0
    %2679 = vmatprep.mubr.bf16.mxu0 0
    %2680 = vmatmul.mubr.bf16.gmra.mrb[0].mxu0 %v2494
    %v2681 = vpop.f32.mrb[0].mxu0
    %v2682 = vadd.f32 %v1930, %v2681
    %v2683 = vpop.f32.mrb[0].mxu0
    %v2684 = vpop.f32.mrb[0].mxu0
    %v2685 = vpop.f32.mrb[0].mxu0
    %2686 = vdwg.mxu0
    %v2687 = vpack.c.bf16 %v2682, %v2682
    %v2689 = vrot.slane %v1661, 4
    %v2691 = vsel %vm328, %v2687, 0
    %v2694 = vsel %vm328, %v2689, 0
    %2696 = vmatprep.subr.bf16.mxu0 0
    %2697 = vmatpush1.bf16.xpose.msra.mxu0 %v2694
    %2698 = vmatprep.subr.bf16.mxu0 0
    %2699 = vmatpush1.bf16.xpose.msra.mxu0 0
    %2700 = vmatprep.subr.bf16.mxu0 0
    %2701 = vmatpush1.bf16.xpose.msra.mxu0 0
    %2702 = vmatprep.subr.bf16.mxu0 0
    %2703 = vmatpush1.bf16.xpose.msra.mxu0 0
    %2704 = vmatprep.subr.bf16.mxu0 0
    %2705 = vmatpush1.bf16.xpose.msra.mxu0 0
    %2706 = vmatprep.subr.bf16.mxu0 0
    %2707 = vmatpush1.bf16.xpose.msra.mxu0 0
    %2708 = vmatprep.subr.bf16.mxu0 0
    %2709 = vmatpush1.bf16.xpose.msra.mxu0 0
    %2710 = vmatprep.subr.bf16.mxu0 0
    %2711 = vmatpush1.bf16.xpose.msra.mxu0 0
    %2712 = vmatprep.subr.bf16.mxu0 0
    %2713 = vmatpush1.bf16.xpose.msra.mxu0 0
    %2714 = vmatprep.subr.bf16.mxu0 0
    %2715 = vmatpush1.bf16.xpose.msra.mxu0 0
    %2716 = vmatprep.subr.bf16.mxu0 0
    %2717 = vmatpush1.bf16.xpose.msra.mxu0 0
    %2718 = vmatprep.subr.bf16.mxu0 0
    %2719 = vmatpush1.bf16.xpose.msra.mxu0 0
    %2720 = vmatprep.subr.bf16.mxu0 0
    %2721 = vmatpush1.bf16.xpose.msra.mxu0 0
    %2722 = vmatprep.subr.bf16.mxu0 0
    %2723 = vmatpush1.bf16.xpose.msra.mxu0 0
    %2724 = vmatprep.subr.bf16.mxu0 0
    %2725 = vmatpush1.bf16.xpose.msra.mxu0 0
    %2726 = vmatprep.subr.bf16.mxu0 0
    %2727 = vmatpush1.bf16.xpose.msra.mxu0 0
    %2728 = vmatprep.mubr.bf16.mxu0 0
    %2729 = vmatmul.mubr.bf16.gmra.mrb[0].mxu0 %v2691
    %v2730 = vpop.f32.mrb[0].mxu0
    %v2731 = vadd.f32 0.0, %v2730
    %v2732 = vpop.f32.mrb[0].mxu0
    %v2733 = vpop.f32.mrb[0].mxu0
    %v2734 = vpop.f32.mrb[0].mxu0
    %2735 = vdwg.mxu0
    %v2736 = vsel %vm2492, %v2731, -1e+30
    %v2737 = vsel %vm1861, %v2736, -inf
    %2738 = vmax.xlane.f32.xlu0 %v2737
    %v2739 = vpop.xlane.xlu0 %2738
    %v2740 = vsub.f32 %v2736, %v2739
    %v2741 = vmul.f32 %v2740, 1.442695
    %v2742 = vpow.pop %v2741
    %v2743 = vsel %vm1861, %v2742, 0.0
    %2744 = vadd.xlane.f32.xlu0 %v2743
    %v2745 = vpop.xlane.xlu0 %2744
    %v2746 = vrcp.pop %v2745
    %v2747 = vmul.f32 %v2742, %v2746
    %v2748 = vpack.c.bf16 %v2747, %v2747
    %v2750 = vrot.slane %v1728, 4
    %v2752 = vsel %vm376, %v2748, 0
    %v2755 = vsel %vm392, %v2750, 0
    %2757 = vmatprep.subr.bf16.mxu0 0
    %2758 = vmatpush1.bf16.msra.mxu0 %v2755
    %2759 = vmatprep.subr.bf16.mxu0 0
    %2760 = vmatpush1.bf16.msra.mxu0 0
    %2761 = vmatprep.subr.bf16.mxu0 0
    %2762 = vmatpush1.bf16.msra.mxu0 0
    %2763 = vmatprep.subr.bf16.mxu0 0
    %2764 = vmatpush1.bf16.msra.mxu0 0
    %2765 = vmatprep.subr.bf16.mxu0 0
    %2766 = vmatpush1.bf16.msra.mxu0 0
    %2767 = vmatprep.subr.bf16.mxu0 0
    %2768 = vmatpush1.bf16.msra.mxu0 0
    %2769 = vmatprep.subr.bf16.mxu0 0
    %2770 = vmatpush1.bf16.msra.mxu0 0
    %2771 = vmatprep.subr.bf16.mxu0 0
    %2772 = vmatpush1.bf16.msra.mxu0 0
    %2773 = vmatprep.subr.bf16.mxu0 0
    %2774 = vmatpush1.bf16.msra.mxu0 0
    %2775 = vmatprep.subr.bf16.mxu0 0
    %2776 = vmatpush1.bf16.msra.mxu0 0
    %2777 = vmatprep.subr.bf16.mxu0 0
    %2778 = vmatpush1.bf16.msra.mxu0 0
    %2779 = vmatprep.subr.bf16.mxu0 0
    %2780 = vmatpush1.bf16.msra.mxu0 0
    %2781 = vmatprep.subr.bf16.mxu0 0
    %2782 = vmatpush1.bf16.msra.mxu0 0
    %2783 = vmatprep.subr.bf16.mxu0 0
    %2784 = vmatpush1.bf16.msra.mxu0 0
    %2785 = vmatprep.subr.bf16.mxu0 0
    %2786 = vmatpush1.bf16.msra.mxu0 0
    %2787 = vmatprep.subr.bf16.mxu0 0
    %2788 = vmatpush1.bf16.msra.mxu0 0
    %2789 = vmatprep.mubr.bf16.mxu0 0
    %2790 = vmatmul.mubr.bf16.gmra.mrb[0].mxu0 %v2752
    %v2791 = vpop.f32.mrb[0].mxu0
    %v2792 = vadd.f32 0.0, %v2791
    %v2793 = vpop.f32.mrb[0].mxu0
    %v2794 = vpop.f32.mrb[0].mxu0
    %v2795 = vpop.f32.mrb[0].mxu0
    %2796 = vdwg.mxu0
    %v2797 = vpack.c.bf16 %v2792, %v2792
    %v2799 = vsel %vm328, %v2797, 0
    %2801 = vmatprep.subr.bf16.mxu0 0
    %2802 = vmatpush1.bf16.msra.mxu0 %v2097
    %2803 = vmatprep.subr.bf16.mxu0 0
    %2804 = vmatpush1.bf16.msra.mxu0 0
    %2805 = vmatprep.subr.bf16.mxu0 0
    %2806 = vmatpush1.bf16.msra.mxu0 0
    %2807 = vmatprep.subr.bf16.mxu0 0
    %2808 = vmatpush1.bf16.msra.mxu0 0
    %2809 = vmatprep.subr.bf16.mxu0 0
    %2810 = vmatpush1.bf16.msra.mxu0 0
    %2811 = vmatprep.subr.bf16.mxu0 0
    %2812 = vmatpush1.bf16.msra.mxu0 0
    %2813 = vmatprep.subr.bf16.mxu0 0
    %2814 = vmatpush1.bf16.msra.mxu0 0
    %2815 = vmatprep.subr.bf16.mxu0 0
    %2816 = vmatpush1.bf16.msra.mxu0 0
    %2817 = vmatprep.subr.bf16.mxu0 0
    %2818 = vmatpush1.bf16.msra.mxu0 0
    %2819 = vmatprep.subr.bf16.mxu0 0
    %2820 = vmatpush1.bf16.msra.mxu0 0
    %2821 = vmatprep.subr.bf16.mxu0 0
    %2822 = vmatpush1.bf16.msra.mxu0 0
    %2823 = vmatprep.subr.bf16.mxu0 0
    %2824 = vmatpush1.bf16.msra.mxu0 0
    %2825 = vmatprep.subr.bf16.mxu0 0
    %2826 = vmatpush1.bf16.msra.mxu0 0
    %2827 = vmatprep.subr.bf16.mxu0 0
    %2828 = vmatpush1.bf16.msra.mxu0 0
    %2829 = vmatprep.subr.bf16.mxu0 0
    %2830 = vmatpush1.bf16.msra.mxu0 0
    %2831 = vmatprep.subr.bf16.mxu0 0
    %2832 = vmatpush1.bf16.msra.mxu0 0
    %2833 = vmatprep.mubr.bf16.mxu0 0
    %2834 = vmatmul.mubr.bf16.gmra.mrb[0].mxu0 %v2799
    %v2835 = vpop.f32.mrb[0].mxu0
    %v2836 = vadd.f32 0.0, %v2835
    %v2837 = vpop.f32.mrb[0].mxu0
    %v2838 = vpop.f32.mrb[0].mxu0
    %v2839 = vpop.f32.mrb[0].mxu0
    %2840 = vdwg.mxu0
    %v2842 = vsel %vm328, %v2646, 0
    %2844 = vmatprep.subr.bf16.mxu0 0
    %2845 = vmatpush1.bf16.msra.mxu0 %v2146
    %2846 = vmatprep.subr.bf16.mxu0 0
    %2847 = vmatpush1.bf16.msra.mxu0 0
    %2848 = vmatprep.subr.bf16.mxu0 0
    %2849 = vmatpush1.bf16.msra.mxu0 0
    %2850 = vmatprep.subr.bf16.mxu0 0
    %2851 = vmatpush1.bf16.msra.mxu0 0
    %2852 = vmatprep.subr.bf16.mxu0 0
    %2853 = vmatpush1.bf16.msra.mxu0 0
    %2854 = vmatprep.subr.bf16.mxu0 0
    %2855 = vmatpush1.bf16.msra.mxu0 0
    %2856 = vmatprep.subr.bf16.mxu0 0
    %2857 = vmatpush1.bf16.msra.mxu0 0
    %2858 = vmatprep.subr.bf16.mxu0 0
    %2859 = vmatpush1.bf16.msra.mxu0 0
    %2860 = vmatprep.subr.bf16.mxu0 0
    %2861 = vmatpush1.bf16.msra.mxu0 0
    %2862 = vmatprep.subr.bf16.mxu0 0
    %2863 = vmatpush1.bf16.msra.mxu0 0
    %2864 = vmatprep.subr.bf16.mxu0 0
    %2865 = vmatpush1.bf16.msra.mxu0 0
    %2866 = vmatprep.subr.bf16.mxu0 0
    %2867 = vmatpush1.bf16.msra.mxu0 0
    %2868 = vmatprep.subr.bf16.mxu0 0
    %2869 = vmatpush1.bf16.msra.mxu0 0
    %2870 = vmatprep.subr.bf16.mxu0 0
    %2871 = vmatpush1.bf16.msra.mxu0 0
    %2872 = vmatprep.subr.bf16.mxu0 0
    %2873 = vmatpush1.bf16.msra.mxu0 0
    %2874 = vmatprep.subr.bf16.mxu0 0
    %2875 = vmatpush1.bf16.msra.mxu0 0
    %2876 = vmatprep.mubr.bf16.mxu0 0
    %2877 = vmatmul.mubr.bf16.gmra.mrb[0].mxu0 %v2842
    %v2878 = vpop.f32.mrb[0].mxu0
    %v2879 = vadd.f32 %v2836, %v2878
    %v2880 = vpop.f32.mrb[0].mxu0
    %v2881 = vpop.f32.mrb[0].mxu0
    %v2882 = vpop.f32.mrb[0].mxu0
    %2883 = vdwg.mxu0
    %v2884 = vadd.f32 %v2474, %v2879
    %v2885 = vadd.f32 %v2884, %v2193
    %v2886 = vsel %vm1732, %v2885, 0.0
    %2887 = vadd.xlane.f32.xlu0 %v2886
    %v2888 = vpop.xlane.xlu0 %2887
    %v2889 = vmul.f32 %v2888, %v90
    %v2890 = vsub.f32 %v2885, %v2889
    %v2891 = vmul.f32 %v2890, %v2890
    %v2892 = vsel %vm1732, %v2891, 0.0
    %2893 = vadd.xlane.f32.xlu0 %v2892
    %v2894 = vpop.xlane.xlu0 %2893
    %v2895 = vmul.f32 %v2894, %v90
    %v2896 = vadd.f32 %v2895, 1e-05
    %v2897 = vrsqrt.pop %v2896
    %v2898 = vmul.f32 %v2890, %v2897
    %v2899 = vmul.f32 %v2898, %v2196
    %v2900 = vadd.f32 %v2899, %v2198
    %v2901 = vpack.c.bf16 %v2900, %v2900
    %v2903 = vsel %vm83, %v2901, 0
    %2905 = vmatprep.subr.bf16.mxu0 0
    %2906 = vmatpush1.bf16.msra.mxu0 %v2230
    %2907 = vmatprep.subr.bf16.mxu0 0
    %2908 = vmatpush1.bf16.msra.mxu0 %v2231
    %2909 = vmatprep.subr.bf16.mxu0 0
    %2910 = vmatpush1.bf16.msra.mxu0 0
    %2911 = vmatprep.subr.bf16.mxu0 0
    %2912 = vmatpush1.bf16.msra.mxu0 0
    %2913 = vmatprep.subr.bf16.mxu0 0
    %2914 = vmatpush1.bf16.msra.mxu0 0
    %2915 = vmatprep.subr.bf16.mxu0 0
    %2916 = vmatpush1.bf16.msra.mxu0 0
    %2917 = vmatprep.subr.bf16.mxu0 0
    %2918 = vmatpush1.bf16.msra.mxu0 0
    %2919 = vmatprep.subr.bf16.mxu0 0
    %2920 = vmatpush1.bf16.msra.mxu0 0
    %2921 = vmatprep.subr.bf16.mxu0 0
    %2922 = vmatpush1.bf16.msra.mxu0 0
    %2923 = vmatprep.subr.bf16.mxu0 0
    %2924 = vmatpush1.bf16.msra.mxu0 0
    %2925 = vmatprep.subr.bf16.mxu0 0
    %2926 = vmatpush1.bf16.msra.mxu0 0
    %2927 = vmatprep.subr.bf16.mxu0 0
    %2928 = vmatpush1.bf16.msra.mxu0 0
    %2929 = vmatprep.subr.bf16.mxu0 0
    %2930 = vmatpush1.bf16.msra.mxu0 0
    %2931 = vmatprep.subr.bf16.mxu0 0
    %2932 = vmatpush1.bf16.msra.mxu0 0
    %2933 = vmatprep.subr.bf16.mxu0 0
    %2934 = vmatpush1.bf16.msra.mxu0 0
    %2935 = vmatprep.subr.bf16.mxu0 0
    %2936 = vmatpush1.bf16.msra.mxu0 0
    %2937 = vmatprep.mubr.bf16.mxu0 0
    %2938 = vmatmul.mubr.bf16.gmra.mrb[0].mxu0 %v2903
    %v2939 = vpop.f32.mrb[0].mxu0
    %v2940 = vadd.f32 %v2221, %v2939
    %v2941 = vpop.f32.mrb[0].mxu0
    %v2942 = vpop.f32.mrb[0].mxu0
    %v2943 = vpop.f32.mrb[0].mxu0
    %2944 = vdwg.mxu0
    %v2945 = vmul.f32 %v2940, 1.702
    %v2946 = vxor.u32 %v2945, 2147483648
    %v2947 = vmul.f32 %v2946, 1.442695
    %v2948 = vpow.pop %v2947
    %v2949 = vadd.f32 %v2948, 1.0
    %v2950 = vrcp.pop %v2949
    %v2951 = vmul.f32 1.0, %v2950
    %v2952 = vmul.f32 %v2940, %v2951
    %v2953 = vpack.c.bf16 %v2952, %v2952
    %2954 = vmatprep.subr.bf16.mxu0 0
    %2955 = vmatpush1.bf16.msra.mxu0 %v2337
    %2956 = vmatprep.subr.bf16.mxu0 0
    %2957 = vmatpush1.bf16.msra.mxu0 %v2338
    %2958 = vmatprep.subr.bf16.mxu0 0
    %2959 = vmatpush1.bf16.msra.mxu0 %v2339
    %2960 = vmatprep.subr.bf16.mxu0 0
    %2961 = vmatpush1.bf16.msra.mxu0 %v2340
    %2962 = vmatprep.subr.bf16.mxu0 0
    %2963 = vmatpush1.bf16.msra.mxu0 %v2341
    %2964 = vmatprep.subr.bf16.mxu0 0
    %2965 = vmatpush1.bf16.msra.mxu0 %v2342
    %2966 = vmatprep.subr.bf16.mxu0 0
    %2967 = vmatpush1.bf16.msra.mxu0 %v2343
    %2968 = vmatprep.subr.bf16.mxu0 0
    %2969 = vmatpush1.bf16.msra.mxu0 %v2344
    %2970 = vmatprep.subr.bf16.mxu0 0
    %2971 = vmatpush1.bf16.msra.mxu0 0
    %2972 = vmatprep.subr.bf16.mxu0 0
    %2973 = vmatpush1.bf16.msra.mxu0 0
    %2974 = vmatprep.subr.bf16.mxu0 0
    %2975 = vmatpush1.bf16.msra.mxu0 0
    %2976 = vmatprep.subr.bf16.mxu0 0
    %2977 = vmatpush1.bf16.msra.mxu0 0
    %2978 = vmatprep.subr.bf16.mxu0 0
    %2979 = vmatpush1.bf16.msra.mxu0 0
    %2980 = vmatprep.subr.bf16.mxu0 0
    %2981 = vmatpush1.bf16.msra.mxu0 0
    %2982 = vmatprep.subr.bf16.mxu0 0
    %2983 = vmatpush1.bf16.msra.mxu0 0
    %2984 = vmatprep.subr.bf16.mxu0 0
    %2985 = vmatpush1.bf16.msra.mxu0 0
    %2986 = vmatprep.mubr.bf16.mxu0 0
    %2987 = vmatmul.mubr.bf16.gmra.mrb[0].mxu0 %v2953
    %v2988 = vpop.f32.mrb[0].mxu0
    %v2989 = vadd.f32 %v2304, %v2988
    %v2990 = vpop.f32.mrb[0].mxu0
    %v2991 = vpop.f32.mrb[0].mxu0
    %v2992 = vpop.f32.mrb[0].mxu0
    %2993 = vdwg.mxu0
    %v2994 = vadd.f32 %v2885, %v2989
    %v2995 = vsel %vm1732, %v2994, 0.0
    %2996 = vadd.xlane.f32.xlu0 %v2995
    %v2997 = vpop.xlane.xlu0 %2996
    %v2998 = vmul.f32 %v2997, %v90
    %v2999 = vsub.f32 %v2994, %v2998
    %v3000 = vmul.f32 %v2999, %v2999
    %v3001 = vsel %vm1732, %v3000, 0.0
    %3002 = vadd.xlane.f32.xlu0 %v3001
    %v3003 = vpop.xlane.xlu0 %3002
    %v3004 = vmul.f32 %v3003, %v90
    %v3005 = vadd.f32 %v3004, 1e-05
    %v3006 = vrsqrt.pop %v3005
    %v3007 = vmul.f32 %v2999, %v3006
    %v3008 = vmul.f32 %v3007, %v2394
    %v3009 = vadd.f32 %v3008, %v2395
    %v3010 = vpack.c.bf16 %v3009, %v3009
    %v3012 = vsel %vm83, %v3010, 0
    %3014 = vmatprep.subr.bf16.mxu0 0
    %3015 = vmatpush1.bf16.msra.mxu0 %v2424
    %3016 = vmatprep.subr.bf16.mxu0 0
    %3017 = vmatpush1.bf16.msra.mxu0 %v2425
    %3018 = vmatprep.subr.bf16.mxu0 0
    %3019 = vmatpush1.bf16.msra.mxu0 0
    %3020 = vmatprep.subr.bf16.mxu0 0
    %3021 = vmatpush1.bf16.msra.mxu0 0
    %3022 = vmatprep.subr.bf16.mxu0 0
    %3023 = vmatpush1.bf16.msra.mxu0 0
    %3024 = vmatprep.subr.bf16.mxu0 0
    %3025 = vmatpush1.bf16.msra.mxu0 0
    %3026 = vmatprep.subr.bf16.mxu0 0
    %3027 = vmatpush1.bf16.msra.mxu0 0
    %3028 = vmatprep.subr.bf16.mxu0 0
    %3029 = vmatpush1.bf16.msra.mxu0 0
    %3030 = vmatprep.subr.bf16.mxu0 0
    %3031 = vmatpush1.bf16.msra.mxu0 0
    %3032 = vmatprep.subr.bf16.mxu0 0
    %3033 = vmatpush1.bf16.msra.mxu0 0
    %3034 = vmatprep.subr.bf16.mxu0 0
    %3035 = vmatpush1.bf16.msra.mxu0 0
    %3036 = vmatprep.subr.bf16.mxu0 0
    %3037 = vmatpush1.bf16.msra.mxu0 0
    %3038 = vmatprep.subr.bf16.mxu0 0
    %3039 = vmatpush1.bf16.msra.mxu0 0
    %3040 = vmatprep.subr.bf16.mxu0 0
    %3041 = vmatpush1.bf16.msra.mxu0 0
    %3042 = vmatprep.subr.bf16.mxu0 0
    %3043 = vmatpush1.bf16.msra.mxu0 0
    %3044 = vmatprep.subr.bf16.mxu0 0
    %3045 = vmatpush1.bf16.msra.mxu0 0
    %3046 = vmatprep.mubr.bf16.mxu0 0
    %3047 = vmatmul.mubr.bf16.gmra.mrb[0].mxu0 %v3012
    %v3048 = vpop.f32.mrb[0].mxu0
    %v3049 = vadd.f32 0.0, %v3048
    %v3050 = vpop.f32.mrb[0].mxu0
    %v3051 = vpop.f32.mrb[0].mxu0
    %v3052 = vpop.f32.mrb[0].mxu0
    %3053 = vdwg.mxu0
    %v3055 = vrot.slane %v3049, 7
    %vm3057 = vcmask 1040384
    %v3058 = vsel %vm3057, %v2466, %v3055
    %vm3059 = vcmask 123904
    %3060 = vst.msk [vmem:[#allocation5] sm:$0x3] %vm3059, %v3058
    // Predicated region
    $region82: #{tpu_custom_call.1} parent=1 // pred_check
      _
    $region83: #{tpu_custom_call.1} parent=1 // pred_check_branch
      %3062 = sbr.rel (0) target = $region85
    $region84: #{tpu_custom_call.1} parent=1 // pred_region
      %s3064 = ssub.s32 32, 32
      %3065 = vsyncadd [#allocation6], %s3064
      %s3067 = sshll.u32 [#allocation5], 4
      %s3068 = int_to_ptr.vmem [resolvable:$true] %s3067
      %3070 = dma.vmem_to_hbm [thread:$0]  %s3068, 32, %s21, [#allocation6]
    $region85: #{tpu_custom_call.1} parent=1 // pred_fallthru
      _
    // Predicated region
    $region86: #{tpu_custom_call.1} parent=1 // pred_check
      _
    $region87: #{tpu_custom_call.1} parent=1 // pred_check_branch
      %3072 = sbr.rel (0) target = $region89
    $region88: #{tpu_custom_call.1} parent=1 // pred_region
      %3073 = dma.done [#allocation6], 32
    $region89: #{tpu_custom_call.1} parent=1 // pred_fallthru
      _
    %3074 = vsyncpa [#allocation6], 1

</llo_original>
